<compile_context>
chip_gen: v7x
topology: tpu7x:2x2x1
jax: 0.10.0
libtpu: 0.0.40
codegen_flags: <defaults>
</compile_context>

<pallas_src>
import math
import jax
import jax.numpy as jnp
from jax import lax
from jax.experimental import pallas as pl
from jax.experimental.pallas import tpu as pltpu

# ---- small synthetic "BERT" config ----------------------------------------
VOCAB = 64        # vocab size
TYPE_VOCAB = 2    # token-type vocab
MAX_POS = 16      # max position embeddings
H = 32            # hidden size
NH = 2            # attention heads
DH = H // NH      # head dim
FF = 64           # intermediate (FFN) size
NLAYERS = 2       # encoder layers
EPS = 1e-12       # BERT LayerNorm eps
LANES = 128       # final output / vector-blob padded to full lane width
NEG = -1e9        # additive mask bias

EMB_ROWS = VOCAB + MAX_POS + TYPE_VOCAB          # merged embedding table rows

# vector blob layout: one lane-padded (128-wide) row per vector
#   row 0: emb LN gamma, row 1: emb LN beta
#   per layer l (base = 2 + l*VROWS_PER_LAYER):
#     +h          : bq head h   (DH)
#     +NH+h       : bk head h   (DH)
#     +2NH+h      : bv head h   (DH)
#     +3NH        : bo          (H)
#     +3NH+1/+2   : LN1 gamma / beta
#     +3NH+3      : bi          (FF)
#     +3NH+4      : bf          (H)
#     +3NH+5/+6   : LN2 gamma / beta
#   last row: pooler bias (padded to 128)
VROWS_PER_LAYER = 3 * NH + 7
VEC_ROWS = 2 + NLAYERS * VROWS_PER_LAYER + 1


# ---- in-kernel helpers ------------------------------------------------------
def _layernorm(x, g, b):
    mu = jnp.mean(x, axis=-1, keepdims=True)
    var = jnp.mean((x - mu) ** 2, axis=-1, keepdims=True)
    return (x - mu) * jax.lax.rsqrt(var + EPS) * g + b


def _gelu(x):
    # TODO(synk): HF BERT uses exact erf-GELU; tanh approximation kept for robust Mosaic lowering.
    c = math.sqrt(2.0 / math.pi)
    return 0.5 * x * (1.0 + jnp.tanh(c * (x + 0.044715 * x * x * x)))


# ---- single fused Pallas kernel ---------------------------------------------
def encoder_kernel(ids_ref, mask_ref, emb_tab_ref, vecs_ref,
                   wqkv_ref, wo_ref, wi_ref, wf_ref, wp_ref, o_ref):
    """Fused: embedding lookup + LN -> NLAYERS BERT layers -> CLS pooler (tanh)."""
    B = mask_ref.shape[0]
    S = mask_ref.shape[2]
    BS = B * S

    def vec(row, width):
        # lane offset 0 slice of one sublane row -> no relayout
        return vecs_ref[row:row + 1, :width]            # [1, width]

    # ---- fused embedding lookup: word + position + token-type handled by ONE
    # one-hot selection matmul against the merged embedding table (MXU).
    col = lax.broadcasted_iota(jnp.int32, (BS, EMB_ROWS), 1)
    word_id = ids_ref[...]                               # [BS, 1]
    pos_id = (lax.broadcasted_iota(jnp.int32, (B, S, 1), 1).reshape(BS, 1)
              + VOCAB)                                   # position ids 0..S-1
    type_col = VOCAB + MAX_POS                           # token_type_ids == 0
    sel = ((col == word_id).astype(jnp.float32)
           + (col == pos_id).astype(jnp.float32)
           + (col == type_col).astype(jnp.float32))      # [BS, EMB_ROWS]
    x = jnp.dot(sel, emb_tab_ref[...], preferred_element_type=jnp.float32)  # [BS, H]

    # embeddings LayerNorm (batch folded into sublanes: [B*S, H])
    x = _layernorm(x, vec(0, H), vec(1, H))

    # key-side attention bias, computed once; kept [B,1,S], broadcast happens in the add
    bias = (1.0 - mask_ref[...]) * NEG                   # [B, 1, S]

    scale = 1.0 / math.sqrt(DH)
    for l in range(NLAYERS):                             # static unroll (NLAYERS tiny)
        base = 2 + l * VROWS_PER_LAYER
        x_bf = x.astype(jnp.bfloat16)                    # bf16 MXU operands, f32 accumulate

        attn = None
        for h in range(NH):                              # per-head weight slabs -> no lane slicing
            qh = (jnp.dot(x_bf, wqkv_ref[(l * 3 + 0) * NH + h],
                          preferred_element_type=jnp.float32) + vec(base + h, DH))
            kh = (jnp.dot(x_bf, wqkv_ref[(l * 3 + 1) * NH + h],
                          preferred_element_type=jnp.float32) + vec(base + NH + h, DH))
            vh = (jnp.dot(x_bf, wqkv_ref[(l * 3 + 2) * NH + h],
                          preferred_element_type=jnp.float32) + vec(base + 2 * NH + h, DH))
            qh = qh.reshape(B, S, DH)
            kh = kh.reshape(B, S, DH)
            vh = vh.reshape(B, S, DH)
            s = jnp.einsum('bqd,bkd->bqk', qh, kh,
                           preferred_element_type=jnp.float32) * scale + bias
            s = s - jnp.max(s, axis=-1, keepdims=True)
            p = jnp.exp(s)
            p = p / jnp.sum(p, axis=-1, keepdims=True)   # exact divide (parity; EUP not bottleneck)
            ctx = jnp.einsum('bqk,bkd->bqd', p, vh,
                             preferred_element_type=jnp.float32).reshape(BS, DH)
            term = jnp.dot(ctx.astype(jnp.bfloat16), wo_ref[l * NH + h],
                           preferred_element_type=jnp.float32)
            attn = term if attn is None else attn + term  # no zeros() accumulator

        # post-LN 1
        x = _layernorm(x + attn + vec(base + 3 * NH, H),
                       vec(base + 3 * NH + 1, H), vec(base + 3 * NH + 2, H))
        # FFN
        ff = _gelu(jnp.dot(x.astype(jnp.bfloat16), wi_ref[l],
                           preferred_element_type=jnp.float32) + vec(base + 3 * NH + 3, FF))
        ff = (jnp.dot(ff.astype(jnp.bfloat16), wf_ref[l],
                      preferred_element_type=jnp.float32) + vec(base + 3 * NH + 4, H))
        # post-LN 2
        x = _layernorm(x + ff, vec(base + 3 * NH + 5, H), vec(base + 3 * NH + 6, H))

    # ---- pooler on CLS rows (rows 0, S, 2S, ... of the folded activation), picked with
    # a tiny one-hot matmul instead of reshape+index (avoids an epilogue VMEM copy).
    col_bs = lax.broadcasted_iota(jnp.int32, (B, BS), 1)
    cls_col = lax.broadcasted_iota(jnp.int32, (B, BS), 0) * S
    cls = jnp.dot((col_bs == cls_col).astype(jnp.float32), x,
                  preferred_element_type=jnp.float32)     # [B, H]
    # pooler weights lane-padded to 128 -> lane-dense (unmasked) final store
    o_ref[...] = jnp.tanh(jnp.dot(cls.astype(jnp.bfloat16), wp_ref[...],
                                  preferred_element_type=jnp.float32)
                          + vecs_ref[VEC_ROWS - 1:VEC_ROWS, :])


# ---- pallas_call wrapper ----------------------------------------------------
def run_encoder(ids2d, mask3, params):
    B = mask3.shape[0]
    vmem = pl.BlockSpec(memory_space=pltpu.MemorySpace.VMEM)
    inputs = (ids2d, mask3,
              params["emb_table"], params["vecs"],
              params["wqkv"], params["wo"], params["wi"], params["wf"],
              params["wp_pad"])
    pooled_pad = pl.pallas_call(
        encoder_kernel,
        out_shape=jax.ShapeDtypeStruct((B, LANES), jnp.float32),
        in_specs=[vmem] * len(inputs),
        out_specs=vmem,
    )(*inputs)
    return pooled_pad[:, :H]                             # drop lane padding


# ---- parameter init (deterministic, synthetic) ------------------------------
def init_params(key):
    def norm(k, shape, scale=0.02):
        return scale * jax.random.normal(k, shape, dtype=jnp.float32)

    keys = iter(jax.random.split(key, 32))

    word_emb = norm(next(keys), (VOCAB, H))
    pos_emb = norm(next(keys), (MAX_POS, H))
    type_emb = norm(next(keys), (TYPE_VOCAB, H))
    emb_table = jnp.concatenate([word_emb, pos_emb, type_emb], axis=0)   # [EMB_ROWS, H]

    wq = norm(next(keys), (NLAYERS, H, H))
    wk = norm(next(keys), (NLAYERS, H, H))
    wv = norm(next(keys), (NLAYERS, H, H))
    wo = norm(next(keys), (NLAYERS, H, H))
    wi = norm(next(keys), (NLAYERS, H, FF))
    wf = norm(next(keys), (NLAYERS, FF, H))
    pool_w = norm(next(keys), (H, H))

    # restructure per-head (output columns of Wq/Wk/Wv; input rows of Wo)
    def split_out_heads(w):                              # [L,H,H] -> [L,NH,H,DH]
        return w.reshape(NLAYERS, H, NH, DH).transpose(0, 2, 1, 3)

    wqkv = jnp.stack([split_out_heads(wq), split_out_heads(wk), split_out_heads(wv)],
                     axis=1)                             # [L, 3, NH, H, DH]
    wqkv = wqkv.reshape(NLAYERS * 3 * NH, H, DH).astype(jnp.bfloat16)
    wo_blob = wo.reshape(NLAYERS * NH, DH, H).astype(jnp.bfloat16)
    wi_blob = wi.astype(jnp.bfloat16)
    wf_blob = wf.astype(jnp.bfloat16)
    wp_pad = jnp.pad(pool_w, ((0, 0), (0, LANES - H))).astype(jnp.bfloat16)

    # pack all small vectors (biases / LN params) into one lane-padded blob
    def pad_row(v):
        v = jnp.asarray(v, jnp.float32).reshape(-1)
        return jnp.pad(v, (0, LANES - v.shape[0]))

    rows = [pad_row(jnp.ones(H)), pad_row(jnp.zeros(H))]          # emb LN gamma / beta
    for _l in range(NLAYERS):
        for _ in range(3 * NH):                                   # bq/bk/bv per head
            rows.append(pad_row(jnp.zeros(DH)))
        rows.append(pad_row(jnp.zeros(H)))                        # bo
        rows.append(pad_row(jnp.ones(H)))                         # LN1 gamma
        rows.append(pad_row(jnp.zeros(H)))                        # LN1 beta
        rows.append(pad_row(jnp.zeros(FF)))                       # bi
        rows.append(pad_row(jnp.zeros(H)))                        # bf
        rows.append(pad_row(jnp.ones(H)))                         # LN2 gamma
        rows.append(pad_row(jnp.zeros(H)))                        # LN2 beta
    rows.append(pad_row(jnp.zeros(H)))                            # pooler bias
    vecs = jnp.stack(rows, axis=0)                                # [VEC_ROWS, 128]
    assert vecs.shape[0] == VEC_ROWS

    return {
        "emb_table": emb_table,
        "vecs": vecs,
        "wqkv": wqkv,
        "wo": wo_blob,
        "wi": wi_blob,
        "wf": wf_blob,
        "wp_pad": wp_pad,
    }


# ---- full forward (QuestionEncoder.forward equivalent) ----------------------
@jax.jit
def question_encoder_forward(params, question, question_attention_mask):
    """question: int32 [B, S] token ids; mask: int32 [B, S] (1 = token, 0 = pad).
    Returns pooler_output [B, H] (the "question_embedding")."""
    B, S = question.shape
    # only cheap reshapes here; gathers/embeddings happen inside the kernel
    ids2d = question.astype(jnp.int32).reshape(B * S, 1)
    mask3 = question_attention_mask.astype(jnp.float32).reshape(B, 1, S)
    return run_encoder(ids2d, mask3, params)


if __name__ == "__main__":
    B, S = 2, 8
    key = jax.random.PRNGKey(0)
    k_ids, _ = jax.random.split(key)
    question = jax.random.randint(k_ids, (B, S), 0, VOCAB, dtype=jnp.int32)
    # sample 0 fully valid, sample 1 padded in the last 3 positions
    question_attention_mask = jnp.array(
        [[1, 1, 1, 1, 1, 1, 1, 1],
         [1, 1, 1, 1, 1, 0, 0, 0]], dtype=jnp.int32)

    params = init_params(jax.random.PRNGKey(42))
    out = question_encoder_forward(params, question, question_attention_mask)
    out = jax.block_until_ready(out)

    assert out.shape == (B, H), out.shape
    assert out.dtype == jnp.float32
    assert bool(jnp.all(jnp.isfinite(out)))
    print("KERNEL_OK")
</pallas_src>

<mosaic_0001>
module attributes {stable_mosaic.version = 11 : i64} {
  func.func @encoder_kernel(%arg0: memref<16x1xi32, #tpu.memory_space<vmem>>, %arg1: memref<2x1x8xf32, #tpu.memory_space<vmem>>, %arg2: memref<82x32xf32, #tpu.memory_space<vmem>>, %arg3: memref<29x128xf32, #tpu.memory_space<vmem>>, %arg4: memref<12x32x16xbf16, #tpu.memory_space<vmem>>, %arg5: memref<4x16x32xbf16, #tpu.memory_space<vmem>>, %arg6: memref<2x32x64xbf16, #tpu.memory_space<vmem>>, %arg7: memref<2x64x32xbf16, #tpu.memory_space<vmem>>, %arg8: memref<32x128xbf16, #tpu.memory_space<vmem>>, %arg9: memref<2x128xf32, #tpu.memory_space<vmem>>) attributes {dimension_semantics = [], scalar_prefetch = 0 : i64, scratch_operands = 0 : i64, tpu.core_type = #tpu.core_type<tc>} {
    %0 = tpu.iota {dimensions = array<i32: 1>} : vector<16x82xi32>
    %c0 = arith.constant 0 : index
    %c0_0 = arith.constant 0 : index
    %1 = vector.load %arg0[%c0, %c0_0] : memref<16x1xi32, #tpu.memory_space<vmem>>, vector<16x1xi32>
    %2 = tpu.iota {dimensions = array<i32: 1>} : vector<2x8x1xi32>
    %3 = vector.shape_cast %2 : vector<2x8x1xi32> to vector<16x1xi32>
    %c64_i32 = arith.constant 64 : i32
    %4 = vector.broadcast %c64_i32 : i32 to vector<16x1xi32>
    %5 = arith.addi %3, %4 : vector<16x1xi32>
    %6 = vector.broadcast %1 : vector<16x1xi32> to vector<16x82xi32>
    %7 = arith.cmpi eq, %0, %6 : vector<16x82xi32>
    %8 = arith.extui %7 : vector<16x82xi1> to vector<16x82xi32>
    %9 = arith.sitofp %8 : vector<16x82xi32> to vector<16x82xf32>
    %10 = vector.broadcast %5 : vector<16x1xi32> to vector<16x82xi32>
    %11 = arith.cmpi eq, %0, %10 : vector<16x82xi32>
    %12 = arith.extui %11 : vector<16x82xi1> to vector<16x82xi32>
    %13 = arith.sitofp %12 : vector<16x82xi32> to vector<16x82xf32>
    %14 = arith.addf %9, %13 : vector<16x82xf32>
    %c80_i32 = arith.constant 80 : i32
    %15 = vector.broadcast %c80_i32 : i32 to vector<16x82xi32>
    %16 = arith.cmpi eq, %0, %15 : vector<16x82xi32>
    %17 = arith.extui %16 : vector<16x82xi1> to vector<16x82xi32>
    %18 = arith.sitofp %17 : vector<16x82xi32> to vector<16x82xf32>
    %19 = arith.addf %14, %18 : vector<16x82xf32>
    %c0_1 = arith.constant 0 : index
    %c0_2 = arith.constant 0 : index
    %20 = vector.load %arg2[%c0_1, %c0_2] : memref<82x32xf32, #tpu.memory_space<vmem>>, vector<82x32xf32>
    %cst = arith.constant dense<0.000000e+00> : vector<16x32xf32>
    %21 = tpu.matmul %19, %20, %cst {dimension_numbers = #tpu.dot_dimension_numbers<[1], [0], [0], [1], [0, 0, 1, 1], [], []>} : vector<16x82xf32>, vector<82x32xf32>, vector<16x32xf32> -> vector<16x32xf32>
    %c0_3 = arith.constant 0 : index
    %c0_4 = arith.constant 0 : index
    %22 = vector.load %arg3[%c0_3, %c0_4] : memref<29x128xf32, #tpu.memory_space<vmem>>, vector<1x32xf32>
    %c1 = arith.constant 1 : index
    %c0_5 = arith.constant 0 : index
    %23 = vector.load %arg3[%c1, %c0_5] : memref<29x128xf32, #tpu.memory_space<vmem>>, vector<1x32xf32>
    %cst_6 = arith.constant dense<0.000000e+00> : vector<16xf32>
    %24 = vector.multi_reduction <add>, %21, %cst_6 [1] : vector<16x32xf32> to vector<16xf32>
    %25 = vector.shape_cast %24 : vector<16xf32> to vector<16x1xf32>
    %cst_7 = arith.constant 3.200000e+01 : f32
    %26 = vector.broadcast %cst_7 : f32 to vector<16x1xf32>
    %27 = arith.divf %25, %26 : vector<16x1xf32>
    %28 = vector.broadcast %27 : vector<16x1xf32> to vector<16x32xf32>
    %29 = arith.subf %21, %28 : vector<16x32xf32>
    %30 = arith.mulf %29, %29 : vector<16x32xf32>
    %cst_8 = arith.constant dense<0.000000e+00> : vector<16xf32>
    %31 = vector.multi_reduction <add>, %30, %cst_8 [1] : vector<16x32xf32> to vector<16xf32>
    %32 = vector.shape_cast %31 : vector<16xf32> to vector<16x1xf32>
    %cst_9 = arith.constant 3.200000e+01 : f32
    %33 = vector.broadcast %cst_9 : f32 to vector<16x1xf32>
    %34 = arith.divf %32, %33 : vector<16x1xf32>
    %35 = vector.broadcast %27 : vector<16x1xf32> to vector<16x32xf32>
    %36 = arith.subf %21, %35 : vector<16x32xf32>
    %cst_10 = arith.constant 9.99999996E-13 : f32
    %37 = vector.broadcast %cst_10 : f32 to vector<16x1xf32>
    %38 = arith.addf %34, %37 : vector<16x1xf32>
    %39 = math.rsqrt %38 : vector<16x1xf32>
    %40 = vector.broadcast %39 : vector<16x1xf32> to vector<16x32xf32>
    %41 = arith.mulf %36, %40 : vector<16x32xf32>
    %42 = vector.broadcast %22 : vector<1x32xf32> to vector<16x32xf32>
    %43 = arith.mulf %41, %42 : vector<16x32xf32>
    %44 = vector.broadcast %23 : vector<1x32xf32> to vector<16x32xf32>
    %45 = arith.addf %43, %44 : vector<16x32xf32>
    %c0_11 = arith.constant 0 : index
    %c0_12 = arith.constant 0 : index
    %c0_13 = arith.constant 0 : index
    %46 = vector.load %arg1[%c0_11, %c0_12, %c0_13] : memref<2x1x8xf32, #tpu.memory_space<vmem>>, vector<2x1x8xf32>
    %cst_14 = arith.constant 1.000000e+00 : f32
    %47 = vector.broadcast %cst_14 : f32 to vector<2x1x8xf32>
    %48 = arith.subf %47, %46 : vector<2x1x8xf32>
    %cst_15 = arith.constant -1.000000e+09 : f32
    %49 = vector.broadcast %cst_15 : f32 to vector<2x1x8xf32>
    %50 = arith.mulf %48, %49 : vector<2x1x8xf32>
    %51 = arith.truncf %45 : vector<16x32xf32> to vector<16x32xbf16>
    %c0_16 = arith.constant 0 : index
    %c0_17 = arith.constant 0 : index
    %c0_18 = arith.constant 0 : index
    %52 = vector.load %arg4[%c0_16, %c0_17, %c0_18] : memref<12x32x16xbf16, #tpu.memory_space<vmem>>, vector<1x32x16xbf16>
    %53 = vector.shape_cast %52 : vector<1x32x16xbf16> to vector<32x16xbf16>
    %cst_19 = arith.constant dense<0.000000e+00> : vector<16x16xf32>
    %54 = tpu.matmul %51, %53, %cst_19 {dimension_numbers = #tpu.dot_dimension_numbers<[1], [0], [0], [1], [0, 0, 1, 1], [], []>} : vector<16x32xbf16>, vector<32x16xbf16>, vector<16x16xf32> -> vector<16x16xf32>
    %c2 = arith.constant 2 : index
    %c0_20 = arith.constant 0 : index
    %55 = vector.load %arg3[%c2, %c0_20] : memref<29x128xf32, #tpu.memory_space<vmem>>, vector<1x16xf32>
    %56 = vector.broadcast %55 : vector<1x16xf32> to vector<16x16xf32>
    %57 = arith.addf %54, %56 : vector<16x16xf32>
    %c2_21 = arith.constant 2 : index
    %c0_22 = arith.constant 0 : index
    %c0_23 = arith.constant 0 : index
    %58 = vector.load %arg4[%c2_21, %c0_22, %c0_23] : memref<12x32x16xbf16, #tpu.memory_space<vmem>>, vector<1x32x16xbf16>
    %59 = vector.shape_cast %58 : vector<1x32x16xbf16> to vector<32x16xbf16>
    %cst_24 = arith.constant dense<0.000000e+00> : vector<16x16xf32>
    %60 = tpu.matmul %51, %59, %cst_24 {dimension_numbers = #tpu.dot_dimension_numbers<[1], [0], [0], [1], [0, 0, 1, 1], [], []>} : vector<16x32xbf16>, vector<32x16xbf16>, vector<16x16xf32> -> vector<16x16xf32>
    %c4 = arith.constant 4 : index
    %c0_25 = arith.constant 0 : index
    %61 = vector.load %arg3[%c4, %c0_25] : memref<29x128xf32, #tpu.memory_space<vmem>>, vector<1x16xf32>
    %62 = vector.broadcast %61 : vector<1x16xf32> to vector<16x16xf32>
    %63 = arith.addf %60, %62 : vector<16x16xf32>
    %c4_26 = arith.constant 4 : index
    %c0_27 = arith.constant 0 : index
    %c0_28 = arith.constant 0 : index
    %64 = vector.load %arg4[%c4_26, %c0_27, %c0_28] : memref<12x32x16xbf16, #tpu.memory_space<vmem>>, vector<1x32x16xbf16>
    %65 = vector.shape_cast %64 : vector<1x32x16xbf16> to vector<32x16xbf16>
    %cst_29 = arith.constant dense<0.000000e+00> : vector<16x16xf32>
    %66 = tpu.matmul %51, %65, %cst_29 {dimension_numbers = #tpu.dot_dimension_numbers<[1], [0], [0], [1], [0, 0, 1, 1], [], []>} : vector<16x32xbf16>, vector<32x16xbf16>, vector<16x16xf32> -> vector<16x16xf32>
    %c6 = arith.constant 6 : index
    %c0_30 = arith.constant 0 : index
    %67 = vector.load %arg3[%c6, %c0_30] : memref<29x128xf32, #tpu.memory_space<vmem>>, vector<1x16xf32>
    %68 = vector.broadcast %67 : vector<1x16xf32> to vector<16x16xf32>
    %69 = arith.addf %66, %68 : vector<16x16xf32>
    %70 = vector.shape_cast %57 : vector<16x16xf32> to vector<2x8x16xf32>
    %71 = vector.shape_cast %63 : vector<16x16xf32> to vector<2x8x16xf32>
    %72 = vector.shape_cast %69 : vector<16x16xf32> to vector<2x8x16xf32>
    "tpu.trace_start"() <{level = 10 : i32, message = "bqd,bkd->bqk"}> : () -> ()
    %cst_31 = arith.constant dense<0.000000e+00> : vector<2x8x8xf32>
    %73 = tpu.matmul %70, %71, %cst_31 {dimension_numbers = #tpu.dot_dimension_numbers<[2], [2], [1], [1], [0, 0, 0, 1, 1, 1], [0], [0]>} : vector<2x8x16xf32>, vector<2x8x16xf32>, vector<2x8x8xf32> -> vector<2x8x8xf32>
    "tpu.trace_stop"() : () -> ()
    %cst_32 = arith.constant 2.500000e-01 : f32
    %74 = vector.broadcast %cst_32 : f32 to vector<2x8x8xf32>
    %75 = arith.mulf %73, %74 : vector<2x8x8xf32>
    %76 = vector.broadcast %50 : vector<2x1x8xf32> to vector<2x8x8xf32>
    %77 = arith.addf %75, %76 : vector<2x8x8xf32>
    %cst_33 = arith.constant dense<0xFF800000> : vector<2x8xf32>
    %78 = vector.multi_reduction <maximumf>, %77, %cst_33 [2] : vector<2x8x8xf32> to vector<2x8xf32>
    %79 = vector.shape_cast %78 : vector<2x8xf32> to vector<2x8x1xf32>
    %80 = vector.broadcast %79 : vector<2x8x1xf32> to vector<2x8x8xf32>
    %81 = arith.subf %77, %80 : vector<2x8x8xf32>
    %82 = math.exp %81 : vector<2x8x8xf32>
    %cst_34 = arith.constant dense<0.000000e+00> : vector<2x8xf32>
    %83 = vector.multi_reduction <add>, %82, %cst_34 [2] : vector<2x8x8xf32> to vector<2x8xf32>
    %84 = vector.shape_cast %83 : vector<2x8xf32> to vector<2x8x1xf32>
    %85 = vector.broadcast %84 : vector<2x8x1xf32> to vector<2x8x8xf32>
    %86 = arith.divf %82, %85 : vector<2x8x8xf32>
    "tpu.trace_start"() <{level = 10 : i32, message = "bqk,bkd->bqd"}> : () -> ()
    %cst_35 = arith.constant dense<0.000000e+00> : vector<2x8x16xf32>
    %87 = tpu.matmul %86, %72, %cst_35 {dimension_numbers = #tpu.dot_dimension_numbers<[2], [1], [1], [2], [0, 0, 0, 1, 1, 2], [0], [0]>} : vector<2x8x8xf32>, vector<2x8x16xf32>, vector<2x8x16xf32> -> vector<2x8x16xf32>
    "tpu.trace_stop"() : () -> ()
    %88 = vector.shape_cast %87 : vector<2x8x16xf32> to vector<16x16xf32>
    %89 = arith.truncf %88 : vector<16x16xf32> to vector<16x16xbf16>
    %c0_36 = arith.constant 0 : index
    %c0_37 = arith.constant 0 : index
    %c0_38 = arith.constant 0 : index
    %90 = vector.load %arg5[%c0_36, %c0_37, %c0_38] : memref<4x16x32xbf16, #tpu.memory_space<vmem>>, vector<1x16x32xbf16>
    %91 = vector.shape_cast %90 : vector<1x16x32xbf16> to vector<16x32xbf16>
    %cst_39 = arith.constant dense<0.000000e+00> : vector<16x32xf32>
    %92 = tpu.matmul %89, %91, %cst_39 {dimension_numbers = #tpu.dot_dimension_numbers<[1], [0], [0], [1], [0, 0, 1, 1], [], []>} : vector<16x16xbf16>, vector<16x32xbf16>, vector<16x32xf32> -> vector<16x32xf32>
    %c1_40 = arith.constant 1 : index
    %c0_41 = arith.constant 0 : index
    %c0_42 = arith.constant 0 : index
    %93 = vector.load %arg4[%c1_40, %c0_41, %c0_42] : memref<12x32x16xbf16, #tpu.memory_space<vmem>>, vector<1x32x16xbf16>
    %94 = vector.shape_cast %93 : vector<1x32x16xbf16> to vector<32x16xbf16>
    %cst_43 = arith.constant dense<0.000000e+00> : vector<16x16xf32>
    %95 = tpu.matmul %51, %94, %cst_43 {dimension_numbers = #tpu.dot_dimension_numbers<[1], [0], [0], [1], [0, 0, 1, 1], [], []>} : vector<16x32xbf16>, vector<32x16xbf16>, vector<16x16xf32> -> vector<16x16xf32>
    %c3 = arith.constant 3 : index
    %c0_44 = arith.constant 0 : index
    %96 = vector.load %arg3[%c3, %c0_44] : memref<29x128xf32, #tpu.memory_space<vmem>>, vector<1x16xf32>
    %97 = vector.broadcast %96 : vector<1x16xf32> to vector<16x16xf32>
    %98 = arith.addf %95, %97 : vector<16x16xf32>
    %c3_45 = arith.constant 3 : index
    %c0_46 = arith.constant 0 : index
    %c0_47 = arith.constant 0 : index
    %99 = vector.load %arg4[%c3_45, %c0_46, %c0_47] : memref<12x32x16xbf16, #tpu.memory_space<vmem>>, vector<1x32x16xbf16>
    %100 = vector.shape_cast %99 : vector<1x32x16xbf16> to vector<32x16xbf16>
    %cst_48 = arith.constant dense<0.000000e+00> : vector<16x16xf32>
    %101 = tpu.matmul %51, %100, %cst_48 {dimension_numbers = #tpu.dot_dimension_numbers<[1], [0], [0], [1], [0, 0, 1, 1], [], []>} : vector<16x32xbf16>, vector<32x16xbf16>, vector<16x16xf32> -> vector<16x16xf32>
    %c5 = arith.constant 5 : index
    %c0_49 = arith.constant 0 : index
    %102 = vector.load %arg3[%c5, %c0_49] : memref<29x128xf32, #tpu.memory_space<vmem>>, vector<1x16xf32>
    %103 = vector.broadcast %102 : vector<1x16xf32> to vector<16x16xf32>
    %104 = arith.addf %101, %103 : vector<16x16xf32>
    %c5_50 = arith.constant 5 : index
    %c0_51 = arith.constant 0 : index
    %c0_52 = arith.constant 0 : index
    %105 = vector.load %arg4[%c5_50, %c0_51, %c0_52] : memref<12x32x16xbf16, #tpu.memory_space<vmem>>, vector<1x32x16xbf16>
    %106 = vector.shape_cast %105 : vector<1x32x16xbf16> to vector<32x16xbf16>
    %cst_53 = arith.constant dense<0.000000e+00> : vector<16x16xf32>
    %107 = tpu.matmul %51, %106, %cst_53 {dimension_numbers = #tpu.dot_dimension_numbers<[1], [0], [0], [1], [0, 0, 1, 1], [], []>} : vector<16x32xbf16>, vector<32x16xbf16>, vector<16x16xf32> -> vector<16x16xf32>
    %c7 = arith.constant 7 : index
    %c0_54 = arith.constant 0 : index
    %108 = vector.load %arg3[%c7, %c0_54] : memref<29x128xf32, #tpu.memory_space<vmem>>, vector<1x16xf32>
    %109 = vector.broadcast %108 : vector<1x16xf32> to vector<16x16xf32>
    %110 = arith.addf %107, %109 : vector<16x16xf32>
    %111 = vector.shape_cast %98 : vector<16x16xf32> to vector<2x8x16xf32>
    %112 = vector.shape_cast %104 : vector<16x16xf32> to vector<2x8x16xf32>
    %113 = vector.shape_cast %110 : vector<16x16xf32> to vector<2x8x16xf32>
    "tpu.trace_start"() <{level = 10 : i32, message = "bqd,bkd->bqk"}> : () -> ()
    %cst_55 = arith.constant dense<0.000000e+00> : vector<2x8x8xf32>
    %114 = tpu.matmul %111, %112, %cst_55 {dimension_numbers = #tpu.dot_dimension_numbers<[2], [2], [1], [1], [0, 0, 0, 1, 1, 1], [0], [0]>} : vector<2x8x16xf32>, vector<2x8x16xf32>, vector<2x8x8xf32> -> vector<2x8x8xf32>
    "tpu.trace_stop"() : () -> ()
    %cst_56 = arith.constant 2.500000e-01 : f32
    %115 = vector.broadcast %cst_56 : f32 to vector<2x8x8xf32>
    %116 = arith.mulf %114, %115 : vector<2x8x8xf32>
    %117 = vector.broadcast %50 : vector<2x1x8xf32> to vector<2x8x8xf32>
    %118 = arith.addf %116, %117 : vector<2x8x8xf32>
    %cst_57 = arith.constant dense<0xFF800000> : vector<2x8xf32>
    %119 = vector.multi_reduction <maximumf>, %118, %cst_57 [2] : vector<2x8x8xf32> to vector<2x8xf32>
    %120 = vector.shape_cast %119 : vector<2x8xf32> to vector<2x8x1xf32>
    %121 = vector.broadcast %120 : vector<2x8x1xf32> to vector<2x8x8xf32>
    %122 = arith.subf %118, %121 : vector<2x8x8xf32>
    %123 = math.exp %122 : vector<2x8x8xf32>
    %cst_58 = arith.constant dense<0.000000e+00> : vector<2x8xf32>
    %124 = vector.multi_reduction <add>, %123, %cst_58 [2] : vector<2x8x8xf32> to vector<2x8xf32>
    %125 = vector.shape_cast %124 : vector<2x8xf32> to vector<2x8x1xf32>
    %126 = vector.broadcast %125 : vector<2x8x1xf32> to vector<2x8x8xf32>
    %127 = arith.divf %123, %126 : vector<2x8x8xf32>
    "tpu.trace_start"() <{level = 10 : i32, message = "bqk,bkd->bqd"}> : () -> ()
    %cst_59 = arith.constant dense<0.000000e+00> : vector<2x8x16xf32>
    %128 = tpu.matmul %127, %113, %cst_59 {dimension_numbers = #tpu.dot_dimension_numbers<[2], [1], [1], [2], [0, 0, 0, 1, 1, 2], [0], [0]>} : vector<2x8x8xf32>, vector<2x8x16xf32>, vector<2x8x16xf32> -> vector<2x8x16xf32>
    "tpu.trace_stop"() : () -> ()
    %129 = vector.shape_cast %128 : vector<2x8x16xf32> to vector<16x16xf32>
    %130 = arith.truncf %129 : vector<16x16xf32> to vector<16x16xbf16>
    %c1_60 = arith.constant 1 : index
    %c0_61 = arith.constant 0 : index
    %c0_62 = arith.constant 0 : index
    %131 = vector.load %arg5[%c1_60, %c0_61, %c0_62] : memref<4x16x32xbf16, #tpu.memory_space<vmem>>, vector<1x16x32xbf16>
    %132 = vector.shape_cast %131 : vector<1x16x32xbf16> to vector<16x32xbf16>
    %cst_63 = arith.constant dense<0.000000e+00> : vector<16x32xf32>
    %133 = tpu.matmul %130, %132, %cst_63 {dimension_numbers = #tpu.dot_dimension_numbers<[1], [0], [0], [1], [0, 0, 1, 1], [], []>} : vector<16x16xbf16>, vector<16x32xbf16>, vector<16x32xf32> -> vector<16x32xf32>
    %134 = arith.addf %92, %133 : vector<16x32xf32>
    %135 = arith.addf %45, %134 : vector<16x32xf32>
    %c8 = arith.constant 8 : index
    %c0_64 = arith.constant 0 : index
    %136 = vector.load %arg3[%c8, %c0_64] : memref<29x128xf32, #tpu.memory_space<vmem>>, vector<1x32xf32>
    %137 = vector.broadcast %136 : vector<1x32xf32> to vector<16x32xf32>
    %138 = arith.addf %135, %137 : vector<16x32xf32>
    %c9 = arith.constant 9 : index
    %c0_65 = arith.constant 0 : index
    %139 = vector.load %arg3[%c9, %c0_65] : memref<29x128xf32, #tpu.memory_space<vmem>>, vector<1x32xf32>
    %c10 = arith.constant 10 : index
    %c0_66 = arith.constant 0 : index
    %140 = vector.load %arg3[%c10, %c0_66] : memref<29x128xf32, #tpu.memory_space<vmem>>, vector<1x32xf32>
    %cst_67 = arith.constant dense<0.000000e+00> : vector<16xf32>
    %141 = vector.multi_reduction <add>, %138, %cst_67 [1] : vector<16x32xf32> to vector<16xf32>
    %142 = vector.shape_cast %141 : vector<16xf32> to vector<16x1xf32>
    %cst_68 = arith.constant 3.200000e+01 : f32
    %143 = vector.broadcast %cst_68 : f32 to vector<16x1xf32>
    %144 = arith.divf %142, %143 : vector<16x1xf32>
    %145 = vector.broadcast %144 : vector<16x1xf32> to vector<16x32xf32>
    %146 = arith.subf %138, %145 : vector<16x32xf32>
    %147 = arith.mulf %146, %146 : vector<16x32xf32>
    %cst_69 = arith.constant dense<0.000000e+00> : vector<16xf32>
    %148 = vector.multi_reduction <add>, %147, %cst_69 [1] : vector<16x32xf32> to vector<16xf32>
    %149 = vector.shape_cast %148 : vector<16xf32> to vector<16x1xf32>
    %cst_70 = arith.constant 3.200000e+01 : f32
    %150 = vector.broadcast %cst_70 : f32 to vector<16x1xf32>
    %151 = arith.divf %149, %150 : vector<16x1xf32>
    %152 = vector.broadcast %144 : vector<16x1xf32> to vector<16x32xf32>
    %153 = arith.subf %138, %152 : vector<16x32xf32>
    %cst_71 = arith.constant 9.99999996E-13 : f32
    %154 = vector.broadcast %cst_71 : f32 to vector<16x1xf32>
    %155 = arith.addf %151, %154 : vector<16x1xf32>
    %156 = math.rsqrt %155 : vector<16x1xf32>
    %157 = vector.broadcast %156 : vector<16x1xf32> to vector<16x32xf32>
    %158 = arith.mulf %153, %157 : vector<16x32xf32>
    %159 = vector.broadcast %139 : vector<1x32xf32> to vector<16x32xf32>
    %160 = arith.mulf %158, %159 : vector<16x32xf32>
    %161 = vector.broadcast %140 : vector<1x32xf32> to vector<16x32xf32>
    %162 = arith.addf %160, %161 : vector<16x32xf32>
    %163 = arith.truncf %162 : vector<16x32xf32> to vector<16x32xbf16>
    %c0_72 = arith.constant 0 : index
    %c0_73 = arith.constant 0 : index
    %c0_74 = arith.constant 0 : index
    %164 = vector.load %arg6[%c0_72, %c0_73, %c0_74] : memref<2x32x64xbf16, #tpu.memory_space<vmem>>, vector<1x32x64xbf16>
    %165 = vector.shape_cast %164 : vector<1x32x64xbf16> to vector<32x64xbf16>
    %cst_75 = arith.constant dense<0.000000e+00> : vector<16x64xf32>
    %166 = tpu.matmul %163, %165, %cst_75 {dimension_numbers = #tpu.dot_dimension_numbers<[1], [0], [0], [1], [0, 0, 1, 1], [], []>} : vector<16x32xbf16>, vector<32x64xbf16>, vector<16x64xf32> -> vector<16x64xf32>
    %c11 = arith.constant 11 : index
    %c0_76 = arith.constant 0 : index
    %167 = vector.load %arg3[%c11, %c0_76] : memref<29x128xf32, #tpu.memory_space<vmem>>, vector<1x64xf32>
    %168 = vector.broadcast %167 : vector<1x64xf32> to vector<16x64xf32>
    %169 = arith.addf %166, %168 : vector<16x64xf32>
    %cst_77 = arith.constant 5.000000e-01 : f32
    %170 = vector.broadcast %cst_77 : f32 to vector<16x64xf32>
    %171 = arith.mulf %170, %169 : vector<16x64xf32>
    %cst_78 = arith.constant 4.471500e-02 : f32
    %172 = vector.broadcast %cst_78 : f32 to vector<16x64xf32>
    %173 = arith.mulf %172, %169 : vector<16x64xf32>
    %174 = arith.mulf %173, %169 : vector<16x64xf32>
    %175 = arith.mulf %174, %169 : vector<16x64xf32>
    %176 = arith.addf %169, %175 : vector<16x64xf32>
    %cst_79 = arith.constant 0.797884583 : f32
    %177 = vector.broadcast %cst_79 : f32 to vector<16x64xf32>
    %178 = arith.mulf %177, %176 : vector<16x64xf32>
    %179 = math.tanh %178 : vector<16x64xf32>
    %cst_80 = arith.constant 1.000000e+00 : f32
    %180 = vector.broadcast %cst_80 : f32 to vector<16x64xf32>
    %181 = arith.addf %180, %179 : vector<16x64xf32>
    %182 = arith.mulf %171, %181 : vector<16x64xf32>
    %183 = arith.truncf %182 : vector<16x64xf32> to vector<16x64xbf16>
    %c0_81 = arith.constant 0 : index
    %c0_82 = arith.constant 0 : index
    %c0_83 = arith.constant 0 : index
    %184 = vector.load %arg7[%c0_81, %c0_82, %c0_83] : memref<2x64x32xbf16, #tpu.memory_space<vmem>>, vector<1x64x32xbf16>
    %185 = vector.shape_cast %184 : vector<1x64x32xbf16> to vector<64x32xbf16>
    %cst_84 = arith.constant dense<0.000000e+00> : vector<16x32xf32>
    %186 = tpu.matmul %183, %185, %cst_84 {dimension_numbers = #tpu.dot_dimension_numbers<[1], [0], [0], [1], [0, 0, 1, 1], [], []>} : vector<16x64xbf16>, vector<64x32xbf16>, vector<16x32xf32> -> vector<16x32xf32>
    %c12 = arith.constant 12 : index
    %c0_85 = arith.constant 0 : index
    %187 = vector.load %arg3[%c12, %c0_85] : memref<29x128xf32, #tpu.memory_space<vmem>>, vector<1x32xf32>
    %188 = vector.broadcast %187 : vector<1x32xf32> to vector<16x32xf32>
    %189 = arith.addf %186, %188 : vector<16x32xf32>
    %190 = arith.addf %162, %189 : vector<16x32xf32>
    %c13 = arith.constant 13 : index
    %c0_86 = arith.constant 0 : index
    %191 = vector.load %arg3[%c13, %c0_86] : memref<29x128xf32, #tpu.memory_space<vmem>>, vector<1x32xf32>
    %c14 = arith.constant 14 : index
    %c0_87 = arith.constant 0 : index
    %192 = vector.load %arg3[%c14, %c0_87] : memref<29x128xf32, #tpu.memory_space<vmem>>, vector<1x32xf32>
    %cst_88 = arith.constant dense<0.000000e+00> : vector<16xf32>
    %193 = vector.multi_reduction <add>, %190, %cst_88 [1] : vector<16x32xf32> to vector<16xf32>
    %194 = vector.shape_cast %193 : vector<16xf32> to vector<16x1xf32>
    %cst_89 = arith.constant 3.200000e+01 : f32
    %195 = vector.broadcast %cst_89 : f32 to vector<16x1xf32>
    %196 = arith.divf %194, %195 : vector<16x1xf32>
    %197 = vector.broadcast %196 : vector<16x1xf32> to vector<16x32xf32>
    %198 = arith.subf %190, %197 : vector<16x32xf32>
    %199 = arith.mulf %198, %198 : vector<16x32xf32>
    %cst_90 = arith.constant dense<0.000000e+00> : vector<16xf32>
    %200 = vector.multi_reduction <add>, %199, %cst_90 [1] : vector<16x32xf32> to vector<16xf32>
    %201 = vector.shape_cast %200 : vector<16xf32> to vector<16x1xf32>
    %cst_91 = arith.constant 3.200000e+01 : f32
    %202 = vector.broadcast %cst_91 : f32 to vector<16x1xf32>
    %203 = arith.divf %201, %202 : vector<16x1xf32>
    %204 = vector.broadcast %196 : vector<16x1xf32> to vector<16x32xf32>
    %205 = arith.subf %190, %204 : vector<16x32xf32>
    %cst_92 = arith.constant 9.99999996E-13 : f32
    %206 = vector.broadcast %cst_92 : f32 to vector<16x1xf32>
    %207 = arith.addf %203, %206 : vector<16x1xf32>
    %208 = math.rsqrt %207 : vector<16x1xf32>
    %209 = vector.broadcast %208 : vector<16x1xf32> to vector<16x32xf32>
    %210 = arith.mulf %205, %209 : vector<16x32xf32>
    %211 = vector.broadcast %191 : vector<1x32xf32> to vector<16x32xf32>
    %212 = arith.mulf %210, %211 : vector<16x32xf32>
    %213 = vector.broadcast %192 : vector<1x32xf32> to vector<16x32xf32>
    %214 = arith.addf %212, %213 : vector<16x32xf32>
    %215 = arith.truncf %214 : vector<16x32xf32> to vector<16x32xbf16>
    %c6_93 = arith.constant 6 : index
    %c0_94 = arith.constant 0 : index
    %c0_95 = arith.constant 0 : index
    %216 = vector.load %arg4[%c6_93, %c0_94, %c0_95] : memref<12x32x16xbf16, #tpu.memory_space<vmem>>, vector<1x32x16xbf16>
    %217 = vector.shape_cast %216 : vector<1x32x16xbf16> to vector<32x16xbf16>
    %cst_96 = arith.constant dense<0.000000e+00> : vector<16x16xf32>
    %218 = tpu.matmul %215, %217, %cst_96 {dimension_numbers = #tpu.dot_dimension_numbers<[1], [0], [0], [1], [0, 0, 1, 1], [], []>} : vector<16x32xbf16>, vector<32x16xbf16>, vector<16x16xf32> -> vector<16x16xf32>
    %c15 = arith.constant 15 : index
    %c0_97 = arith.constant 0 : index
    %219 = vector.load %arg3[%c15, %c0_97] : memref<29x128xf32, #tpu.memory_space<vmem>>, vector<1x16xf32>
    %220 = vector.broadcast %219 : vector<1x16xf32> to vector<16x16xf32>
    %221 = arith.addf %218, %220 : vector<16x16xf32>
    %c8_98 = arith.constant 8 : index
    %c0_99 = arith.constant 0 : index
    %c0_100 = arith.constant 0 : index
    %222 = vector.load %arg4[%c8_98, %c0_99, %c0_100] : memref<12x32x16xbf16, #tpu.memory_space<vmem>>, vector<1x32x16xbf16>
    %223 = vector.shape_cast %222 : vector<1x32x16xbf16> to vector<32x16xbf16>
    %cst_101 = arith.constant dense<0.000000e+00> : vector<16x16xf32>
    %224 = tpu.matmul %215, %223, %cst_101 {dimension_numbers = #tpu.dot_dimension_numbers<[1], [0], [0], [1], [0, 0, 1, 1], [], []>} : vector<16x32xbf16>, vector<32x16xbf16>, vector<16x16xf32> -> vector<16x16xf32>
    %c17 = arith.constant 17 : index
    %c0_102 = arith.constant 0 : index
    %225 = vector.load %arg3[%c17, %c0_102] : memref<29x128xf32, #tpu.memory_space<vmem>>, vector<1x16xf32>
    %226 = vector.broadcast %225 : vector<1x16xf32> to vector<16x16xf32>
    %227 = arith.addf %224, %226 : vector<16x16xf32>
    %c10_103 = arith.constant 10 : index
    %c0_104 = arith.constant 0 : index
    %c0_105 = arith.constant 0 : index
    %228 = vector.load %arg4[%c10_103, %c0_104, %c0_105] : memref<12x32x16xbf16, #tpu.memory_space<vmem>>, vector<1x32x16xbf16>
    %229 = vector.shape_cast %228 : vector<1x32x16xbf16> to vector<32x16xbf16>
    %cst_106 = arith.constant dense<0.000000e+00> : vector<16x16xf32>
    %230 = tpu.matmul %215, %229, %cst_106 {dimension_numbers = #tpu.dot_dimension_numbers<[1], [0], [0], [1], [0, 0, 1, 1], [], []>} : vector<16x32xbf16>, vector<32x16xbf16>, vector<16x16xf32> -> vector<16x16xf32>
    %c19 = arith.constant 19 : index
    %c0_107 = arith.constant 0 : index
    %231 = vector.load %arg3[%c19, %c0_107] : memref<29x128xf32, #tpu.memory_space<vmem>>, vector<1x16xf32>
    %232 = vector.broadcast %231 : vector<1x16xf32> to vector<16x16xf32>
    %233 = arith.addf %230, %232 : vector<16x16xf32>
    %234 = vector.shape_cast %221 : vector<16x16xf32> to vector<2x8x16xf32>
    %235 = vector.shape_cast %227 : vector<16x16xf32> to vector<2x8x16xf32>
    %236 = vector.shape_cast %233 : vector<16x16xf32> to vector<2x8x16xf32>
    "tpu.trace_start"() <{level = 10 : i32, message = "bqd,bkd->bqk"}> : () -> ()
    %cst_108 = arith.constant dense<0.000000e+00> : vector<2x8x8xf32>
    %237 = tpu.matmul %234, %235, %cst_108 {dimension_numbers = #tpu.dot_dimension_numbers<[2], [2], [1], [1], [0, 0, 0, 1, 1, 1], [0], [0]>} : vector<2x8x16xf32>, vector<2x8x16xf32>, vector<2x8x8xf32> -> vector<2x8x8xf32>
    "tpu.trace_stop"() : () -> ()
    %cst_109 = arith.constant 2.500000e-01 : f32
    %238 = vector.broadcast %cst_109 : f32 to vector<2x8x8xf32>
    %239 = arith.mulf %237, %238 : vector<2x8x8xf32>
    %240 = vector.broadcast %50 : vector<2x1x8xf32> to vector<2x8x8xf32>
    %241 = arith.addf %239, %240 : vector<2x8x8xf32>
    %cst_110 = arith.constant dense<0xFF800000> : vector<2x8xf32>
    %242 = vector.multi_reduction <maximumf>, %241, %cst_110 [2] : vector<2x8x8xf32> to vector<2x8xf32>
    %243 = vector.shape_cast %242 : vector<2x8xf32> to vector<2x8x1xf32>
    %244 = vector.broadcast %243 : vector<2x8x1xf32> to vector<2x8x8xf32>
    %245 = arith.subf %241, %244 : vector<2x8x8xf32>
    %246 = math.exp %245 : vector<2x8x8xf32>
    %cst_111 = arith.constant dense<0.000000e+00> : vector<2x8xf32>
    %247 = vector.multi_reduction <add>, %246, %cst_111 [2] : vector<2x8x8xf32> to vector<2x8xf32>
    %248 = vector.shape_cast %247 : vector<2x8xf32> to vector<2x8x1xf32>
    %249 = vector.broadcast %248 : vector<2x8x1xf32> to vector<2x8x8xf32>
    %250 = arith.divf %246, %249 : vector<2x8x8xf32>
    "tpu.trace_start"() <{level = 10 : i32, message = "bqk,bkd->bqd"}> : () -> ()
    %cst_112 = arith.constant dense<0.000000e+00> : vector<2x8x16xf32>
    %251 = tpu.matmul %250, %236, %cst_112 {dimension_numbers = #tpu.dot_dimension_numbers<[2], [1], [1], [2], [0, 0, 0, 1, 1, 2], [0], [0]>} : vector<2x8x8xf32>, vector<2x8x16xf32>, vector<2x8x16xf32> -> vector<2x8x16xf32>
    "tpu.trace_stop"() : () -> ()
    %252 = vector.shape_cast %251 : vector<2x8x16xf32> to vector<16x16xf32>
    %253 = arith.truncf %252 : vector<16x16xf32> to vector<16x16xbf16>
    %c2_113 = arith.constant 2 : index
    %c0_114 = arith.constant 0 : index
    %c0_115 = arith.constant 0 : index
    %254 = vector.load %arg5[%c2_113, %c0_114, %c0_115] : memref<4x16x32xbf16, #tpu.memory_space<vmem>>, vector<1x16x32xbf16>
    %255 = vector.shape_cast %254 : vector<1x16x32xbf16> to vector<16x32xbf16>
    %cst_116 = arith.constant dense<0.000000e+00> : vector<16x32xf32>
    %256 = tpu.matmul %253, %255, %cst_116 {dimension_numbers = #tpu.dot_dimension_numbers<[1], [0], [0], [1], [0, 0, 1, 1], [], []>} : vector<16x16xbf16>, vector<16x32xbf16>, vector<16x32xf32> -> vector<16x32xf32>
    %c7_117 = arith.constant 7 : index
    %c0_118 = arith.constant 0 : index
    %c0_119 = arith.constant 0 : index
    %257 = vector.load %arg4[%c7_117, %c0_118, %c0_119] : memref<12x32x16xbf16, #tpu.memory_space<vmem>>, vector<1x32x16xbf16>
    %258 = vector.shape_cast %257 : vector<1x32x16xbf16> to vector<32x16xbf16>
    %cst_120 = arith.constant dense<0.000000e+00> : vector<16x16xf32>
    %259 = tpu.matmul %215, %258, %cst_120 {dimension_numbers = #tpu.dot_dimension_numbers<[1], [0], [0], [1], [0, 0, 1, 1], [], []>} : vector<16x32xbf16>, vector<32x16xbf16>, vector<16x16xf32> -> vector<16x16xf32>
    %c16 = arith.constant 16 : index
    %c0_121 = arith.constant 0 : index
    %260 = vector.load %arg3[%c16, %c0_121] : memref<29x128xf32, #tpu.memory_space<vmem>>, vector<1x16xf32>
    %261 = vector.broadcast %260 : vector<1x16xf32> to vector<16x16xf32>
    %262 = arith.addf %259, %261 : vector<16x16xf32>
    %c9_122 = arith.constant 9 : index
    %c0_123 = arith.constant 0 : index
    %c0_124 = arith.constant 0 : index
    %263 = vector.load %arg4[%c9_122, %c0_123, %c0_124] : memref<12x32x16xbf16, #tpu.memory_space<vmem>>, vector<1x32x16xbf16>
    %264 = vector.shape_cast %263 : vector<1x32x16xbf16> to vector<32x16xbf16>
    %cst_125 = arith.constant dense<0.000000e+00> : vector<16x16xf32>
    %265 = tpu.matmul %215, %264, %cst_125 {dimension_numbers = #tpu.dot_dimension_numbers<[1], [0], [0], [1], [0, 0, 1, 1], [], []>} : vector<16x32xbf16>, vector<32x16xbf16>, vector<16x16xf32> -> vector<16x16xf32>
    %c18 = arith.constant 18 : index
    %c0_126 = arith.constant 0 : index
    %266 = vector.load %arg3[%c18, %c0_126] : memref<29x128xf32, #tpu.memory_space<vmem>>, vector<1x16xf32>
    %267 = vector.broadcast %266 : vector<1x16xf32> to vector<16x16xf32>
    %268 = arith.addf %265, %267 : vector<16x16xf32>
    %c11_127 = arith.constant 11 : index
    %c0_128 = arith.constant 0 : index
    %c0_129 = arith.constant 0 : index
    %269 = vector.load %arg4[%c11_127, %c0_128, %c0_129] : memref<12x32x16xbf16, #tpu.memory_space<vmem>>, vector<1x32x16xbf16>
    %270 = vector.shape_cast %269 : vector<1x32x16xbf16> to vector<32x16xbf16>
    %cst_130 = arith.constant dense<0.000000e+00> : vector<16x16xf32>
    %271 = tpu.matmul %215, %270, %cst_130 {dimension_numbers = #tpu.dot_dimension_numbers<[1], [0], [0], [1], [0, 0, 1, 1], [], []>} : vector<16x32xbf16>, vector<32x16xbf16>, vector<16x16xf32> -> vector<16x16xf32>
    %c20 = arith.constant 20 : index
    %c0_131 = arith.constant 0 : index
    %272 = vector.load %arg3[%c20, %c0_131] : memref<29x128xf32, #tpu.memory_space<vmem>>, vector<1x16xf32>
    %273 = vector.broadcast %272 : vector<1x16xf32> to vector<16x16xf32>
    %274 = arith.addf %271, %273 : vector<16x16xf32>
    %275 = vector.shape_cast %262 : vector<16x16xf32> to vector<2x8x16xf32>
    %276 = vector.shape_cast %268 : vector<16x16xf32> to vector<2x8x16xf32>
    %277 = vector.shape_cast %274 : vector<16x16xf32> to vector<2x8x16xf32>
    "tpu.trace_start"() <{level = 10 : i32, message = "bqd,bkd->bqk"}> : () -> ()
    %cst_132 = arith.constant dense<0.000000e+00> : vector<2x8x8xf32>
    %278 = tpu.matmul %275, %276, %cst_132 {dimension_numbers = #tpu.dot_dimension_numbers<[2], [2], [1], [1], [0, 0, 0, 1, 1, 1], [0], [0]>} : vector<2x8x16xf32>, vector<2x8x16xf32>, vector<2x8x8xf32> -> vector<2x8x8xf32>
    "tpu.trace_stop"() : () -> ()
    %cst_133 = arith.constant 2.500000e-01 : f32
    %279 = vector.broadcast %cst_133 : f32 to vector<2x8x8xf32>
    %280 = arith.mulf %278, %279 : vector<2x8x8xf32>
    %281 = vector.broadcast %50 : vector<2x1x8xf32> to vector<2x8x8xf32>
    %282 = arith.addf %280, %281 : vector<2x8x8xf32>
    %cst_134 = arith.constant dense<0xFF800000> : vector<2x8xf32>
    %283 = vector.multi_reduction <maximumf>, %282, %cst_134 [2] : vector<2x8x8xf32> to vector<2x8xf32>
    %284 = vector.shape_cast %283 : vector<2x8xf32> to vector<2x8x1xf32>
    %285 = vector.broadcast %284 : vector<2x8x1xf32> to vector<2x8x8xf32>
    %286 = arith.subf %282, %285 : vector<2x8x8xf32>
    %287 = math.exp %286 : vector<2x8x8xf32>
    %cst_135 = arith.constant dense<0.000000e+00> : vector<2x8xf32>
    %288 = vector.multi_reduction <add>, %287, %cst_135 [2] : vector<2x8x8xf32> to vector<2x8xf32>
    %289 = vector.shape_cast %288 : vector<2x8xf32> to vector<2x8x1xf32>
    %290 = vector.broadcast %289 : vector<2x8x1xf32> to vector<2x8x8xf32>
    %291 = arith.divf %287, %290 : vector<2x8x8xf32>
    "tpu.trace_start"() <{level = 10 : i32, message = "bqk,bkd->bqd"}> : () -> ()
    %cst_136 = arith.constant dense<0.000000e+00> : vector<2x8x16xf32>
    %292 = tpu.matmul %291, %277, %cst_136 {dimension_numbers = #tpu.dot_dimension_numbers<[2], [1], [1], [2], [0, 0, 0, 1, 1, 2], [0], [0]>} : vector<2x8x8xf32>, vector<2x8x16xf32>, vector<2x8x16xf32> -> vector<2x8x16xf32>
    "tpu.trace_stop"() : () -> ()
    %293 = vector.shape_cast %292 : vector<2x8x16xf32> to vector<16x16xf32>
    %294 = arith.truncf %293 : vector<16x16xf32> to vector<16x16xbf16>
    %c3_137 = arith.constant 3 : index
    %c0_138 = arith.constant 0 : index
    %c0_139 = arith.constant 0 : index
    %295 = vector.load %arg5[%c3_137, %c0_138, %c0_139] : memref<4x16x32xbf16, #tpu.memory_space<vmem>>, vector<1x16x32xbf16>
    %296 = vector.shape_cast %295 : vector<1x16x32xbf16> to vector<16x32xbf16>
    %cst_140 = arith.constant dense<0.000000e+00> : vector<16x32xf32>
    %297 = tpu.matmul %294, %296, %cst_140 {dimension_numbers = #tpu.dot_dimension_numbers<[1], [0], [0], [1], [0, 0, 1, 1], [], []>} : vector<16x16xbf16>, vector<16x32xbf16>, vector<16x32xf32> -> vector<16x32xf32>
    %298 = arith.addf %256, %297 : vector<16x32xf32>
    %299 = arith.addf %214, %298 : vector<16x32xf32>
    %c21 = arith.constant 21 : index
    %c0_141 = arith.constant 0 : index
    %300 = vector.load %arg3[%c21, %c0_141] : memref<29x128xf32, #tpu.memory_space<vmem>>, vector<1x32xf32>
    %301 = vector.broadcast %300 : vector<1x32xf32> to vector<16x32xf32>
    %302 = arith.addf %299, %301 : vector<16x32xf32>
    %c22 = arith.constant 22 : index
    %c0_142 = arith.constant 0 : index
    %303 = vector.load %arg3[%c22, %c0_142] : memref<29x128xf32, #tpu.memory_space<vmem>>, vector<1x32xf32>
    %c23 = arith.constant 23 : index
    %c0_143 = arith.constant 0 : index
    %304 = vector.load %arg3[%c23, %c0_143] : memref<29x128xf32, #tpu.memory_space<vmem>>, vector<1x32xf32>
    %cst_144 = arith.constant dense<0.000000e+00> : vector<16xf32>
    %305 = vector.multi_reduction <add>, %302, %cst_144 [1] : vector<16x32xf32> to vector<16xf32>
    %306 = vector.shape_cast %305 : vector<16xf32> to vector<16x1xf32>
    %cst_145 = arith.constant 3.200000e+01 : f32
    %307 = vector.broadcast %cst_145 : f32 to vector<16x1xf32>
    %308 = arith.divf %306, %307 : vector<16x1xf32>
    %309 = vector.broadcast %308 : vector<16x1xf32> to vector<16x32xf32>
    %310 = arith.subf %302, %309 : vector<16x32xf32>
    %311 = arith.mulf %310, %310 : vector<16x32xf32>
    %cst_146 = arith.constant dense<0.000000e+00> : vector<16xf32>
    %312 = vector.multi_reduction <add>, %311, %cst_146 [1] : vector<16x32xf32> to vector<16xf32>
    %313 = vector.shape_cast %312 : vector<16xf32> to vector<16x1xf32>
    %cst_147 = arith.constant 3.200000e+01 : f32
    %314 = vector.broadcast %cst_147 : f32 to vector<16x1xf32>
    %315 = arith.divf %313, %314 : vector<16x1xf32>
    %316 = vector.broadcast %308 : vector<16x1xf32> to vector<16x32xf32>
    %317 = arith.subf %302, %316 : vector<16x32xf32>
    %cst_148 = arith.constant 9.99999996E-13 : f32
    %318 = vector.broadcast %cst_148 : f32 to vector<16x1xf32>
    %319 = arith.addf %315, %318 : vector<16x1xf32>
    %320 = math.rsqrt %319 : vector<16x1xf32>
    %321 = vector.broadcast %320 : vector<16x1xf32> to vector<16x32xf32>
    %322 = arith.mulf %317, %321 : vector<16x32xf32>
    %323 = vector.broadcast %303 : vector<1x32xf32> to vector<16x32xf32>
    %324 = arith.mulf %322, %323 : vector<16x32xf32>
    %325 = vector.broadcast %304 : vector<1x32xf32> to vector<16x32xf32>
    %326 = arith.addf %324, %325 : vector<16x32xf32>
    %327 = arith.truncf %326 : vector<16x32xf32> to vector<16x32xbf16>
    %c1_149 = arith.constant 1 : index
    %c0_150 = arith.constant 0 : index
    %c0_151 = arith.constant 0 : index
    %328 = vector.load %arg6[%c1_149, %c0_150, %c0_151] : memref<2x32x64xbf16, #tpu.memory_space<vmem>>, vector<1x32x64xbf16>
    %329 = vector.shape_cast %328 : vector<1x32x64xbf16> to vector<32x64xbf16>
    %cst_152 = arith.constant dense<0.000000e+00> : vector<16x64xf32>
    %330 = tpu.matmul %327, %329, %cst_152 {dimension_numbers = #tpu.dot_dimension_numbers<[1], [0], [0], [1], [0, 0, 1, 1], [], []>} : vector<16x32xbf16>, vector<32x64xbf16>, vector<16x64xf32> -> vector<16x64xf32>
    %c24 = arith.constant 24 : index
    %c0_153 = arith.constant 0 : index
    %331 = vector.load %arg3[%c24, %c0_153] : memref<29x128xf32, #tpu.memory_space<vmem>>, vector<1x64xf32>
    %332 = vector.broadcast %331 : vector<1x64xf32> to vector<16x64xf32>
    %333 = arith.addf %330, %332 : vector<16x64xf32>
    %cst_154 = arith.constant 5.000000e-01 : f32
    %334 = vector.broadcast %cst_154 : f32 to vector<16x64xf32>
    %335 = arith.mulf %334, %333 : vector<16x64xf32>
    %cst_155 = arith.constant 4.471500e-02 : f32
    %336 = vector.broadcast %cst_155 : f32 to vector<16x64xf32>
    %337 = arith.mulf %336, %333 : vector<16x64xf32>
    %338 = arith.mulf %337, %333 : vector<16x64xf32>
    %339 = arith.mulf %338, %333 : vector<16x64xf32>
    %340 = arith.addf %333, %339 : vector<16x64xf32>
    %cst_156 = arith.constant 0.797884583 : f32
    %341 = vector.broadcast %cst_156 : f32 to vector<16x64xf32>
    %342 = arith.mulf %341, %340 : vector<16x64xf32>
    %343 = math.tanh %342 : vector<16x64xf32>
    %cst_157 = arith.constant 1.000000e+00 : f32
    %344 = vector.broadcast %cst_157 : f32 to vector<16x64xf32>
    %345 = arith.addf %344, %343 : vector<16x64xf32>
    %346 = arith.mulf %335, %345 : vector<16x64xf32>
    %347 = arith.truncf %346 : vector<16x64xf32> to vector<16x64xbf16>
    %c1_158 = arith.constant 1 : index
    %c0_159 = arith.constant 0 : index
    %c0_160 = arith.constant 0 : index
    %348 = vector.load %arg7[%c1_158, %c0_159, %c0_160] : memref<2x64x32xbf16, #tpu.memory_space<vmem>>, vector<1x64x32xbf16>
    %349 = vector.shape_cast %348 : vector<1x64x32xbf16> to vector<64x32xbf16>
    %cst_161 = arith.constant dense<0.000000e+00> : vector<16x32xf32>
    %350 = tpu.matmul %347, %349, %cst_161 {dimension_numbers = #tpu.dot_dimension_numbers<[1], [0], [0], [1], [0, 0, 1, 1], [], []>} : vector<16x64xbf16>, vector<64x32xbf16>, vector<16x32xf32> -> vector<16x32xf32>
    %c25 = arith.constant 25 : index
    %c0_162 = arith.constant 0 : index
    %351 = vector.load %arg3[%c25, %c0_162] : memref<29x128xf32, #tpu.memory_space<vmem>>, vector<1x32xf32>
    %352 = vector.broadcast %351 : vector<1x32xf32> to vector<16x32xf32>
    %353 = arith.addf %350, %352 : vector<16x32xf32>
    %354 = arith.addf %326, %353 : vector<16x32xf32>
    %c26 = arith.constant 26 : index
    %c0_163 = arith.constant 0 : index
    %355 = vector.load %arg3[%c26, %c0_163] : memref<29x128xf32, #tpu.memory_space<vmem>>, vector<1x32xf32>
    %c27 = arith.constant 27 : index
    %c0_164 = arith.constant 0 : index
    %356 = vector.load %arg3[%c27, %c0_164] : memref<29x128xf32, #tpu.memory_space<vmem>>, vector<1x32xf32>
    %cst_165 = arith.constant dense<0.000000e+00> : vector<16xf32>
    %357 = vector.multi_reduction <add>, %354, %cst_165 [1] : vector<16x32xf32> to vector<16xf32>
    %358 = vector.shape_cast %357 : vector<16xf32> to vector<16x1xf32>
    %cst_166 = arith.constant 3.200000e+01 : f32
    %359 = vector.broadcast %cst_166 : f32 to vector<16x1xf32>
    %360 = arith.divf %358, %359 : vector<16x1xf32>
    %361 = vector.broadcast %360 : vector<16x1xf32> to vector<16x32xf32>
    %362 = arith.subf %354, %361 : vector<16x32xf32>
    %363 = arith.mulf %362, %362 : vector<16x32xf32>
    %cst_167 = arith.constant dense<0.000000e+00> : vector<16xf32>
    %364 = vector.multi_reduction <add>, %363, %cst_167 [1] : vector<16x32xf32> to vector<16xf32>
    %365 = vector.shape_cast %364 : vector<16xf32> to vector<16x1xf32>
    %cst_168 = arith.constant 3.200000e+01 : f32
    %366 = vector.broadcast %cst_168 : f32 to vector<16x1xf32>
    %367 = arith.divf %365, %366 : vector<16x1xf32>
    %368 = vector.broadcast %360 : vector<16x1xf32> to vector<16x32xf32>
    %369 = arith.subf %354, %368 : vector<16x32xf32>
    %cst_169 = arith.constant 9.99999996E-13 : f32
    %370 = vector.broadcast %cst_169 : f32 to vector<16x1xf32>
    %371 = arith.addf %367, %370 : vector<16x1xf32>
    %372 = math.rsqrt %371 : vector<16x1xf32>
    %373 = vector.broadcast %372 : vector<16x1xf32> to vector<16x32xf32>
    %374 = arith.mulf %369, %373 : vector<16x32xf32>
    %375 = vector.broadcast %355 : vector<1x32xf32> to vector<16x32xf32>
    %376 = arith.mulf %374, %375 : vector<16x32xf32>
    %377 = vector.broadcast %356 : vector<1x32xf32> to vector<16x32xf32>
    %378 = arith.addf %376, %377 : vector<16x32xf32>
    %379 = tpu.iota {dimensions = array<i32: 1>} : vector<2x16xi32>
    %380 = tpu.iota {dimensions = array<i32: 0>} : vector<2x16xi32>
    %c8_i32 = arith.constant 8 : i32
    %381 = vector.broadcast %c8_i32 : i32 to vector<2x16xi32>
    %382 = arith.muli %380, %381 : vector<2x16xi32>
    %383 = arith.cmpi eq, %379, %382 : vector<2x16xi32>
    %384 = arith.extui %383 : vector<2x16xi1> to vector<2x16xi32>
    %385 = arith.sitofp %384 : vector<2x16xi32> to vector<2x16xf32>
    %cst_170 = arith.constant dense<0.000000e+00> : vector<2x32xf32>
    %386 = tpu.matmul %385, %378, %cst_170 {dimension_numbers = #tpu.dot_dimension_numbers<[1], [0], [0], [1], [0, 0, 1, 1], [], []>} : vector<2x16xf32>, vector<16x32xf32>, vector<2x32xf32> -> vector<2x32xf32>
    %387 = arith.truncf %386 : vector<2x32xf32> to vector<2x32xbf16>
    %c0_171 = arith.constant 0 : index
    %c0_172 = arith.constant 0 : index
    %388 = vector.load %arg8[%c0_171, %c0_172] : memref<32x128xbf16, #tpu.memory_space<vmem>>, vector<32x128xbf16>
    %cst_173 = arith.constant dense<0.000000e+00> : vector<2x128xf32>
    %389 = tpu.matmul %387, %388, %cst_173 {dimension_numbers = #tpu.dot_dimension_numbers<[1], [0], [0], [1], [0, 0, 1, 1], [], []>} : vector<2x32xbf16>, vector<32x128xbf16>, vector<2x128xf32> -> vector<2x128xf32>
    %c28 = arith.constant 28 : index
    %c0_174 = arith.constant 0 : index
    %390 = vector.load %arg3[%c28, %c0_174] : memref<29x128xf32, #tpu.memory_space<vmem>>, vector<1x128xf32>
    %391 = vector.broadcast %390 : vector<1x128xf32> to vector<2x128xf32>
    %392 = arith.addf %389, %391 : vector<2x128xf32>
    %393 = math.tanh %392 : vector<2x128xf32>
    %c0_175 = arith.constant 0 : index
    %c0_176 = arith.constant 0 : index
    %394 = vector.load %arg9[%c0_175, %c0_176] : memref<2x128xf32, #tpu.memory_space<vmem>>, vector<2x128xf32>
    tpu.vector_store %arg9[%c0_175, %c0_176], %393 {strides = array<i32>} : memref<2x128xf32, #tpu.memory_space<vmem>>, vector<2x128xf32>,
    return
  }
}

</mosaic_0001>

<llo_original>
// kernel: question_encoder_forward.1
$region0: #{question_encoder_forward.1}
  #allocation0 [shape = 'u32[]', space=smem, size = 0x4, offset = 0x4, fixed_abs, tag = 'smem constant byte address 0x4 - core index']
  #allocation1 [shape = 'u32[144,128]{1,0:T(1,128)}', space=vmem, size = 0x12000, scoped, tag = 'internal scratch']
  %s0 = inlined_call_operand.vmem [shape: s32[16,1], index: 0, kind: input, shape index: {}]
  %s1 = inlined_call_operand.vmem [shape: f32[2,1,8], index: 1, kind: input, shape index: {}]
  %s2 = inlined_call_operand.vmem [shape: f32[82,32], index: 2, kind: input, shape index: {}]
  %s3 = inlined_call_operand.vmem [shape: f32[29,128], index: 3, kind: input, shape index: {}]
  %s4 = inlined_call_operand.vmem [shape: bf16[12,32,16], index: 4, kind: input, shape index: {}]
  %s5 = inlined_call_operand.vmem [shape: bf16[4,16,32], index: 5, kind: input, shape index: {}]
  %s6 = inlined_call_operand.vmem [shape: bf16[2,32,64], index: 6, kind: input, shape index: {}]
  %s7 = inlined_call_operand.vmem [shape: bf16[2,64,32], index: 7, kind: input, shape index: {}]
  %s8 = inlined_call_operand.vmem [shape: bf16[32,128], index: 8, kind: input, shape index: {}]
  %s9 = inlined_call_operand.hbm [shape: f32[2,128], index: 9, kind: output, shape index: {}]
  %s10 = sld [smem:[#allocation0]]
  $region46: #{question_encoder_forward.1} parent=0
    _
  %s12 = ssub.s32 1, %s10
  %s13 = scalar_select 0, %s12, %s10
  $region1: #{question_encoder_forward.1} parent=0
    #allocation2 [shape = 'u8[1024]{0}', space=vmem, size = 0x400, scoped, tag = 'output window, operand 0, single buffered']
    #allocation3 [shape = 's32[1]{0}', space=sflag, size = 0x4, scoped, tag = 'scoped memory for question_encoder_forward.1']
    %14 = vsyncpa [#allocation3], 0
    // Predicated region
    $region2: #{question_encoder_forward.1} parent=1 // pred_check
      _
    $region3: #{question_encoder_forward.1} parent=1 // pred_check_branch
      %16 = sbr.rel (0) target = $region5
    $region4: #{question_encoder_forward.1} parent=1 // pred_region
      _
    $region5: #{question_encoder_forward.1} parent=1 // pred_fallthru
      _
    // Predicated region
    $region6: #{question_encoder_forward.1} parent=1 // pred_check
      _
    $region7: #{question_encoder_forward.1} parent=1 // pred_check_branch
      %18 = sbr.rel (0) target = $region9
    $region8: #{question_encoder_forward.1} parent=1 // pred_region
      _
    $region9: #{question_encoder_forward.1} parent=1 // pred_fallthru
      _
    // Predicated region
    $region10: #{question_encoder_forward.1} parent=1 // pred_check
      _
    $region11: #{question_encoder_forward.1} parent=1 // pred_check_branch
      %20 = sbr.rel (0) target = $region13
    $region12: #{question_encoder_forward.1} parent=1 // pred_region
      _
    $region13: #{question_encoder_forward.1} parent=1 // pred_fallthru
      _
    // Predicated region
    $region14: #{question_encoder_forward.1} parent=1 // pred_check
      _
    $region15: #{question_encoder_forward.1} parent=1 // pred_check_branch
      %22 = sbr.rel (0) target = $region17
    $region16: #{question_encoder_forward.1} parent=1 // pred_region
      _
    $region17: #{question_encoder_forward.1} parent=1 // pred_fallthru
      _
    // Predicated region
    $region18: #{question_encoder_forward.1} parent=1 // pred_check
      _
    $region19: #{question_encoder_forward.1} parent=1 // pred_check_branch
      %24 = sbr.rel (0) target = $region21
    $region20: #{question_encoder_forward.1} parent=1 // pred_region
      _
    $region21: #{question_encoder_forward.1} parent=1 // pred_fallthru
      _
    // Predicated region
    $region22: #{question_encoder_forward.1} parent=1 // pred_check
      _
    $region23: #{question_encoder_forward.1} parent=1 // pred_check_branch
      %26 = sbr.rel (0) target = $region25
    $region24: #{question_encoder_forward.1} parent=1 // pred_region
      _
    $region25: #{question_encoder_forward.1} parent=1 // pred_fallthru
      _
    // Predicated region
    $region26: #{question_encoder_forward.1} parent=1 // pred_check
      _
    $region27: #{question_encoder_forward.1} parent=1 // pred_check_branch
      %28 = sbr.rel (0) target = $region29
    $region28: #{question_encoder_forward.1} parent=1 // pred_region
      _
    $region29: #{question_encoder_forward.1} parent=1 // pred_fallthru
      _
    // Predicated region
    $region30: #{question_encoder_forward.1} parent=1 // pred_check
      _
    $region31: #{question_encoder_forward.1} parent=1 // pred_check_branch
      %30 = sbr.rel (0) target = $region33
    $region32: #{question_encoder_forward.1} parent=1 // pred_region
      _
    $region33: #{question_encoder_forward.1} parent=1 // pred_fallthru
      _
    // Predicated region
    $region34: #{question_encoder_forward.1} parent=1 // pred_check
      _
    $region35: #{question_encoder_forward.1} parent=1 // pred_check_branch
      %32 = sbr.rel (0) target = $region37
    $region36: #{question_encoder_forward.1} parent=1 // pred_region
      _
    $region37: #{question_encoder_forward.1} parent=1 // pred_fallthru
      _
    %v34 = vlaneseq
    %v35 = vand.u32 %v34, 127
    %v36 = vld [vmem:[%s0] sm:$0xff]
    %v37 = vld [vmem:[%s0 + $0x8] sm:$0xff]
    %v38 = vlaneseq
    %v39 = vshrl.u32 %v38, 7
    %v40 = vadd.s32 %v39, 64
    %41 = vset.pattern.permute.xlu0 0
    %42 = vperm.xlu0 %41, %v36
    %v43 = vpop.permute.xlu0 %42
    %44 = vset.pattern.permute.xlu0 0
    %45 = vperm.xlu0 %44, %v37
    %v46 = vpop.permute.xlu0 %45
    %vm47 = vcmp.eq.s32.totalorder %v35, %v43
    %vm48 = vcmp.eq.s32.totalorder %v35, %v46
    %v49 = vsel %vm47, 1, 0
    %v50 = vsel %vm48, 1, 0
    %v51 = vcvt.s32.f32 %v49
    %v52 = vcvt.s32.f32 %v50
    %vm53 = vcmp.eq.s32.totalorder %v35, %v40
    %v54 = vsel %vm53, 1, 0
    %v55 = vcvt.s32.f32 %v54
    %v56 = vadd.f32 %v51, %v55
    %v57 = vadd.f32 %v52, %v55
    %vm58 = vcmp.eq.s32.totalorder %v35, 80
    %v59 = vsel %vm58, 1, 0
    %v60 = vcvt.s32.f32 %v59
    %v61 = vadd.f32 %v56, %v60
    %v62 = vadd.f32 %v57, %v60
    %v63 = vld [vmem:[%s2] sm:$0xff]
    %v64 = vld [vmem:[%s2 + $0x8] sm:$0xff]
    %v65 = vld [vmem:[%s2 + $0x10] sm:$0xff]
    %v66 = vld [vmem:[%s2 + $0x18] sm:$0xff]
    %v67 = vld [vmem:[%s2 + $0x20] sm:$0xff]
    %v68 = vld [vmem:[%s2 + $0x28] sm:$0xff]
    %v69 = vld [vmem:[%s2 + $0x30] sm:$0xff]
    %v70 = vld [vmem:[%s2 + $0x38] sm:$0xff]
    %v71 = vld [vmem:[%s2 + $0x40] sm:$0xff]
    %v72 = vld [vmem:[%s2 + $0x48] sm:$0xff]
    %v73 = vld [vmem:[%s2 + $0x50] sm:$0x3]
    %vm74 = vcmask 670720
    %v76 = vsel %vm74, %v61, 0
    %v79 = vsel %vm74, %v62, 0
    %vm81 = vcmask 1041408
    %v83 = vsel %vm81, %v73, 0
    %85 = vmatprep.subr.mxu0 0.0
    %86 = vmatpush1.msra.mxu0 %v63
    %87 = vmatprep.subr.mxu0 0.0
    %88 = vmatpush1.msra.mxu0 %v64
    %89 = vmatprep.subr.mxu0 0.0
    %90 = vmatpush1.msra.mxu0 %v65
    %91 = vmatprep.subr.mxu0 0.0
    %92 = vmatpush1.msra.mxu0 %v66
    %93 = vmatprep.subr.mxu0 0.0
    %94 = vmatpush1.msra.mxu0 %v67
    %95 = vmatprep.subr.mxu0 0.0
    %96 = vmatpush1.msra.mxu0 %v68
    %97 = vmatprep.subr.mxu0 0.0
    %98 = vmatpush1.msra.mxu0 %v69
    %99 = vmatprep.subr.mxu0 0.0
    %100 = vmatpush1.msra.mxu0 %v70
    %101 = vmatprep.subr.mxu0 0.0
    %102 = vmatpush1.msra.mxu0 %v71
    %103 = vmatprep.subr.mxu0 0.0
    %104 = vmatpush1.msra.mxu0 %v72
    %105 = vmatprep.subr.mxu0 0.0
    %106 = vmatpush1.msra.mxu0 %v83
    %107 = vmatprep.subr.mxu0 0.0
    %108 = vmatpush1.msra.mxu0 0.0
    %109 = vmatprep.subr.mxu0 0.0
    %110 = vmatpush1.msra.mxu0 0.0
    %111 = vmatprep.subr.mxu0 0.0
    %112 = vmatpush1.msra.mxu0 0.0
    %113 = vmatprep.subr.mxu0 0.0
    %114 = vmatpush1.msra.mxu0 0.0
    %115 = vmatprep.subr.mxu0 0.0
    %116 = vmatpush1.msra.mxu0 0.0
    %117 = vmatprep.subr.mxu0 0.0
    %118 = vmatpush1.msra.mxu0 0.0
    %119 = vmatprep.subr.mxu0 0.0
    %120 = vmatpush1.msra.mxu0 0.0
    %121 = vmatprep.subr.mxu0 0.0
    %122 = vmatpush1.msra.mxu0 0.0
    %123 = vmatprep.subr.mxu0 0.0
    %124 = vmatpush1.msra.mxu0 0.0
    %125 = vmatprep.subr.mxu0 0.0
    %126 = vmatpush1.msra.mxu0 0.0
    %127 = vmatprep.subr.mxu0 0.0
    %128 = vmatpush1.msra.mxu0 0.0
    %129 = vmatprep.subr.mxu0 0.0
    %130 = vmatpush1.msra.mxu0 0.0
    %131 = vmatprep.subr.mxu0 0.0
    %132 = vmatpush1.msra.mxu0 0.0
    %133 = vmatprep.subr.mxu0 0.0
    %134 = vmatpush1.msra.mxu0 0.0
    %135 = vmatprep.subr.mxu0 0.0
    %136 = vmatpush1.msra.mxu0 0.0
    %137 = vmatprep.subr.mxu0 0.0
    %138 = vmatpush1.msra.mxu0 0.0
    %139 = vmatprep.subr.mxu0 0.0
    %140 = vmatpush1.msra.mxu0 0.0
    %141 = vmatprep.subr.mxu0 0.0
    %142 = vmatpush1.msra.mxu0 0.0
    %143 = vmatprep.subr.mxu0 0.0
    %144 = vmatpush1.msra.mxu0 0.0
    %145 = vmatprep.subr.mxu0 0.0
    %146 = vmatpush1.msra.mxu0 0.0
    %147 = vmatprep.subr.mxu0 0.0
    %148 = vmatpush1.msra.mxu0 0.0
    %149 = vmatprep.mubr.f32.mxu0 0.0
    %150 = vmatmul.mubr.f32.gmra.mrb[0].mxu0 %v76
    %v151 = vpop.f32.mrb[0].mxu0
    %v152 = vadd.f32 0.0, %v151
    %v153 = vpop.f32.mrb[0].mxu0
    %154 = vmatprep.mubr.f32.mxu0 0.0
    %155 = vmatmul.mubr.f32.gmra.mrb[0].mxu0 %v79
    %v156 = vpop.f32.mrb[0].mxu0
    %v157 = vadd.f32 0.0, %v156
    %v158 = vpop.f32.mrb[0].mxu0
    %159 = vdwg.mxu0
    %v160 = vld [vmem:[%s3] sm:$0x1]
    %v161 = vld [vmem:[%s3 + $0x1] sm:$0x1]
    %vm162 = vcmask 261120
    %v163 = vsel %vm162, %v152, 0.0
    %164 = vadd.xlane.f32.xlu0 %v163
    %v165 = vpop.xlane.xlu0 %164
    %v166 = vsel %vm162, %v157, 0.0
    %167 = vadd.xlane.f32.xlu0 %v166
    %v168 = vpop.xlane.xlu0 %167
    %v169 = vrcp.pop 32.0
    %v170 = vmul.f32 %v165, %v169
    %v171 = vmul.f32 %v168, %v169
    %v172 = vsub.f32 %v152, %v170
    %v173 = vsub.f32 %v157, %v171
    %v174 = vmul.f32 %v172, %v172
    %v175 = vmul.f32 %v173, %v173
    %v176 = vsel %vm162, %v174, 0.0
    %177 = vadd.xlane.f32.xlu0 %v176
    %v178 = vpop.xlane.xlu0 %177
    %v179 = vsel %vm162, %v175, 0.0
    %180 = vadd.xlane.f32.xlu0 %v179
    %v181 = vpop.xlane.xlu0 %180
    %v182 = vmul.f32 %v178, %v169
    %v183 = vmul.f32 %v181, %v169
    %v184 = vadd.f32 %v182, 1e-12
    %v185 = vadd.f32 %v183, 1e-12
    %v186 = vrsqrt.pop %v184
    %v187 = vrsqrt.pop %v185
    %v188 = vmul.f32 %v172, %v186
    %v189 = vmul.f32 %v173, %v187
    %v190 = vlaneseq
    %v191 = vshrl.u32 %v190, 7
    %v192 = vsub.s32 0, %v191
    %v193 = vrot.slane %v160, %v192
    %v194 = vmul.f32 %v188, %v193
    %v195 = vmul.f32 %v189, %v193
    %v196 = vlaneseq
    %v197 = vshrl.u32 %v196, 7
    %v198 = vsub.s32 0, %v197
    %v199 = vrot.slane %v161, %v198
    %v200 = vadd.f32 %v194, %v199
    %v201 = vadd.f32 %v195, %v199
    %v202 = vld [vmem:[%s1] sm:$0x1]
    %v203 = vld [vmem:[%s1 + $0x1] sm:$0x1]
    %v204 = vsub.f32 1.0, %v202
    %v205 = vsub.f32 1.0, %v203
    %v206 = vmul.f32 %v204, -1e+09
    %v207 = vmul.f32 %v205, -1e+09
    %v208 = vpack.c.bf16 %v201, %v200
    %v209 = vld [vmem:[%s4] sm:$0xf]
    %v210 = vld [vmem:[%s4 + $0x4] sm:$0xf]
    %v211 = vld [vmem:[%s4 + $0x8] sm:$0xf]
    %v212 = vld [vmem:[%s4 + $0xc] sm:$0xf]
    %v213 = vld [vmem:[%s3 + $0x2] sm:$0x1]
    %v214 = vlaneseq
    %v215 = vshrl.u32 %v214, 7
    %v216 = vsub.s32 0, %v215
    %v217 = vrot.slane %v213, %v216
    %v222 = vunpack.c.l.b16 %v209
    %v223 = vunpack.c.l.b16 %v210
    %v224 = vunpack.c.l.b16 %v211
    %v225 = vunpack.c.l.b16 %v212
    %v226 = vpack.c.b16 %v223, %v222
    %v227 = vpack.c.b16 %v225, %v224
    %v231 = vsel %vm162, %v208, 0
    %233 = vmatprep.subr.bf16.mxu0 0
    %234 = vmatpush1.bf16.msra.mxu0 %v226
    %235 = vmatprep.subr.bf16.mxu0 0
    %236 = vmatpush1.bf16.msra.mxu0 %v227
    %237 = vmatprep.subr.bf16.mxu0 0
    %238 = vmatpush1.bf16.msra.mxu0 0
    %239 = vmatprep.subr.bf16.mxu0 0
    %240 = vmatpush1.bf16.msra.mxu0 0
    %241 = vmatprep.subr.bf16.mxu0 0
    %242 = vmatpush1.bf16.msra.mxu0 0
    %243 = vmatprep.subr.bf16.mxu0 0
    %244 = vmatpush1.bf16.msra.mxu0 0
    %245 = vmatprep.subr.bf16.mxu0 0
    %246 = vmatpush1.bf16.msra.mxu0 0
    %247 = vmatprep.subr.bf16.mxu0 0
    %248 = vmatpush1.bf16.msra.mxu0 0
    %249 = vmatprep.subr.bf16.mxu0 0
    %250 = vmatpush1.bf16.msra.mxu0 0
    %251 = vmatprep.subr.bf16.mxu0 0
    %252 = vmatpush1.bf16.msra.mxu0 0
    %253 = vmatprep.subr.bf16.mxu0 0
    %254 = vmatpush1.bf16.msra.mxu0 0
    %255 = vmatprep.subr.bf16.mxu0 0
    %256 = vmatpush1.bf16.msra.mxu0 0
    %257 = vmatprep.subr.bf16.mxu0 0
    %258 = vmatpush1.bf16.msra.mxu0 0
    %259 = vmatprep.subr.bf16.mxu0 0
    %260 = vmatpush1.bf16.msra.mxu0 0
    %261 = vmatprep.subr.bf16.mxu0 0
    %262 = vmatpush1.bf16.msra.mxu0 0
    %263 = vmatprep.subr.bf16.mxu0 0
    %264 = vmatpush1.bf16.msra.mxu0 0
    %265 = vmatprep.mubr.bf16.mxu0 0
    %266 = vmatmul.mubr.bf16.gmra.mrb[0].mxu0 %v231
    %v267 = vpop.f32.mrb[0].mxu0
    %v268 = vadd.f32 %v217, %v267
    %v269 = vpop.f32.mrb[0].mxu0
    %v270 = vpop.f32.mrb[0].mxu0
    %v271 = vadd.f32 %v217, %v270
    %v272 = vpop.f32.mrb[0].mxu0
    %273 = vdwg.mxu0
    %s274 = scalar_lea.vmem %s4, 32
    %v275 = vld [vmem:[%s274] sm:$0xf]
    %v276 = vld [vmem:[%s274 + $0x4] sm:$0xf]
    %v277 = vld [vmem:[%s274 + $0x8] sm:$0xf]
    %v278 = vld [vmem:[%s274 + $0xc] sm:$0xf]
    %v279 = vld [vmem:[%s3 + $0x4] sm:$0x1]
    %v280 = vlaneseq
    %v281 = vshrl.u32 %v280, 7
    %v282 = vsub.s32 0, %v281
    %v283 = vrot.slane %v279, %v282
    %v288 = vunpack.c.l.b16 %v275
    %v289 = vunpack.c.l.b16 %v276
    %v290 = vunpack.c.l.b16 %v277
    %v291 = vunpack.c.l.b16 %v278
    %v292 = vpack.c.b16 %v289, %v288
    %v293 = vpack.c.b16 %v291, %v290
    %296 = vmatprep.subr.bf16.mxu0 0
    %297 = vmatpush1.bf16.msra.mxu0 %v292
    %298 = vmatprep.subr.bf16.mxu0 0
    %299 = vmatpush1.bf16.msra.mxu0 %v293
    %300 = vmatprep.subr.bf16.mxu0 0
    %301 = vmatpush1.bf16.msra.mxu0 0
    %302 = vmatprep.subr.bf16.mxu0 0
    %303 = vmatpush1.bf16.msra.mxu0 0
    %304 = vmatprep.subr.bf16.mxu0 0
    %305 = vmatpush1.bf16.msra.mxu0 0
    %306 = vmatprep.subr.bf16.mxu0 0
    %307 = vmatpush1.bf16.msra.mxu0 0
    %308 = vmatprep.subr.bf16.mxu0 0
    %309 = vmatpush1.bf16.msra.mxu0 0
    %310 = vmatprep.subr.bf16.mxu0 0
    %311 = vmatpush1.bf16.msra.mxu0 0
    %312 = vmatprep.subr.bf16.mxu0 0
    %313 = vmatpush1.bf16.msra.mxu0 0
    %314 = vmatprep.subr.bf16.mxu0 0
    %315 = vmatpush1.bf16.msra.mxu0 0
    %316 = vmatprep.subr.bf16.mxu0 0
    %317 = vmatpush1.bf16.msra.mxu0 0
    %318 = vmatprep.subr.bf16.mxu0 0
    %319 = vmatpush1.bf16.msra.mxu0 0
    %320 = vmatprep.subr.bf16.mxu0 0
    %321 = vmatpush1.bf16.msra.mxu0 0
    %322 = vmatprep.subr.bf16.mxu0 0
    %323 = vmatpush1.bf16.msra.mxu0 0
    %324 = vmatprep.subr.bf16.mxu0 0
    %325 = vmatpush1.bf16.msra.mxu0 0
    %326 = vmatprep.subr.bf16.mxu0 0
    %327 = vmatpush1.bf16.msra.mxu0 0
    %328 = vmatprep.mubr.bf16.mxu0 0
    %329 = vmatmul.mubr.bf16.gmra.mrb[0].mxu0 %v231
    %v330 = vpop.f32.mrb[0].mxu0
    %v331 = vadd.f32 %v283, %v330
    %v332 = vpop.f32.mrb[0].mxu0
    %v333 = vpop.f32.mrb[0].mxu0
    %v334 = vadd.f32 %v283, %v333
    %v335 = vpop.f32.mrb[0].mxu0
    %336 = vdwg.mxu0
    %s337 = scalar_lea.vmem %s4, 64
    %v338 = vld [vmem:[%s337] sm:$0xf]
    %v339 = vld [vmem:[%s337 + $0x4] sm:$0xf]
    %v340 = vld [vmem:[%s337 + $0x8] sm:$0xf]
    %v341 = vld [vmem:[%s337 + $0xc] sm:$0xf]
    %v342 = vld [vmem:[%s3 + $0x6] sm:$0x1]
    %v343 = vlaneseq
    %v344 = vshrl.u32 %v343, 7
    %v345 = vsub.s32 0, %v344
    %v346 = vrot.slane %v342, %v345
    %v351 = vunpack.c.l.b16 %v338
    %v352 = vunpack.c.l.b16 %v339
    %v353 = vunpack.c.l.b16 %v340
    %v354 = vunpack.c.l.b16 %v341
    %v355 = vpack.c.b16 %v352, %v351
    %v356 = vpack.c.b16 %v354, %v353
    %359 = vmatprep.subr.bf16.mxu0 0
    %360 = vmatpush1.bf16.msra.mxu0 %v355
    %361 = vmatprep.subr.bf16.mxu0 0
    %362 = vmatpush1.bf16.msra.mxu0 %v356
    %363 = vmatprep.subr.bf16.mxu0 0
    %364 = vmatpush1.bf16.msra.mxu0 0
    %365 = vmatprep.subr.bf16.mxu0 0
    %366 = vmatpush1.bf16.msra.mxu0 0
    %367 = vmatprep.subr.bf16.mxu0 0
    %368 = vmatpush1.bf16.msra.mxu0 0
    %369 = vmatprep.subr.bf16.mxu0 0
    %370 = vmatpush1.bf16.msra.mxu0 0
    %371 = vmatprep.subr.bf16.mxu0 0
    %372 = vmatpush1.bf16.msra.mxu0 0
    %373 = vmatprep.subr.bf16.mxu0 0
    %374 = vmatpush1.bf16.msra.mxu0 0
    %375 = vmatprep.subr.bf16.mxu0 0
    %376 = vmatpush1.bf16.msra.mxu0 0
    %377 = vmatprep.subr.bf16.mxu0 0
    %378 = vmatpush1.bf16.msra.mxu0 0
    %379 = vmatprep.subr.bf16.mxu0 0
    %380 = vmatpush1.bf16.msra.mxu0 0
    %381 = vmatprep.subr.bf16.mxu0 0
    %382 = vmatpush1.bf16.msra.mxu0 0
    %383 = vmatprep.subr.bf16.mxu0 0
    %384 = vmatpush1.bf16.msra.mxu0 0
    %385 = vmatprep.subr.bf16.mxu0 0
    %386 = vmatpush1.bf16.msra.mxu0 0
    %387 = vmatprep.subr.bf16.mxu0 0
    %388 = vmatpush1.bf16.msra.mxu0 0
    %389 = vmatprep.subr.bf16.mxu0 0
    %390 = vmatpush1.bf16.msra.mxu0 0
    %391 = vmatprep.mubr.bf16.mxu0 0
    %392 = vmatmul.mubr.bf16.gmra.mrb[0].mxu0 %v231
    %v393 = vpop.f32.mrb[0].mxu0
    %v394 = vadd.f32 %v346, %v393
    %v395 = vpop.f32.mrb[0].mxu0
    %v396 = vpop.f32.mrb[0].mxu0
    %v397 = vadd.f32 %v346, %v396
    %v398 = vpop.f32.mrb[0].mxu0
    %399 = vdwg.mxu0
    %vm400 = vcmask 130048
    %v402 = vsel %vm400, %v268, 0
    %v405 = vsel %vm400, %v331, 0
    %407 = vmatprep.subr.mxu0 0.0
    %408 = vmatpush1.xpose.msra.mxu0 %v405
    %409 = vmatprep.subr.mxu0 0.0
    %410 = vmatpush1.xpose.msra.mxu0 0.0
    %411 = vmatprep.subr.mxu0 0.0
    %412 = vmatpush1.xpose.msra.mxu0 0.0
    %413 = vmatprep.subr.mxu0 0.0
    %414 = vmatpush1.xpose.msra.mxu0 0.0
    %415 = vmatprep.subr.mxu0 0.0
    %416 = vmatpush1.xpose.msra.mxu0 0.0
    %417 = vmatprep.subr.mxu0 0.0
    %418 = vmatpush1.xpose.msra.mxu0 0.0
    %419 = vmatprep.subr.mxu0 0.0
    %420 = vmatpush1.xpose.msra.mxu0 0.0
    %421 = vmatprep.subr.mxu0 0.0
    %422 = vmatpush1.xpose.msra.mxu0 0.0
    %423 = vmatprep.subr.mxu0 0.0
    %424 = vmatpush1.xpose.msra.mxu0 0.0
    %425 = vmatprep.subr.mxu0 0.0
    %426 = vmatpush1.xpose.msra.mxu0 0.0
    %427 = vmatprep.subr.mxu0 0.0
    %428 = vmatpush1.xpose.msra.mxu0 0.0
    %429 = vmatprep.subr.mxu0 0.0
    %430 = vmatpush1.xpose.msra.mxu0 0.0
    %431 = vmatprep.subr.mxu0 0.0
    %432 = vmatpush1.xpose.msra.mxu0 0.0
    %433 = vmatprep.subr.mxu0 0.0
    %434 = vmatpush1.xpose.msra.mxu0 0.0
    %435 = vmatprep.subr.mxu0 0.0
    %436 = vmatpush1.xpose.msra.mxu0 0.0
    %437 = vmatprep.subr.mxu0 0.0
    %438 = vmatpush1.xpose.msra.mxu0 0.0
    %439 = vmatprep.subr.mxu0 0.0
    %440 = vmatpush1.xpose.msra.mxu0 0.0
    %441 = vmatprep.subr.mxu0 0.0
    %442 = vmatpush1.xpose.msra.mxu0 0.0
    %443 = vmatprep.subr.mxu0 0.0
    %444 = vmatpush1.xpose.msra.mxu0 0.0
    %445 = vmatprep.subr.mxu0 0.0
    %446 = vmatpush1.xpose.msra.mxu0 0.0
    %447 = vmatprep.subr.mxu0 0.0
    %448 = vmatpush1.xpose.msra.mxu0 0.0
    %449 = vmatprep.subr.mxu0 0.0
    %450 = vmatpush1.xpose.msra.mxu0 0.0
    %451 = vmatprep.subr.mxu0 0.0
    %452 = vmatpush1.xpose.msra.mxu0 0.0
    %453 = vmatprep.subr.mxu0 0.0
    %454 = vmatpush1.xpose.msra.mxu0 0.0
    %455 = vmatprep.subr.mxu0 0.0
    %456 = vmatpush1.xpose.msra.mxu0 0.0
    %457 = vmatprep.subr.mxu0 0.0
    %458 = vmatpush1.xpose.msra.mxu0 0.0
    %459 = vmatprep.subr.mxu0 0.0
    %460 = vmatpush1.xpose.msra.mxu0 0.0
    %461 = vmatprep.subr.mxu0 0.0
    %462 = vmatpush1.xpose.msra.mxu0 0.0
    %463 = vmatprep.subr.mxu0 0.0
    %464 = vmatpush1.xpose.msra.mxu0 0.0
    %465 = vmatprep.subr.mxu0 0.0
    %466 = vmatpush1.xpose.msra.mxu0 0.0
    %467 = vmatprep.subr.mxu0 0.0
    %468 = vmatpush1.xpose.msra.mxu0 0.0
    %469 = vmatprep.subr.mxu0 0.0
    %470 = vmatpush1.xpose.msra.mxu0 0.0
    %471 = vmatprep.mubr.f32.mxu0 0.0
    %472 = vmatmul.mubr.f32.gmra.mrb[0].mxu0 %v402
    %v473 = vpop.f32.mrb[0].mxu0
    %v474 = vadd.f32 0.0, %v473
    %v475 = vpop.f32.mrb[0].mxu0
    %476 = vdwg.mxu0
    %v478 = vsel %vm400, %v271, 0
    %v481 = vsel %vm400, %v334, 0
    %483 = vmatprep.subr.mxu0 0.0
    %484 = vmatpush1.xpose.msra.mxu0 %v481
    %485 = vmatprep.subr.mxu0 0.0
    %486 = vmatpush1.xpose.msra.mxu0 0.0
    %487 = vmatprep.subr.mxu0 0.0
    %488 = vmatpush1.xpose.msra.mxu0 0.0
    %489 = vmatprep.subr.mxu0 0.0
    %490 = vmatpush1.xpose.msra.mxu0 0.0
    %491 = vmatprep.subr.mxu0 0.0
    %492 = vmatpush1.xpose.msra.mxu0 0.0
    %493 = vmatprep.subr.mxu0 0.0
    %494 = vmatpush1.xpose.msra.mxu0 0.0
    %495 = vmatprep.subr.mxu0 0.0
    %496 = vmatpush1.xpose.msra.mxu0 0.0
    %497 = vmatprep.subr.mxu0 0.0
    %498 = vmatpush1.xpose.msra.mxu0 0.0
    %499 = vmatprep.subr.mxu0 0.0
    %500 = vmatpush1.xpose.msra.mxu0 0.0
    %501 = vmatprep.subr.mxu0 0.0
    %502 = vmatpush1.xpose.msra.mxu0 0.0
    %503 = vmatprep.subr.mxu0 0.0
    %504 = vmatpush1.xpose.msra.mxu0 0.0
    %505 = vmatprep.subr.mxu0 0.0
    %506 = vmatpush1.xpose.msra.mxu0 0.0
    %507 = vmatprep.subr.mxu0 0.0
    %508 = vmatpush1.xpose.msra.mxu0 0.0
    %509 = vmatprep.subr.mxu0 0.0
    %510 = vmatpush1.xpose.msra.mxu0 0.0
    %511 = vmatprep.subr.mxu0 0.0
    %512 = vmatpush1.xpose.msra.mxu0 0.0
    %513 = vmatprep.subr.mxu0 0.0
    %514 = vmatpush1.xpose.msra.mxu0 0.0
    %515 = vmatprep.subr.mxu0 0.0
    %516 = vmatpush1.xpose.msra.mxu0 0.0
    %517 = vmatprep.subr.mxu0 0.0
    %518 = vmatpush1.xpose.msra.mxu0 0.0
    %519 = vmatprep.subr.mxu0 0.0
    %520 = vmatpush1.xpose.msra.mxu0 0.0
    %521 = vmatprep.subr.mxu0 0.0
    %522 = vmatpush1.xpose.msra.mxu0 0.0
    %523 = vmatprep.subr.mxu0 0.0
    %524 = vmatpush1.xpose.msra.mxu0 0.0
    %525 = vmatprep.subr.mxu0 0.0
    %526 = vmatpush1.xpose.msra.mxu0 0.0
    %527 = vmatprep.subr.mxu0 0.0
    %528 = vmatpush1.xpose.msra.mxu0 0.0
    %529 = vmatprep.subr.mxu0 0.0
    %530 = vmatpush1.xpose.msra.mxu0 0.0
    %531 = vmatprep.subr.mxu0 0.0
    %532 = vmatpush1.xpose.msra.mxu0 0.0
    %533 = vmatprep.subr.mxu0 0.0
    %534 = vmatpush1.xpose.msra.mxu0 0.0
    %535 = vmatprep.subr.mxu0 0.0
    %536 = vmatpush1.xpose.msra.mxu0 0.0
    %537 = vmatprep.subr.mxu0 0.0
    %538 = vmatpush1.xpose.msra.mxu0 0.0
    %539 = vmatprep.subr.mxu0 0.0
    %540 = vmatpush1.xpose.msra.mxu0 0.0
    %541 = vmatprep.subr.mxu0 0.0
    %542 = vmatpush1.xpose.msra.mxu0 0.0
    %543 = vmatprep.subr.mxu0 0.0
    %544 = vmatpush1.xpose.msra.mxu0 0.0
    %545 = vmatprep.subr.mxu0 0.0
    %546 = vmatpush1.xpose.msra.mxu0 0.0
    %547 = vmatprep.mubr.f32.mxu0 0.0
    %548 = vmatmul.mubr.f32.gmra.mrb[0].mxu0 %v478
    %v549 = vpop.f32.mrb[0].mxu0
    %v550 = vadd.f32 0.0, %v549
    %v551 = vpop.f32.mrb[0].mxu0
    %552 = vdwg.mxu0
    %v553 = vmul.f32 %v474, 0.25
    %v554 = vmul.f32 %v550, 0.25
    %v557 = vlaneseq
    %v558 = vshrl.u32 %v557, 7
    %v559 = vsub.s32 0, %v558
    %v560 = vrot.slane %v206, %v559
    %v561 = vlaneseq
    %v562 = vshrl.u32 %v561, 7
    %v563 = vsub.s32 0, %v562
    %v564 = vrot.slane %v207, %v563
    %v567 = vadd.f32 %v553, %v560
    %v568 = vadd.f32 %v554, %v564
    %vm569 = vcmask 64512
    %v570 = vsel %vm569, %v567, -inf
    %571 = vmax.xlane.f32.xlu0 %v570
    %v572 = vpop.xlane.xlu0 %571
    %v573 = vsel %vm569, %v568, -inf
    %574 = vmax.xlane.f32.xlu0 %v573
    %v575 = vpop.xlane.xlu0 %574
    %v576 = vsub.f32 %v567, %v572
    %v577 = vsub.f32 %v568, %v575
    %v578 = vmul.f32 %v576, 1.442695
    %v579 = vpow.pop %v578
    %v580 = vmul.f32 %v577, 1.442695
    %v581 = vpow.pop %v580
    %v582 = vsel %vm569, %v579, 0.0
    %583 = vadd.xlane.f32.xlu0 %v582
    %v584 = vpop.xlane.xlu0 %583
    %v585 = vsel %vm569, %v581, 0.0
    %586 = vadd.xlane.f32.xlu0 %v585
    %v587 = vpop.xlane.xlu0 %586
    %v588 = vrcp.pop %v584
    %v589 = vmul.f32 %v579, %v588
    %v590 = vrcp.pop %v587
    %v591 = vmul.f32 %v581, %v590
    %v593 = vsel %vm569, %v589, 0
    %595 = vmatprep.subr.mxu0 0.0
    %596 = vmatpush1.msra.mxu0 %v394
    %597 = vmatprep.subr.mxu0 0.0
    %598 = vmatpush1.msra.mxu0 0.0
    %599 = vmatprep.subr.mxu0 0.0
    %600 = vmatpush1.msra.mxu0 0.0
    %601 = vmatprep.subr.mxu0 0.0
    %602 = vmatpush1.msra.mxu0 0.0
    %603 = vmatprep.subr.mxu0 0.0
    %604 = vmatpush1.msra.mxu0 0.0
    %605 = vmatprep.subr.mxu0 0.0
    %606 = vmatpush1.msra.mxu0 0.0
    %607 = vmatprep.subr.mxu0 0.0
    %608 = vmatpush1.msra.mxu0 0.0
    %609 = vmatprep.subr.mxu0 0.0
    %610 = vmatpush1.msra.mxu0 0.0
    %611 = vmatprep.subr.mxu0 0.0
    %612 = vmatpush1.msra.mxu0 0.0
    %613 = vmatprep.subr.mxu0 0.0
    %614 = vmatpush1.msra.mxu0 0.0
    %615 = vmatprep.subr.mxu0 0.0
    %616 = vmatpush1.msra.mxu0 0.0
    %617 = vmatprep.subr.mxu0 0.0
    %618 = vmatpush1.msra.mxu0 0.0
    %619 = vmatprep.subr.mxu0 0.0
    %620 = vmatpush1.msra.mxu0 0.0
    %621 = vmatprep.subr.mxu0 0.0
    %622 = vmatpush1.msra.mxu0 0.0
    %623 = vmatprep.subr.mxu0 0.0
    %624 = vmatpush1.msra.mxu0 0.0
    %625 = vmatprep.subr.mxu0 0.0
    %626 = vmatpush1.msra.mxu0 0.0
    %627 = vmatprep.subr.mxu0 0.0
    %628 = vmatpush1.msra.mxu0 0.0
    %629 = vmatprep.subr.mxu0 0.0
    %630 = vmatpush1.msra.mxu0 0.0
    %631 = vmatprep.subr.mxu0 0.0
    %632 = vmatpush1.msra.mxu0 0.0
    %633 = vmatprep.subr.mxu0 0.0
    %634 = vmatpush1.msra.mxu0 0.0
    %635 = vmatprep.subr.mxu0 0.0
    %636 = vmatpush1.msra.mxu0 0.0
    %637 = vmatprep.subr.mxu0 0.0
    %638 = vmatpush1.msra.mxu0 0.0
    %639 = vmatprep.subr.mxu0 0.0
    %640 = vmatpush1.msra.mxu0 0.0
    %641 = vmatprep.subr.mxu0 0.0
    %642 = vmatpush1.msra.mxu0 0.0
    %643 = vmatprep.subr.mxu0 0.0
    %644 = vmatpush1.msra.mxu0 0.0
    %645 = vmatprep.subr.mxu0 0.0
    %646 = vmatpush1.msra.mxu0 0.0
    %647 = vmatprep.subr.mxu0 0.0
    %648 = vmatpush1.msra.mxu0 0.0
    %649 = vmatprep.subr.mxu0 0.0
    %650 = vmatpush1.msra.mxu0 0.0
    %651 = vmatprep.subr.mxu0 0.0
    %652 = vmatpush1.msra.mxu0 0.0
    %653 = vmatprep.subr.mxu0 0.0
    %654 = vmatpush1.msra.mxu0 0.0
    %655 = vmatprep.subr.mxu0 0.0
    %656 = vmatpush1.msra.mxu0 0.0
    %657 = vmatprep.subr.mxu0 0.0
    %658 = vmatpush1.msra.mxu0 0.0
    %659 = vmatprep.mubr.f32.mxu0 0.0
    %660 = vmatmul.mubr.f32.gmra.mrb[0].mxu0 %v593
    %v661 = vpop.f32.mrb[0].mxu0
    %v662 = vadd.f32 0.0, %v661
    %v663 = vpop.f32.mrb[0].mxu0
    %664 = vdwg.mxu0
    %v666 = vsel %vm569, %v591, 0
    %668 = vmatprep.subr.mxu0 0.0
    %669 = vmatpush1.msra.mxu0 %v397
    %670 = vmatprep.subr.mxu0 0.0
    %671 = vmatpush1.msra.mxu0 0.0
    %672 = vmatprep.subr.mxu0 0.0
    %673 = vmatpush1.msra.mxu0 0.0
    %674 = vmatprep.subr.mxu0 0.0
    %675 = vmatpush1.msra.mxu0 0.0
    %676 = vmatprep.subr.mxu0 0.0
    %677 = vmatpush1.msra.mxu0 0.0
    %678 = vmatprep.subr.mxu0 0.0
    %679 = vmatpush1.msra.mxu0 0.0
    %680 = vmatprep.subr.mxu0 0.0
    %681 = vmatpush1.msra.mxu0 0.0
    %682 = vmatprep.subr.mxu0 0.0
    %683 = vmatpush1.msra.mxu0 0.0
    %684 = vmatprep.subr.mxu0 0.0
    %685 = vmatpush1.msra.mxu0 0.0
    %686 = vmatprep.subr.mxu0 0.0
    %687 = vmatpush1.msra.mxu0 0.0
    %688 = vmatprep.subr.mxu0 0.0
    %689 = vmatpush1.msra.mxu0 0.0
    %690 = vmatprep.subr.mxu0 0.0
    %691 = vmatpush1.msra.mxu0 0.0
    %692 = vmatprep.subr.mxu0 0.0
    %693 = vmatpush1.msra.mxu0 0.0
    %694 = vmatprep.subr.mxu0 0.0
    %695 = vmatpush1.msra.mxu0 0.0
    %696 = vmatprep.subr.mxu0 0.0
    %697 = vmatpush1.msra.mxu0 0.0
    %698 = vmatprep.subr.mxu0 0.0
    %699 = vmatpush1.msra.mxu0 0.0
    %700 = vmatprep.subr.mxu0 0.0
    %701 = vmatpush1.msra.mxu0 0.0
    %702 = vmatprep.subr.mxu0 0.0
    %703 = vmatpush1.msra.mxu0 0.0
    %704 = vmatprep.subr.mxu0 0.0
    %705 = vmatpush1.msra.mxu0 0.0
    %706 = vmatprep.subr.mxu0 0.0
    %707 = vmatpush1.msra.mxu0 0.0
    %708 = vmatprep.subr.mxu0 0.0
    %709 = vmatpush1.msra.mxu0 0.0
    %710 = vmatprep.subr.mxu0 0.0
    %711 = vmatpush1.msra.mxu0 0.0
    %712 = vmatprep.subr.mxu0 0.0
    %713 = vmatpush1.msra.mxu0 0.0
    %714 = vmatprep.subr.mxu0 0.0
    %715 = vmatpush1.msra.mxu0 0.0
    %716 = vmatprep.subr.mxu0 0.0
    %717 = vmatpush1.msra.mxu0 0.0
    %718 = vmatprep.subr.mxu0 0.0
    %719 = vmatpush1.msra.mxu0 0.0
    %720 = vmatprep.subr.mxu0 0.0
    %721 = vmatpush1.msra.mxu0 0.0
    %722 = vmatprep.subr.mxu0 0.0
    %723 = vmatpush1.msra.mxu0 0.0
    %724 = vmatprep.subr.mxu0 0.0
    %725 = vmatpush1.msra.mxu0 0.0
    %726 = vmatprep.subr.mxu0 0.0
    %727 = vmatpush1.msra.mxu0 0.0
    %728 = vmatprep.subr.mxu0 0.0
    %729 = vmatpush1.msra.mxu0 0.0
    %730 = vmatprep.subr.mxu0 0.0
    %731 = vmatpush1.msra.mxu0 0.0
    %732 = vmatprep.mubr.f32.mxu0 0.0
    %733 = vmatmul.mubr.f32.gmra.mrb[0].mxu0 %v666
    %v734 = vpop.f32.mrb[0].mxu0
    %v735 = vadd.f32 0.0, %v734
    %v736 = vpop.f32.mrb[0].mxu0
    %737 = vdwg.mxu0
    %v738 = vpack.c.bf16 %v735, %v662
    %v739 = vld [vmem:[%s5] sm:$0xf]
    %v740 = vld [vmem:[%s5 + $0x4] sm:$0xf]
    %s741 = scalar_lea.vmem %s4, 16
    %v742 = vld [vmem:[%s741] sm:$0xf]
    %v743 = vld [vmem:[%s741 + $0x4] sm:$0xf]
    %v744 = vld [vmem:[%s741 + $0x8] sm:$0xf]
    %v745 = vld [vmem:[%s741 + $0xc] sm:$0xf]
    %v746 = vld [vmem:[%s3 + $0x3] sm:$0x1]
    %v747 = vlaneseq
    %v748 = vshrl.u32 %v747, 7
    %v749 = vsub.s32 0, %v748
    %v750 = vrot.slane %v746, %v749
    %v755 = vunpack.c.l.b16 %v742
    %v756 = vunpack.c.l.b16 %v743
    %v757 = vunpack.c.l.b16 %v744
    %v758 = vunpack.c.l.b16 %v745
    %v759 = vpack.c.b16 %v756, %v755
    %v760 = vpack.c.b16 %v758, %v757
    %763 = vmatprep.subr.bf16.mxu0 0
    %764 = vmatpush1.bf16.msra.mxu0 %v759
    %765 = vmatprep.subr.bf16.mxu0 0
    %766 = vmatpush1.bf16.msra.mxu0 %v760
    %767 = vmatprep.subr.bf16.mxu0 0
    %768 = vmatpush1.bf16.msra.mxu0 0
    %769 = vmatprep.subr.bf16.mxu0 0
    %770 = vmatpush1.bf16.msra.mxu0 0
    %771 = vmatprep.subr.bf16.mxu0 0
    %772 = vmatpush1.bf16.msra.mxu0 0
    %773 = vmatprep.subr.bf16.mxu0 0
    %774 = vmatpush1.bf16.msra.mxu0 0
    %775 = vmatprep.subr.bf16.mxu0 0
    %776 = vmatpush1.bf16.msra.mxu0 0
    %777 = vmatprep.subr.bf16.mxu0 0
    %778 = vmatpush1.bf16.msra.mxu0 0
    %779 = vmatprep.subr.bf16.mxu0 0
    %780 = vmatpush1.bf16.msra.mxu0 0
    %781 = vmatprep.subr.bf16.mxu0 0
    %782 = vmatpush1.bf16.msra.mxu0 0
    %783 = vmatprep.subr.bf16.mxu0 0
    %784 = vmatpush1.bf16.msra.mxu0 0
    %785 = vmatprep.subr.bf16.mxu0 0
    %786 = vmatpush1.bf16.msra.mxu0 0
    %787 = vmatprep.subr.bf16.mxu0 0
    %788 = vmatpush1.bf16.msra.mxu0 0
    %789 = vmatprep.subr.bf16.mxu0 0
    %790 = vmatpush1.bf16.msra.mxu0 0
    %791 = vmatprep.subr.bf16.mxu0 0
    %792 = vmatpush1.bf16.msra.mxu0 0
    %793 = vmatprep.subr.bf16.mxu0 0
    %794 = vmatpush1.bf16.msra.mxu0 0
    %795 = vmatprep.mubr.bf16.mxu0 0
    %796 = vmatmul.mubr.bf16.gmra.mrb[0].mxu0 %v231
    %v797 = vpop.f32.mrb[0].mxu0
    %v798 = vadd.f32 %v750, %v797
    %v799 = vpop.f32.mrb[0].mxu0
    %v800 = vpop.f32.mrb[0].mxu0
    %v801 = vadd.f32 %v750, %v800
    %v802 = vpop.f32.mrb[0].mxu0
    %803 = vdwg.mxu0
    %s804 = scalar_lea.vmem %s4, 48
    %v805 = vld [vmem:[%s804] sm:$0xf]
    %v806 = vld [vmem:[%s804 + $0x4] sm:$0xf]
    %v807 = vld [vmem:[%s804 + $0x8] sm:$0xf]
    %v808 = vld [vmem:[%s804 + $0xc] sm:$0xf]
    %v809 = vld [vmem:[%s3 + $0x5] sm:$0x1]
    %v810 = vlaneseq
    %v811 = vshrl.u32 %v810, 7
    %v812 = vsub.s32 0, %v811
    %v813 = vrot.slane %v809, %v812
    %v818 = vunpack.c.l.b16 %v805
    %v819 = vunpack.c.l.b16 %v806
    %v820 = vunpack.c.l.b16 %v807
    %v821 = vunpack.c.l.b16 %v808
    %v822 = vpack.c.b16 %v819, %v818
    %v823 = vpack.c.b16 %v821, %v820
    %826 = vmatprep.subr.bf16.mxu0 0
    %827 = vmatpush1.bf16.msra.mxu0 %v822
    %828 = vmatprep.subr.bf16.mxu0 0
    %829 = vmatpush1.bf16.msra.mxu0 %v823
    %830 = vmatprep.subr.bf16.mxu0 0
    %831 = vmatpush1.bf16.msra.mxu0 0
    %832 = vmatprep.subr.bf16.mxu0 0
    %833 = vmatpush1.bf16.msra.mxu0 0
    %834 = vmatprep.subr.bf16.mxu0 0
    %835 = vmatpush1.bf16.msra.mxu0 0
    %836 = vmatprep.subr.bf16.mxu0 0
    %837 = vmatpush1.bf16.msra.mxu0 0
    %838 = vmatprep.subr.bf16.mxu0 0
    %839 = vmatpush1.bf16.msra.mxu0 0
    %840 = vmatprep.subr.bf16.mxu0 0
    %841 = vmatpush1.bf16.msra.mxu0 0
    %842 = vmatprep.subr.bf16.mxu0 0
    %843 = vmatpush1.bf16.msra.mxu0 0
    %844 = vmatprep.subr.bf16.mxu0 0
    %845 = vmatpush1.bf16.msra.mxu0 0
    %846 = vmatprep.subr.bf16.mxu0 0
    %847 = vmatpush1.bf16.msra.mxu0 0
    %848 = vmatprep.subr.bf16.mxu0 0
    %849 = vmatpush1.bf16.msra.mxu0 0
    %850 = vmatprep.subr.bf16.mxu0 0
    %851 = vmatpush1.bf16.msra.mxu0 0
    %852 = vmatprep.subr.bf16.mxu0 0
    %853 = vmatpush1.bf16.msra.mxu0 0
    %854 = vmatprep.subr.bf16.mxu0 0
    %855 = vmatpush1.bf16.msra.mxu0 0
    %856 = vmatprep.subr.bf16.mxu0 0
    %857 = vmatpush1.bf16.msra.mxu0 0
    %858 = vmatprep.mubr.bf16.mxu0 0
    %859 = vmatmul.mubr.bf16.gmra.mrb[0].mxu0 %v231
    %v860 = vpop.f32.mrb[0].mxu0
    %v861 = vadd.f32 %v813, %v860
    %v862 = vpop.f32.mrb[0].mxu0
    %v863 = vpop.f32.mrb[0].mxu0
    %v864 = vadd.f32 %v813, %v863
    %v865 = vpop.f32.mrb[0].mxu0
    %866 = vdwg.mxu0
    %s867 = scalar_lea.vmem %s4, 80
    %v868 = vld [vmem:[%s867] sm:$0xf]
    %v869 = vld [vmem:[%s867 + $0x4] sm:$0xf]
    %v870 = vld [vmem:[%s867 + $0x8] sm:$0xf]
    %v871 = vld [vmem:[%s867 + $0xc] sm:$0xf]
    %v872 = vld [vmem:[%s3 + $0x7] sm:$0x1]
    %v873 = vlaneseq
    %v874 = vshrl.u32 %v873, 7
    %v875 = vsub.s32 0, %v874
    %v876 = vrot.slane %v872, %v875
    %v881 = vunpack.c.l.b16 %v868
    %v882 = vunpack.c.l.b16 %v869
    %v883 = vunpack.c.l.b16 %v870
    %v884 = vunpack.c.l.b16 %v871
    %v885 = vpack.c.b16 %v882, %v881
    %v886 = vpack.c.b16 %v884, %v883
    %889 = vmatprep.subr.bf16.mxu0 0
    %890 = vmatpush1.bf16.msra.mxu0 %v885
    %891 = vmatprep.subr.bf16.mxu0 0
    %892 = vmatpush1.bf16.msra.mxu0 %v886
    %893 = vmatprep.subr.bf16.mxu0 0
    %894 = vmatpush1.bf16.msra.mxu0 0
    %895 = vmatprep.subr.bf16.mxu0 0
    %896 = vmatpush1.bf16.msra.mxu0 0
    %897 = vmatprep.subr.bf16.mxu0 0
    %898 = vmatpush1.bf16.msra.mxu0 0
    %899 = vmatprep.subr.bf16.mxu0 0
    %900 = vmatpush1.bf16.msra.mxu0 0
    %901 = vmatprep.subr.bf16.mxu0 0
    %902 = vmatpush1.bf16.msra.mxu0 0
    %903 = vmatprep.subr.bf16.mxu0 0
    %904 = vmatpush1.bf16.msra.mxu0 0
    %905 = vmatprep.subr.bf16.mxu0 0
    %906 = vmatpush1.bf16.msra.mxu0 0
    %907 = vmatprep.subr.bf16.mxu0 0
    %908 = vmatpush1.bf16.msra.mxu0 0
    %909 = vmatprep.subr.bf16.mxu0 0
    %910 = vmatpush1.bf16.msra.mxu0 0
    %911 = vmatprep.subr.bf16.mxu0 0
    %912 = vmatpush1.bf16.msra.mxu0 0
    %913 = vmatprep.subr.bf16.mxu0 0
    %914 = vmatpush1.bf16.msra.mxu0 0
    %915 = vmatprep.subr.bf16.mxu0 0
    %916 = vmatpush1.bf16.msra.mxu0 0
    %917 = vmatprep.subr.bf16.mxu0 0
    %918 = vmatpush1.bf16.msra.mxu0 0
    %919 = vmatprep.subr.bf16.mxu0 0
    %920 = vmatpush1.bf16.msra.mxu0 0
    %921 = vmatprep.mubr.bf16.mxu0 0
    %922 = vmatmul.mubr.bf16.gmra.mrb[0].mxu0 %v231
    %v923 = vpop.f32.mrb[0].mxu0
    %v924 = vadd.f32 %v876, %v923
    %v925 = vpop.f32.mrb[0].mxu0
    %v926 = vpop.f32.mrb[0].mxu0
    %v927 = vadd.f32 %v876, %v926
    %v928 = vpop.f32.mrb[0].mxu0
    %929 = vdwg.mxu0
    %v931 = vsel %vm400, %v798, 0
    %v934 = vsel %vm400, %v861, 0
    %936 = vmatprep.subr.mxu0 0.0
    %937 = vmatpush1.xpose.msra.mxu0 %v934
    %938 = vmatprep.subr.mxu0 0.0
    %939 = vmatpush1.xpose.msra.mxu0 0.0
    %940 = vmatprep.subr.mxu0 0.0
    %941 = vmatpush1.xpose.msra.mxu0 0.0
    %942 = vmatprep.subr.mxu0 0.0
    %943 = vmatpush1.xpose.msra.mxu0 0.0
    %944 = vmatprep.subr.mxu0 0.0
    %945 = vmatpush1.xpose.msra.mxu0 0.0
    %946 = vmatprep.subr.mxu0 0.0
    %947 = vmatpush1.xpose.msra.mxu0 0.0
    %948 = vmatprep.subr.mxu0 0.0
    %949 = vmatpush1.xpose.msra.mxu0 0.0
    %950 = vmatprep.subr.mxu0 0.0
    %951 = vmatpush1.xpose.msra.mxu0 0.0
    %952 = vmatprep.subr.mxu0 0.0
    %953 = vmatpush1.xpose.msra.mxu0 0.0
    %954 = vmatprep.subr.mxu0 0.0
    %955 = vmatpush1.xpose.msra.mxu0 0.0
    %956 = vmatprep.subr.mxu0 0.0
    %957 = vmatpush1.xpose.msra.mxu0 0.0
    %958 = vmatprep.subr.mxu0 0.0
    %959 = vmatpush1.xpose.msra.mxu0 0.0
    %960 = vmatprep.subr.mxu0 0.0
    %961 = vmatpush1.xpose.msra.mxu0 0.0
    %962 = vmatprep.subr.mxu0 0.0
    %963 = vmatpush1.xpose.msra.mxu0 0.0
    %964 = vmatprep.subr.mxu0 0.0
    %965 = vmatpush1.xpose.msra.mxu0 0.0
    %966 = vmatprep.subr.mxu0 0.0
    %967 = vmatpush1.xpose.msra.mxu0 0.0
    %968 = vmatprep.subr.mxu0 0.0
    %969 = vmatpush1.xpose.msra.mxu0 0.0
    %970 = vmatprep.subr.mxu0 0.0
    %971 = vmatpush1.xpose.msra.mxu0 0.0
    %972 = vmatprep.subr.mxu0 0.0
    %973 = vmatpush1.xpose.msra.mxu0 0.0
    %974 = vmatprep.subr.mxu0 0.0
    %975 = vmatpush1.xpose.msra.mxu0 0.0
    %976 = vmatprep.subr.mxu0 0.0
    %977 = vmatpush1.xpose.msra.mxu0 0.0
    %978 = vmatprep.subr.mxu0 0.0
    %979 = vmatpush1.xpose.msra.mxu0 0.0
    %980 = vmatprep.subr.mxu0 0.0
    %981 = vmatpush1.xpose.msra.mxu0 0.0
    %982 = vmatprep.subr.mxu0 0.0
    %983 = vmatpush1.xpose.msra.mxu0 0.0
    %984 = vmatprep.subr.mxu0 0.0
    %985 = vmatpush1.xpose.msra.mxu0 0.0
    %986 = vmatprep.subr.mxu0 0.0
    %987 = vmatpush1.xpose.msra.mxu0 0.0
    %988 = vmatprep.subr.mxu0 0.0
    %989 = vmatpush1.xpose.msra.mxu0 0.0
    %990 = vmatprep.subr.mxu0 0.0
    %991 = vmatpush1.xpose.msra.mxu0 0.0
    %992 = vmatprep.subr.mxu0 0.0
    %993 = vmatpush1.xpose.msra.mxu0 0.0
    %994 = vmatprep.subr.mxu0 0.0
    %995 = vmatpush1.xpose.msra.mxu0 0.0
    %996 = vmatprep.subr.mxu0 0.0
    %997 = vmatpush1.xpose.msra.mxu0 0.0
    %998 = vmatprep.subr.mxu0 0.0
    %999 = vmatpush1.xpose.msra.mxu0 0.0
    %1000 = vmatprep.mubr.f32.mxu0 0.0
    %1001 = vmatmul.mubr.f32.gmra.mrb[0].mxu0 %v931
    %v1002 = vpop.f32.mrb[0].mxu0
    %v1003 = vadd.f32 0.0, %v1002
    %v1004 = vpop.f32.mrb[0].mxu0
    %1005 = vdwg.mxu0
    %v1007 = vsel %vm400, %v801, 0
    %v1010 = vsel %vm400, %v864, 0
    %1012 = vmatprep.subr.mxu0 0.0
    %1013 = vmatpush1.xpose.msra.mxu0 %v1010
    %1014 = vmatprep.subr.mxu0 0.0
    %1015 = vmatpush1.xpose.msra.mxu0 0.0
    %1016 = vmatprep.subr.mxu0 0.0
    %1017 = vmatpush1.xpose.msra.mxu0 0.0
    %1018 = vmatprep.subr.mxu0 0.0
    %1019 = vmatpush1.xpose.msra.mxu0 0.0
    %1020 = vmatprep.subr.mxu0 0.0
    %1021 = vmatpush1.xpose.msra.mxu0 0.0
    %1022 = vmatprep.subr.mxu0 0.0
    %1023 = vmatpush1.xpose.msra.mxu0 0.0
    %1024 = vmatprep.subr.mxu0 0.0
    %1025 = vmatpush1.xpose.msra.mxu0 0.0
    %1026 = vmatprep.subr.mxu0 0.0
    %1027 = vmatpush1.xpose.msra.mxu0 0.0
    %1028 = vmatprep.subr.mxu0 0.0
    %1029 = vmatpush1.xpose.msra.mxu0 0.0
    %1030 = vmatprep.subr.mxu0 0.0
    %1031 = vmatpush1.xpose.msra.mxu0 0.0
    %1032 = vmatprep.subr.mxu0 0.0
    %1033 = vmatpush1.xpose.msra.mxu0 0.0
    %1034 = vmatprep.subr.mxu0 0.0
    %1035 = vmatpush1.xpose.msra.mxu0 0.0
    %1036 = vmatprep.subr.mxu0 0.0
    %1037 = vmatpush1.xpose.msra.mxu0 0.0
    %1038 = vmatprep.subr.mxu0 0.0
    %1039 = vmatpush1.xpose.msra.mxu0 0.0
    %1040 = vmatprep.subr.mxu0 0.0
    %1041 = vmatpush1.xpose.msra.mxu0 0.0
    %1042 = vmatprep.subr.mxu0 0.0
    %1043 = vmatpush1.xpose.msra.mxu0 0.0
    %1044 = vmatprep.subr.mxu0 0.0
    %1045 = vmatpush1.xpose.msra.mxu0 0.0
    %1046 = vmatprep.subr.mxu0 0.0
    %1047 = vmatpush1.xpose.msra.mxu0 0.0
    %1048 = vmatprep.subr.mxu0 0.0
    %1049 = vmatpush1.xpose.msra.mxu0 0.0
    %1050 = vmatprep.subr.mxu0 0.0
    %1051 = vmatpush1.xpose.msra.mxu0 0.0
    %1052 = vmatprep.subr.mxu0 0.0
    %1053 = vmatpush1.xpose.msra.mxu0 0.0
    %1054 = vmatprep.subr.mxu0 0.0
    %1055 = vmatpush1.xpose.msra.mxu0 0.0
    %1056 = vmatprep.subr.mxu0 0.0
    %1057 = vmatpush1.xpose.msra.mxu0 0.0
    %1058 = vmatprep.subr.mxu0 0.0
    %1059 = vmatpush1.xpose.msra.mxu0 0.0
    %1060 = vmatprep.subr.mxu0 0.0
    %1061 = vmatpush1.xpose.msra.mxu0 0.0
    %1062 = vmatprep.subr.mxu0 0.0
    %1063 = vmatpush1.xpose.msra.mxu0 0.0
    %1064 = vmatprep.subr.mxu0 0.0
    %1065 = vmatpush1.xpose.msra.mxu0 0.0
    %1066 = vmatprep.subr.mxu0 0.0
    %1067 = vmatpush1.xpose.msra.mxu0 0.0
    %1068 = vmatprep.subr.mxu0 0.0
    %1069 = vmatpush1.xpose.msra.mxu0 0.0
    %1070 = vmatprep.subr.mxu0 0.0
    %1071 = vmatpush1.xpose.msra.mxu0 0.0
    %1072 = vmatprep.subr.mxu0 0.0
    %1073 = vmatpush1.xpose.msra.mxu0 0.0
    %1074 = vmatprep.subr.mxu0 0.0
    %1075 = vmatpush1.xpose.msra.mxu0 0.0
    %1076 = vmatprep.mubr.f32.mxu0 0.0
    %1077 = vmatmul.mubr.f32.gmra.mrb[0].mxu0 %v1007
    %v1078 = vpop.f32.mrb[0].mxu0
    %v1079 = vadd.f32 0.0, %v1078
    %v1080 = vpop.f32.mrb[0].mxu0
    %1081 = vdwg.mxu0
    %v1082 = vmul.f32 %v1003, 0.25
    %v1083 = vmul.f32 %v1079, 0.25
    %v1084 = vadd.f32 %v1082, %v560
    %v1085 = vadd.f32 %v1083, %v564
    %v1086 = vsel %vm569, %v1084, -inf
    %1087 = vmax.xlane.f32.xlu0 %v1086
    %v1088 = vpop.xlane.xlu0 %1087
    %v1089 = vsel %vm569, %v1085, -inf
    %1090 = vmax.xlane.f32.xlu0 %v1089
    %v1091 = vpop.xlane.xlu0 %1090
    %v1092 = vsub.f32 %v1084, %v1088
    %v1093 = vsub.f32 %v1085, %v1091
    %v1094 = vmul.f32 %v1092, 1.442695
    %v1095 = vpow.pop %v1094
    %v1096 = vmul.f32 %v1093, 1.442695
    %v1097 = vpow.pop %v1096
    %v1098 = vsel %vm569, %v1095, 0.0
    %1099 = vadd.xlane.f32.xlu0 %v1098
    %v1100 = vpop.xlane.xlu0 %1099
    %v1101 = vsel %vm569, %v1097, 0.0
    %1102 = vadd.xlane.f32.xlu0 %v1101
    %v1103 = vpop.xlane.xlu0 %1102
    %v1104 = vrcp.pop %v1100
    %v1105 = vmul.f32 %v1095, %v1104
    %v1106 = vrcp.pop %v1103
    %v1107 = vmul.f32 %v1097, %v1106
    %v1109 = vsel %vm569, %v1105, 0
    %1111 = vmatprep.subr.mxu0 0.0
    %1112 = vmatpush1.msra.mxu0 %v924
    %1113 = vmatprep.subr.mxu0 0.0
    %1114 = vmatpush1.msra.mxu0 0.0
    %1115 = vmatprep.subr.mxu0 0.0
    %1116 = vmatpush1.msra.mxu0 0.0
    %1117 = vmatprep.subr.mxu0 0.0
    %1118 = vmatpush1.msra.mxu0 0.0
    %1119 = vmatprep.subr.mxu0 0.0
    %1120 = vmatpush1.msra.mxu0 0.0
    %1121 = vmatprep.subr.mxu0 0.0
    %1122 = vmatpush1.msra.mxu0 0.0
    %1123 = vmatprep.subr.mxu0 0.0
    %1124 = vmatpush1.msra.mxu0 0.0
    %1125 = vmatprep.subr.mxu0 0.0
    %1126 = vmatpush1.msra.mxu0 0.0
    %1127 = vmatprep.subr.mxu0 0.0
    %1128 = vmatpush1.msra.mxu0 0.0
    %1129 = vmatprep.subr.mxu0 0.0
    %1130 = vmatpush1.msra.mxu0 0.0
    %1131 = vmatprep.subr.mxu0 0.0
    %1132 = vmatpush1.msra.mxu0 0.0
    %1133 = vmatprep.subr.mxu0 0.0
    %1134 = vmatpush1.msra.mxu0 0.0
    %1135 = vmatprep.subr.mxu0 0.0
    %1136 = vmatpush1.msra.mxu0 0.0
    %1137 = vmatprep.subr.mxu0 0.0
    %1138 = vmatpush1.msra.mxu0 0.0
    %1139 = vmatprep.subr.mxu0 0.0
    %1140 = vmatpush1.msra.mxu0 0.0
    %1141 = vmatprep.subr.mxu0 0.0
    %1142 = vmatpush1.msra.mxu0 0.0
    %1143 = vmatprep.subr.mxu0 0.0
    %1144 = vmatpush1.msra.mxu0 0.0
    %1145 = vmatprep.subr.mxu0 0.0
    %1146 = vmatpush1.msra.mxu0 0.0
    %1147 = vmatprep.subr.mxu0 0.0
    %1148 = vmatpush1.msra.mxu0 0.0
    %1149 = vmatprep.subr.mxu0 0.0
    %1150 = vmatpush1.msra.mxu0 0.0
    %1151 = vmatprep.subr.mxu0 0.0
    %1152 = vmatpush1.msra.mxu0 0.0
    %1153 = vmatprep.subr.mxu0 0.0
    %1154 = vmatpush1.msra.mxu0 0.0
    %1155 = vmatprep.subr.mxu0 0.0
    %1156 = vmatpush1.msra.mxu0 0.0
    %1157 = vmatprep.subr.mxu0 0.0
    %1158 = vmatpush1.msra.mxu0 0.0
    %1159 = vmatprep.subr.mxu0 0.0
    %1160 = vmatpush1.msra.mxu0 0.0
    %1161 = vmatprep.subr.mxu0 0.0
    %1162 = vmatpush1.msra.mxu0 0.0
    %1163 = vmatprep.subr.mxu0 0.0
    %1164 = vmatpush1.msra.mxu0 0.0
    %1165 = vmatprep.subr.mxu0 0.0
    %1166 = vmatpush1.msra.mxu0 0.0
    %1167 = vmatprep.subr.mxu0 0.0
    %1168 = vmatpush1.msra.mxu0 0.0
    %1169 = vmatprep.subr.mxu0 0.0
    %1170 = vmatpush1.msra.mxu0 0.0
    %1171 = vmatprep.subr.mxu0 0.0
    %1172 = vmatpush1.msra.mxu0 0.0
    %1173 = vmatprep.subr.mxu0 0.0
    %1174 = vmatpush1.msra.mxu0 0.0
    %1175 = vmatprep.mubr.f32.mxu0 0.0
    %1176 = vmatmul.mubr.f32.gmra.mrb[0].mxu0 %v1109
    %v1177 = vpop.f32.mrb[0].mxu0
    %v1178 = vadd.f32 0.0, %v1177
    %v1179 = vpop.f32.mrb[0].mxu0
    %1180 = vdwg.mxu0
    %v1182 = vsel %vm569, %v1107, 0
    %1184 = vmatprep.subr.mxu0 0.0
    %1185 = vmatpush1.msra.mxu0 %v927
    %1186 = vmatprep.subr.mxu0 0.0
    %1187 = vmatpush1.msra.mxu0 0.0
    %1188 = vmatprep.subr.mxu0 0.0
    %1189 = vmatpush1.msra.mxu0 0.0
    %1190 = vmatprep.subr.mxu0 0.0
    %1191 = vmatpush1.msra.mxu0 0.0
    %1192 = vmatprep.subr.mxu0 0.0
    %1193 = vmatpush1.msra.mxu0 0.0
    %1194 = vmatprep.subr.mxu0 0.0
    %1195 = vmatpush1.msra.mxu0 0.0
    %1196 = vmatprep.subr.mxu0 0.0
    %1197 = vmatpush1.msra.mxu0 0.0
    %1198 = vmatprep.subr.mxu0 0.0
    %1199 = vmatpush1.msra.mxu0 0.0
    %1200 = vmatprep.subr.mxu0 0.0
    %1201 = vmatpush1.msra.mxu0 0.0
    %1202 = vmatprep.subr.mxu0 0.0
    %1203 = vmatpush1.msra.mxu0 0.0
    %1204 = vmatprep.subr.mxu0 0.0
    %1205 = vmatpush1.msra.mxu0 0.0
    %1206 = vmatprep.subr.mxu0 0.0
    %1207 = vmatpush1.msra.mxu0 0.0
    %1208 = vmatprep.subr.mxu0 0.0
    %1209 = vmatpush1.msra.mxu0 0.0
    %1210 = vmatprep.subr.mxu0 0.0
    %1211 = vmatpush1.msra.mxu0 0.0
    %1212 = vmatprep.subr.mxu0 0.0
    %1213 = vmatpush1.msra.mxu0 0.0
    %1214 = vmatprep.subr.mxu0 0.0
    %1215 = vmatpush1.msra.mxu0 0.0
    %1216 = vmatprep.subr.mxu0 0.0
    %1217 = vmatpush1.msra.mxu0 0.0
    %1218 = vmatprep.subr.mxu0 0.0
    %1219 = vmatpush1.msra.mxu0 0.0
    %1220 = vmatprep.subr.mxu0 0.0
    %1221 = vmatpush1.msra.mxu0 0.0
    %1222 = vmatprep.subr.mxu0 0.0
    %1223 = vmatpush1.msra.mxu0 0.0
    %1224 = vmatprep.subr.mxu0 0.0
    %1225 = vmatpush1.msra.mxu0 0.0
    %1226 = vmatprep.subr.mxu0 0.0
    %1227 = vmatpush1.msra.mxu0 0.0
    %1228 = vmatprep.subr.mxu0 0.0
    %1229 = vmatpush1.msra.mxu0 0.0
    %1230 = vmatprep.subr.mxu0 0.0
    %1231 = vmatpush1.msra.mxu0 0.0
    %1232 = vmatprep.subr.mxu0 0.0
    %1233 = vmatpush1.msra.mxu0 0.0
    %1234 = vmatprep.subr.mxu0 0.0
    %1235 = vmatpush1.msra.mxu0 0.0
    %1236 = vmatprep.subr.mxu0 0.0
    %1237 = vmatpush1.msra.mxu0 0.0
    %1238 = vmatprep.subr.mxu0 0.0
    %1239 = vmatpush1.msra.mxu0 0.0
    %1240 = vmatprep.subr.mxu0 0.0
    %1241 = vmatpush1.msra.mxu0 0.0
    %1242 = vmatprep.subr.mxu0 0.0
    %1243 = vmatpush1.msra.mxu0 0.0
    %1244 = vmatprep.subr.mxu0 0.0
    %1245 = vmatpush1.msra.mxu0 0.0
    %1246 = vmatprep.subr.mxu0 0.0
    %1247 = vmatpush1.msra.mxu0 0.0
    %1248 = vmatprep.mubr.f32.mxu0 0.0
    %1249 = vmatmul.mubr.f32.gmra.mrb[0].mxu0 %v1182
    %v1250 = vpop.f32.mrb[0].mxu0
    %v1251 = vadd.f32 0.0, %v1250
    %v1252 = vpop.f32.mrb[0].mxu0
    %1253 = vdwg.mxu0
    %v1254 = vpack.c.bf16 %v1251, %v1178
    %s1255 = scalar_lea.vmem %s5, 8
    %v1256 = vld [vmem:[%s1255] sm:$0xf]
    %v1257 = vld [vmem:[%s1255 + $0x4] sm:$0xf]
    %v1260 = vunpack.c.l.b16 %v1256
    %v1261 = vunpack.c.l.b16 %v1257
    %v1262 = vpack.c.b16 %v1261, %v1260
    %v1265 = vsel %vm400, %v1254, 0
    %1267 = vmatprep.subr.bf16.mxu0 0
    %1268 = vmatpush1.bf16.msra.mxu0 %v1262
    %1269 = vmatprep.subr.bf16.mxu0 0
    %1270 = vmatpush1.bf16.msra.mxu0 0
    %1271 = vmatprep.subr.bf16.mxu0 0
    %1272 = vmatpush1.bf16.msra.mxu0 0
    %1273 = vmatprep.subr.bf16.mxu0 0
    %1274 = vmatpush1.bf16.msra.mxu0 0
    %1275 = vmatprep.subr.bf16.mxu0 0
    %1276 = vmatpush1.bf16.msra.mxu0 0
    %1277 = vmatprep.subr.bf16.mxu0 0
    %1278 = vmatpush1.bf16.msra.mxu0 0
    %1279 = vmatprep.subr.bf16.mxu0 0
    %1280 = vmatpush1.bf16.msra.mxu0 0
    %1281 = vmatprep.subr.bf16.mxu0 0
    %1282 = vmatpush1.bf16.msra.mxu0 0
    %1283 = vmatprep.subr.bf16.mxu0 0
    %1284 = vmatpush1.bf16.msra.mxu0 0
    %1285 = vmatprep.subr.bf16.mxu0 0
    %1286 = vmatpush1.bf16.msra.mxu0 0
    %1287 = vmatprep.subr.bf16.mxu0 0
    %1288 = vmatpush1.bf16.msra.mxu0 0
    %1289 = vmatprep.subr.bf16.mxu0 0
    %1290 = vmatpush1.bf16.msra.mxu0 0
    %1291 = vmatprep.subr.bf16.mxu0 0
    %1292 = vmatpush1.bf16.msra.mxu0 0
    %1293 = vmatprep.subr.bf16.mxu0 0
    %1294 = vmatpush1.bf16.msra.mxu0 0
    %1295 = vmatprep.subr.bf16.mxu0 0
    %1296 = vmatpush1.bf16.msra.mxu0 0
    %1297 = vmatprep.subr.bf16.mxu0 0
    %1298 = vmatpush1.bf16.msra.mxu0 0
    %1299 = vmatprep.mubr.bf16.mxu0 0
    %1300 = vmatmul.mubr.bf16.gmra.mrb[0].mxu0 %v1265
    %v1301 = vpop.f32.mrb[0].mxu0
    %v1302 = vadd.f32 0.0, %v1301
    %v1303 = vpop.f32.mrb[0].mxu0
    %v1304 = vpop.f32.mrb[0].mxu0
    %v1305 = vadd.f32 0.0, %v1304
    %v1306 = vpop.f32.mrb[0].mxu0
    %1307 = vdwg.mxu0
    %v1310 = vunpack.c.l.b16 %v739
    %v1311 = vunpack.c.l.b16 %v740
    %v1312 = vpack.c.b16 %v1311, %v1310
    %v1315 = vsel %vm400, %v738, 0
    %1317 = vmatprep.subr.bf16.mxu0 0
    %1318 = vmatpush1.bf16.msra.mxu0 %v1312
    %1319 = vmatprep.subr.bf16.mxu0 0
    %1320 = vmatpush1.bf16.msra.mxu0 0
    %1321 = vmatprep.subr.bf16.mxu0 0
    %1322 = vmatpush1.bf16.msra.mxu0 0
    %1323 = vmatprep.subr.bf16.mxu0 0
    %1324 = vmatpush1.bf16.msra.mxu0 0
    %1325 = vmatprep.subr.bf16.mxu0 0
    %1326 = vmatpush1.bf16.msra.mxu0 0
    %1327 = vmatprep.subr.bf16.mxu0 0
    %1328 = vmatpush1.bf16.msra.mxu0 0
    %1329 = vmatprep.subr.bf16.mxu0 0
    %1330 = vmatpush1.bf16.msra.mxu0 0
    %1331 = vmatprep.subr.bf16.mxu0 0
    %1332 = vmatpush1.bf16.msra.mxu0 0
    %1333 = vmatprep.subr.bf16.mxu0 0
    %1334 = vmatpush1.bf16.msra.mxu0 0
    %1335 = vmatprep.subr.bf16.mxu0 0
    %1336 = vmatpush1.bf16.msra.mxu0 0
    %1337 = vmatprep.subr.bf16.mxu0 0
    %1338 = vmatpush1.bf16.msra.mxu0 0
    %1339 = vmatprep.subr.bf16.mxu0 0
    %1340 = vmatpush1.bf16.msra.mxu0 0
    %1341 = vmatprep.subr.bf16.mxu0 0
    %1342 = vmatpush1.bf16.msra.mxu0 0
    %1343 = vmatprep.subr.bf16.mxu0 0
    %1344 = vmatpush1.bf16.msra.mxu0 0
    %1345 = vmatprep.subr.bf16.mxu0 0
    %1346 = vmatpush1.bf16.msra.mxu0 0
    %1347 = vmatprep.subr.bf16.mxu0 0
    %1348 = vmatpush1.bf16.msra.mxu0 0
    %1349 = vmatprep.mubr.bf16.mxu0 0
    %1350 = vmatmul.mubr.bf16.gmra.mrb[0].mxu0 %v1315
    %v1351 = vpop.f32.mrb[0].mxu0
    %v1352 = vadd.f32 %v1302, %v1351
    %v1353 = vpop.f32.mrb[0].mxu0
    %v1354 = vpop.f32.mrb[0].mxu0
    %v1355 = vadd.f32 %v1305, %v1354
    %v1356 = vpop.f32.mrb[0].mxu0
    %1357 = vdwg.mxu0
    %v1358 = vadd.f32 %v200, %v1352
    %v1359 = vadd.f32 %v201, %v1355
    %v1360 = vld [vmem:[%s3 + $0x8] sm:$0x1]
    %v1361 = vlaneseq
    %v1362 = vshrl.u32 %v1361, 7
    %v1363 = vsub.s32 0, %v1362
    %v1364 = vrot.slane %v1360, %v1363
    %v1365 = vadd.f32 %v1358, %v1364
    %v1366 = vadd.f32 %v1359, %v1364
    %v1367 = vld [vmem:[%s3 + $0x9] sm:$0x1]
    %v1368 = vld [vmem:[%s3 + $0xa] sm:$0x1]
    %v1369 = vsel %vm162, %v1365, 0.0
    %1370 = vadd.xlane.f32.xlu0 %v1369
    %v1371 = vpop.xlane.xlu0 %1370
    %v1372 = vsel %vm162, %v1366, 0.0
    %1373 = vadd.xlane.f32.xlu0 %v1372
    %v1374 = vpop.xlane.xlu0 %1373
    %v1375 = vmul.f32 %v1371, %v169
    %v1376 = vmul.f32 %v1374, %v169
    %v1377 = vsub.f32 %v1365, %v1375
    %v1378 = vsub.f32 %v1366, %v1376
    %v1379 = vmul.f32 %v1377, %v1377
    %v1380 = vmul.f32 %v1378, %v1378
    %v1381 = vsel %vm162, %v1379, 0.0
    %1382 = vadd.xlane.f32.xlu0 %v1381
    %v1383 = vpop.xlane.xlu0 %1382
    %v1384 = vsel %vm162, %v1380, 0.0
    %1385 = vadd.xlane.f32.xlu0 %v1384
    %v1386 = vpop.xlane.xlu0 %1385
    %v1387 = vmul.f32 %v1383, %v169
    %v1388 = vmul.f32 %v1386, %v169
    %v1389 = vadd.f32 %v1387, 1e-12
    %v1390 = vadd.f32 %v1388, 1e-12
    %v1391 = vrsqrt.pop %v1389
    %v1392 = vrsqrt.pop %v1390
    %v1393 = vmul.f32 %v1377, %v1391
    %v1394 = vmul.f32 %v1378, %v1392
    %v1395 = vlaneseq
    %v1396 = vshrl.u32 %v1395, 7
    %v1397 = vsub.s32 0, %v1396
    %v1398 = vrot.slane %v1367, %v1397
    %v1399 = vmul.f32 %v1393, %v1398
    %v1400 = vmul.f32 %v1394, %v1398
    %v1401 = vlaneseq
    %v1402 = vshrl.u32 %v1401, 7
    %v1403 = vsub.s32 0, %v1402
    %v1404 = vrot.slane %v1368, %v1403
    %v1405 = vadd.f32 %v1399, %v1404
    %v1406 = vadd.f32 %v1400, %v1404
    %v1407 = vpack.c.bf16 %v1406, %v1405
    %v1408 = vld [vmem:[%s6] sm:$0xf]
    %v1409 = vld [vmem:[%s6 + $0x4] sm:$0xf]
    %v1410 = vld [vmem:[%s6 + $0x8] sm:$0xf]
    %v1411 = vld [vmem:[%s6 + $0xc] sm:$0xf]
    %v1412 = vld [vmem:[%s3 + $0xb] sm:$0x1]
    %v1413 = vlaneseq
    %v1414 = vshrl.u32 %v1413, 7
    %v1415 = vsub.s32 0, %v1414
    %v1416 = vrot.slane %v1412, %v1415
    %v1421 = vunpack.c.l.b16 %v1408
    %v1422 = vunpack.c.l.b16 %v1409
    %v1423 = vunpack.c.l.b16 %v1410
    %v1424 = vunpack.c.l.b16 %v1411
    %v1425 = vpack.c.b16 %v1422, %v1421
    %v1426 = vpack.c.b16 %v1424, %v1423
    %v1430 = vsel %vm162, %v1407, 0
    %1432 = vmatprep.subr.bf16.mxu0 0
    %1433 = vmatpush1.bf16.msra.mxu0 %v1425
    %1434 = vmatprep.subr.bf16.mxu0 0
    %1435 = vmatpush1.bf16.msra.mxu0 %v1426
    %1436 = vmatprep.subr.bf16.mxu0 0
    %1437 = vmatpush1.bf16.msra.mxu0 0
    %1438 = vmatprep.subr.bf16.mxu0 0
    %1439 = vmatpush1.bf16.msra.mxu0 0
    %1440 = vmatprep.subr.bf16.mxu0 0
    %1441 = vmatpush1.bf16.msra.mxu0 0
    %1442 = vmatprep.subr.bf16.mxu0 0
    %1443 = vmatpush1.bf16.msra.mxu0 0
    %1444 = vmatprep.subr.bf16.mxu0 0
    %1445 = vmatpush1.bf16.msra.mxu0 0
    %1446 = vmatprep.subr.bf16.mxu0 0
    %1447 = vmatpush1.bf16.msra.mxu0 0
    %1448 = vmatprep.subr.bf16.mxu0 0
    %1449 = vmatpush1.bf16.msra.mxu0 0
    %1450 = vmatprep.subr.bf16.mxu0 0
    %1451 = vmatpush1.bf16.msra.mxu0 0
    %1452 = vmatprep.subr.bf16.mxu0 0
    %1453 = vmatpush1.bf16.msra.mxu0 0
    %1454 = vmatprep.subr.bf16.mxu0 0
    %1455 = vmatpush1.bf16.msra.mxu0 0
    %1456 = vmatprep.subr.bf16.mxu0 0
    %1457 = vmatpush1.bf16.msra.mxu0 0
    %1458 = vmatprep.subr.bf16.mxu0 0
    %1459 = vmatpush1.bf16.msra.mxu0 0
    %1460 = vmatprep.subr.bf16.mxu0 0
    %1461 = vmatpush1.bf16.msra.mxu0 0
    %1462 = vmatprep.subr.bf16.mxu0 0
    %1463 = vmatpush1.bf16.msra.mxu0 0
    %1464 = vmatprep.mubr.bf16.mxu0 0
    %1465 = vmatmul.mubr.bf16.gmra.mrb[0].mxu0 %v1430
    %v1466 = vpop.f32.mrb[0].mxu0
    %v1467 = vadd.f32 %v1416, %v1466
    %v1468 = vpop.f32.mrb[0].mxu0
    %v1469 = vpop.f32.mrb[0].mxu0
    %v1470 = vadd.f32 %v1416, %v1469
    %v1471 = vpop.f32.mrb[0].mxu0
    %1472 = vdwg.mxu0
    %v1473 = vmul.f32 %v1467, 0.5
    %v1474 = vmul.f32 %v1470, 0.5
    %v1475 = vmul.f32 %v1467, 0.044715
    %v1476 = vmul.f32 %v1470, 0.044715
    %v1477 = vmul.f32 %v1475, %v1467
    %v1478 = vmul.f32 %v1476, %v1470
    %v1479 = vmul.f32 %v1477, %v1467
    %v1480 = vmul.f32 %v1478, %v1470
    %v1481 = vadd.f32 %v1467, %v1479
    %v1482 = vadd.f32 %v1470, %v1480
    %v1483 = vmul.f32 %v1481, 0.7978846
    %v1484 = vmul.f32 %v1482, 0.7978846
    %v1485 = vtanh.pop %v1483
    %v1486 = vtanh.pop %v1484
    %v1487 = vadd.f32 %v1485, 1.0
    %v1488 = vadd.f32 %v1486, 1.0
    %v1489 = vmul.f32 %v1473, %v1487
    %v1490 = vmul.f32 %v1474, %v1488
    %v1491 = vpack.c.bf16 %v1490, %v1489
    %v1492 = vld [vmem:[%s7] sm:$0xf]
    %v1493 = vld [vmem:[%s7 + $0x4] sm:$0xf]
    %v1494 = vld [vmem:[%s7 + $0x8] sm:$0xf]
    %v1495 = vld [vmem:[%s7 + $0xc] sm:$0xf]
    %v1496 = vld [vmem:[%s7 + $0x10] sm:$0xf]
    %v1497 = vld [vmem:[%s7 + $0x14] sm:$0xf]
    %v1498 = vld [vmem:[%s7 + $0x18] sm:$0xf]
    %v1499 = vld [vmem:[%s7 + $0x1c] sm:$0xf]
    %v1500 = vld [vmem:[%s3 + $0xc] sm:$0x1]
    %v1501 = vlaneseq
    %v1502 = vshrl.u32 %v1501, 7
    %v1503 = vsub.s32 0, %v1502
    %v1504 = vrot.slane %v1500, %v1503
    %v1513 = vunpack.c.l.b16 %v1492
    %v1514 = vunpack.c.l.b16 %v1493
    %v1515 = vunpack.c.l.b16 %v1494
    %v1516 = vunpack.c.l.b16 %v1495
    %v1517 = vunpack.c.l.b16 %v1496
    %v1518 = vunpack.c.l.b16 %v1497
    %v1519 = vunpack.c.l.b16 %v1498
    %v1520 = vunpack.c.l.b16 %v1499
    %v1521 = vpack.c.b16 %v1514, %v1513
    %v1522 = vpack.c.b16 %v1516, %v1515
    %v1523 = vpack.c.b16 %v1518, %v1517
    %v1524 = vpack.c.b16 %v1520, %v1519
    %vm1529 = vcmask 523264
    %v1531 = vsel %vm1529, %v1491, 0
    %1533 = vmatprep.subr.bf16.mxu0 0
    %1534 = vmatpush1.bf16.msra.mxu0 %v1521
    %1535 = vmatprep.subr.bf16.mxu0 0
    %1536 = vmatpush1.bf16.msra.mxu0 %v1522
    %1537 = vmatprep.subr.bf16.mxu0 0
    %1538 = vmatpush1.bf16.msra.mxu0 %v1523
    %1539 = vmatprep.subr.bf16.mxu0 0
    %1540 = vmatpush1.bf16.msra.mxu0 %v1524
    %1541 = vmatprep.subr.bf16.mxu0 0
    %1542 = vmatpush1.bf16.msra.mxu0 0
    %1543 = vmatprep.subr.bf16.mxu0 0
    %1544 = vmatpush1.bf16.msra.mxu0 0
    %1545 = vmatprep.subr.bf16.mxu0 0
    %1546 = vmatpush1.bf16.msra.mxu0 0
    %1547 = vmatprep.subr.bf16.mxu0 0
    %1548 = vmatpush1.bf16.msra.mxu0 0
    %1549 = vmatprep.subr.bf16.mxu0 0
    %1550 = vmatpush1.bf16.msra.mxu0 0
    %1551 = vmatprep.subr.bf16.mxu0 0
    %1552 = vmatpush1.bf16.msra.mxu0 0
    %1553 = vmatprep.subr.bf16.mxu0 0
    %1554 = vmatpush1.bf16.msra.mxu0 0
    %1555 = vmatprep.subr.bf16.mxu0 0
    %1556 = vmatpush1.bf16.msra.mxu0 0
    %1557 = vmatprep.subr.bf16.mxu0 0
    %1558 = vmatpush1.bf16.msra.mxu0 0
    %1559 = vmatprep.subr.bf16.mxu0 0
    %1560 = vmatpush1.bf16.msra.mxu0 0
    %1561 = vmatprep.subr.bf16.mxu0 0
    %1562 = vmatpush1.bf16.msra.mxu0 0
    %1563 = vmatprep.subr.bf16.mxu0 0
    %1564 = vmatpush1.bf16.msra.mxu0 0
    %1565 = vmatprep.mubr.bf16.mxu0 0
    %1566 = vmatmul.mubr.bf16.gmra.mrb[0].mxu0 %v1531
    %v1567 = vpop.f32.mrb[0].mxu0
    %v1568 = vadd.f32 %v1504, %v1567
    %v1569 = vpop.f32.mrb[0].mxu0
    %v1570 = vpop.f32.mrb[0].mxu0
    %v1571 = vadd.f32 %v1504, %v1570
    %v1572 = vpop.f32.mrb[0].mxu0
    %1573 = vdwg.mxu0
    %v1574 = vadd.f32 %v1405, %v1568
    %v1575 = vadd.f32 %v1406, %v1571
    %v1576 = vld [vmem:[%s3 + $0xd] sm:$0x1]
    %v1577 = vld [vmem:[%s3 + $0xe] sm:$0x1]
    %v1578 = vsel %vm162, %v1574, 0.0
    %1579 = vadd.xlane.f32.xlu0 %v1578
    %v1580 = vpop.xlane.xlu0 %1579
    %v1581 = vsel %vm162, %v1575, 0.0
    %1582 = vadd.xlane.f32.xlu0 %v1581
    %v1583 = vpop.xlane.xlu0 %1582
    %v1584 = vmul.f32 %v1580, %v169
    %v1585 = vmul.f32 %v1583, %v169
    %v1586 = vsub.f32 %v1574, %v1584
    %v1587 = vsub.f32 %v1575, %v1585
    %v1588 = vmul.f32 %v1586, %v1586
    %v1589 = vmul.f32 %v1587, %v1587
    %v1590 = vsel %vm162, %v1588, 0.0
    %1591 = vadd.xlane.f32.xlu0 %v1590
    %v1592 = vpop.xlane.xlu0 %1591
    %v1593 = vsel %vm162, %v1589, 0.0
    %1594 = vadd.xlane.f32.xlu0 %v1593
    %v1595 = vpop.xlane.xlu0 %1594
    %v1596 = vmul.f32 %v1592, %v169
    %v1597 = vmul.f32 %v1595, %v169
    %v1598 = vadd.f32 %v1596, 1e-12
    %v1599 = vadd.f32 %v1597, 1e-12
    %v1600 = vrsqrt.pop %v1598
    %v1601 = vrsqrt.pop %v1599
    %v1602 = vmul.f32 %v1586, %v1600
    %v1603 = vmul.f32 %v1587, %v1601
    %v1604 = vlaneseq
    %v1605 = vshrl.u32 %v1604, 7
    %v1606 = vsub.s32 0, %v1605
    %v1607 = vrot.slane %v1576, %v1606
    %v1608 = vmul.f32 %v1602, %v1607
    %v1609 = vmul.f32 %v1603, %v1607
    %v1610 = vlaneseq
    %v1611 = vshrl.u32 %v1610, 7
    %v1612 = vsub.s32 0, %v1611
    %v1613 = vrot.slane %v1577, %v1612
    %v1614 = vadd.f32 %v1608, %v1613
    %v1615 = vadd.f32 %v1609, %v1613
    %v1616 = vpack.c.bf16 %v1615, %v1614
    %s1617 = scalar_lea.vmem %s4, 96
    %v1618 = vld [vmem:[%s1617] sm:$0xf]
    %v1619 = vld [vmem:[%s1617 + $0x4] sm:$0xf]
    %v1620 = vld [vmem:[%s1617 + $0x8] sm:$0xf]
    %v1621 = vld [vmem:[%s1617 + $0xc] sm:$0xf]
    %v1622 = vld [vmem:[%s3 + $0xf] sm:$0x1]
    %v1623 = vlaneseq
    %v1624 = vshrl.u32 %v1623, 7
    %v1625 = vsub.s32 0, %v1624
    %v1626 = vrot.slane %v1622, %v1625
    %v1631 = vunpack.c.l.b16 %v1618
    %v1632 = vunpack.c.l.b16 %v1619
    %v1633 = vunpack.c.l.b16 %v1620
    %v1634 = vunpack.c.l.b16 %v1621
    %v1635 = vpack.c.b16 %v1632, %v1631
    %v1636 = vpack.c.b16 %v1634, %v1633
    %v1640 = vsel %vm162, %v1616, 0
    %1642 = vmatprep.subr.bf16.mxu0 0
    %1643 = vmatpush1.bf16.msra.mxu0 %v1635
    %1644 = vmatprep.subr.bf16.mxu0 0
    %1645 = vmatpush1.bf16.msra.mxu0 %v1636
    %1646 = vmatprep.subr.bf16.mxu0 0
    %1647 = vmatpush1.bf16.msra.mxu0 0
    %1648 = vmatprep.subr.bf16.mxu0 0
    %1649 = vmatpush1.bf16.msra.mxu0 0
    %1650 = vmatprep.subr.bf16.mxu0 0
    %1651 = vmatpush1.bf16.msra.mxu0 0
    %1652 = vmatprep.subr.bf16.mxu0 0
    %1653 = vmatpush1.bf16.msra.mxu0 0
    %1654 = vmatprep.subr.bf16.mxu0 0
    %1655 = vmatpush1.bf16.msra.mxu0 0
    %1656 = vmatprep.subr.bf16.mxu0 0
    %1657 = vmatpush1.bf16.msra.mxu0 0
    %1658 = vmatprep.subr.bf16.mxu0 0
    %1659 = vmatpush1.bf16.msra.mxu0 0
    %1660 = vmatprep.subr.bf16.mxu0 0
    %1661 = vmatpush1.bf16.msra.mxu0 0
    %1662 = vmatprep.subr.bf16.mxu0 0
    %1663 = vmatpush1.bf16.msra.mxu0 0
    %1664 = vmatprep.subr.bf16.mxu0 0
    %1665 = vmatpush1.bf16.msra.mxu0 0
    %1666 = vmatprep.subr.bf16.mxu0 0
    %1667 = vmatpush1.bf16.msra.mxu0 0
    %1668 = vmatprep.subr.bf16.mxu0 0
    %1669 = vmatpush1.bf16.msra.mxu0 0
    %1670 = vmatprep.subr.bf16.mxu0 0
    %1671 = vmatpush1.bf16.msra.mxu0 0
    %1672 = vmatprep.subr.bf16.mxu0 0
    %1673 = vmatpush1.bf16.msra.mxu0 0
    %1674 = vmatprep.mubr.bf16.mxu0 0
    %1675 = vmatmul.mubr.bf16.gmra.mrb[0].mxu0 %v1640
    %v1676 = vpop.f32.mrb[0].mxu0
    %v1677 = vadd.f32 %v1626, %v1676
    %v1678 = vpop.f32.mrb[0].mxu0
    %v1679 = vpop.f32.mrb[0].mxu0
    %v1680 = vadd.f32 %v1626, %v1679
    %v1681 = vpop.f32.mrb[0].mxu0
    %1682 = vdwg.mxu0
    %s1683 = scalar_lea.vmem %s4, 128
    %v1684 = vld [vmem:[%s1683] sm:$0xf]
    %v1685 = vld [vmem:[%s1683 + $0x4] sm:$0xf]
    %v1686 = vld [vmem:[%s1683 + $0x8] sm:$0xf]
    %v1687 = vld [vmem:[%s1683 + $0xc] sm:$0xf]
    %v1688 = vld [vmem:[%s3 + $0x11] sm:$0x1]
    %v1689 = vlaneseq
    %v1690 = vshrl.u32 %v1689, 7
    %v1691 = vsub.s32 0, %v1690
    %v1692 = vrot.slane %v1688, %v1691
    %v1697 = vunpack.c.l.b16 %v1684
    %v1698 = vunpack.c.l.b16 %v1685
    %v1699 = vunpack.c.l.b16 %v1686
    %v1700 = vunpack.c.l.b16 %v1687
    %v1701 = vpack.c.b16 %v1698, %v1697
    %v1702 = vpack.c.b16 %v1700, %v1699
    %1705 = vmatprep.subr.bf16.mxu0 0
    %1706 = vmatpush1.bf16.msra.mxu0 %v1701
    %1707 = vmatprep.subr.bf16.mxu0 0
    %1708 = vmatpush1.bf16.msra.mxu0 %v1702
    %1709 = vmatprep.subr.bf16.mxu0 0
    %1710 = vmatpush1.bf16.msra.mxu0 0
    %1711 = vmatprep.subr.bf16.mxu0 0
    %1712 = vmatpush1.bf16.msra.mxu0 0
    %1713 = vmatprep.subr.bf16.mxu0 0
    %1714 = vmatpush1.bf16.msra.mxu0 0
    %1715 = vmatprep.subr.bf16.mxu0 0
    %1716 = vmatpush1.bf16.msra.mxu0 0
    %1717 = vmatprep.subr.bf16.mxu0 0
    %1718 = vmatpush1.bf16.msra.mxu0 0
    %1719 = vmatprep.subr.bf16.mxu0 0
    %1720 = vmatpush1.bf16.msra.mxu0 0
    %1721 = vmatprep.subr.bf16.mxu0 0
    %1722 = vmatpush1.bf16.msra.mxu0 0
    %1723 = vmatprep.subr.bf16.mxu0 0
    %1724 = vmatpush1.bf16.msra.mxu0 0
    %1725 = vmatprep.subr.bf16.mxu0 0
    %1726 = vmatpush1.bf16.msra.mxu0 0
    %1727 = vmatprep.subr.bf16.mxu0 0
    %1728 = vmatpush1.bf16.msra.mxu0 0
    %1729 = vmatprep.subr.bf16.mxu0 0
    %1730 = vmatpush1.bf16.msra.mxu0 0
    %1731 = vmatprep.subr.bf16.mxu0 0
    %1732 = vmatpush1.bf16.msra.mxu0 0
    %1733 = vmatprep.subr.bf16.mxu0 0
    %1734 = vmatpush1.bf16.msra.mxu0 0
    %1735 = vmatprep.subr.bf16.mxu0 0
    %1736 = vmatpush1.bf16.msra.mxu0 0
    %1737 = vmatprep.mubr.bf16.mxu0 0
    %1738 = vmatmul.mubr.bf16.gmra.mrb[0].mxu0 %v1640
    %v1739 = vpop.f32.mrb[0].mxu0
    %v1740 = vadd.f32 %v1692, %v1739
    %v1741 = vpop.f32.mrb[0].mxu0
    %v1742 = vpop.f32.mrb[0].mxu0
    %v1743 = vadd.f32 %v1692, %v1742
    %v1744 = vpop.f32.mrb[0].mxu0
    %1745 = vdwg.mxu0
    %s1746 = scalar_lea.vmem %s4, 160
    %v1747 = vld [vmem:[%s1746] sm:$0xf]
    %v1748 = vld [vmem:[%s1746 + $0x4] sm:$0xf]
    %v1749 = vld [vmem:[%s1746 + $0x8] sm:$0xf]
    %v1750 = vld [vmem:[%s1746 + $0xc] sm:$0xf]
    %v1751 = vld [vmem:[%s3 + $0x13] sm:$0x1]
    %v1752 = vlaneseq
    %v1753 = vshrl.u32 %v1752, 7
    %v1754 = vsub.s32 0, %v1753
    %v1755 = vrot.slane %v1751, %v1754
    %v1760 = vunpack.c.l.b16 %v1747
    %v1761 = vunpack.c.l.b16 %v1748
    %v1762 = vunpack.c.l.b16 %v1749
    %v1763 = vunpack.c.l.b16 %v1750
    %v1764 = vpack.c.b16 %v1761, %v1760
    %v1765 = vpack.c.b16 %v1763, %v1762
    %1768 = vmatprep.subr.bf16.mxu0 0
    %1769 = vmatpush1.bf16.msra.mxu0 %v1764
    %1770 = vmatprep.subr.bf16.mxu0 0
    %1771 = vmatpush1.bf16.msra.mxu0 %v1765
    %1772 = vmatprep.subr.bf16.mxu0 0
    %1773 = vmatpush1.bf16.msra.mxu0 0
    %1774 = vmatprep.subr.bf16.mxu0 0
    %1775 = vmatpush1.bf16.msra.mxu0 0
    %1776 = vmatprep.subr.bf16.mxu0 0
    %1777 = vmatpush1.bf16.msra.mxu0 0
    %1778 = vmatprep.subr.bf16.mxu0 0
    %1779 = vmatpush1.bf16.msra.mxu0 0
    %1780 = vmatprep.subr.bf16.mxu0 0
    %1781 = vmatpush1.bf16.msra.mxu0 0
    %1782 = vmatprep.subr.bf16.mxu0 0
    %1783 = vmatpush1.bf16.msra.mxu0 0
    %1784 = vmatprep.subr.bf16.mxu0 0
    %1785 = vmatpush1.bf16.msra.mxu0 0
    %1786 = vmatprep.subr.bf16.mxu0 0
    %1787 = vmatpush1.bf16.msra.mxu0 0
    %1788 = vmatprep.subr.bf16.mxu0 0
    %1789 = vmatpush1.bf16.msra.mxu0 0
    %1790 = vmatprep.subr.bf16.mxu0 0
    %1791 = vmatpush1.bf16.msra.mxu0 0
    %1792 = vmatprep.subr.bf16.mxu0 0
    %1793 = vmatpush1.bf16.msra.mxu0 0
    %1794 = vmatprep.subr.bf16.mxu0 0
    %1795 = vmatpush1.bf16.msra.mxu0 0
    %1796 = vmatprep.subr.bf16.mxu0 0
    %1797 = vmatpush1.bf16.msra.mxu0 0
    %1798 = vmatprep.subr.bf16.mxu0 0
    %1799 = vmatpush1.bf16.msra.mxu0 0
    %1800 = vmatprep.mubr.bf16.mxu0 0
    %1801 = vmatmul.mubr.bf16.gmra.mrb[0].mxu0 %v1640
    %v1802 = vpop.f32.mrb[0].mxu0
    %v1803 = vadd.f32 %v1755, %v1802
    %v1804 = vpop.f32.mrb[0].mxu0
    %v1805 = vpop.f32.mrb[0].mxu0
    %v1806 = vadd.f32 %v1755, %v1805
    %v1807 = vpop.f32.mrb[0].mxu0
    %1808 = vdwg.mxu0
    %v1810 = vsel %vm400, %v1677, 0
    %v1813 = vsel %vm400, %v1740, 0
    %1815 = vmatprep.subr.mxu0 0.0
    %1816 = vmatpush1.xpose.msra.mxu0 %v1813
    %1817 = vmatprep.subr.mxu0 0.0
    %1818 = vmatpush1.xpose.msra.mxu0 0.0
    %1819 = vmatprep.subr.mxu0 0.0
    %1820 = vmatpush1.xpose.msra.mxu0 0.0
    %1821 = vmatprep.subr.mxu0 0.0
    %1822 = vmatpush1.xpose.msra.mxu0 0.0
    %1823 = vmatprep.subr.mxu0 0.0
    %1824 = vmatpush1.xpose.msra.mxu0 0.0
    %1825 = vmatprep.subr.mxu0 0.0
    %1826 = vmatpush1.xpose.msra.mxu0 0.0
    %1827 = vmatprep.subr.mxu0 0.0
    %1828 = vmatpush1.xpose.msra.mxu0 0.0
    %1829 = vmatprep.subr.mxu0 0.0
    %1830 = vmatpush1.xpose.msra.mxu0 0.0
    %1831 = vmatprep.subr.mxu0 0.0
    %1832 = vmatpush1.xpose.msra.mxu0 0.0
    %1833 = vmatprep.subr.mxu0 0.0
    %1834 = vmatpush1.xpose.msra.mxu0 0.0
    %1835 = vmatprep.subr.mxu0 0.0
    %1836 = vmatpush1.xpose.msra.mxu0 0.0
    %1837 = vmatprep.subr.mxu0 0.0
    %1838 = vmatpush1.xpose.msra.mxu0 0.0
    %1839 = vmatprep.subr.mxu0 0.0
    %1840 = vmatpush1.xpose.msra.mxu0 0.0
    %1841 = vmatprep.subr.mxu0 0.0
    %1842 = vmatpush1.xpose.msra.mxu0 0.0
    %1843 = vmatprep.subr.mxu0 0.0
    %1844 = vmatpush1.xpose.msra.mxu0 0.0
    %1845 = vmatprep.subr.mxu0 0.0
    %1846 = vmatpush1.xpose.msra.mxu0 0.0
    %1847 = vmatprep.subr.mxu0 0.0
    %1848 = vmatpush1.xpose.msra.mxu0 0.0
    %1849 = vmatprep.subr.mxu0 0.0
    %1850 = vmatpush1.xpose.msra.mxu0 0.0
    %1851 = vmatprep.subr.mxu0 0.0
    %1852 = vmatpush1.xpose.msra.mxu0 0.0
    %1853 = vmatprep.subr.mxu0 0.0
    %1854 = vmatpush1.xpose.msra.mxu0 0.0
    %1855 = vmatprep.subr.mxu0 0.0
    %1856 = vmatpush1.xpose.msra.mxu0 0.0
    %1857 = vmatprep.subr.mxu0 0.0
    %1858 = vmatpush1.xpose.msra.mxu0 0.0
    %1859 = vmatprep.subr.mxu0 0.0
    %1860 = vmatpush1.xpose.msra.mxu0 0.0
    %1861 = vmatprep.subr.mxu0 0.0
    %1862 = vmatpush1.xpose.msra.mxu0 0.0
    %1863 = vmatprep.subr.mxu0 0.0
    %1864 = vmatpush1.xpose.msra.mxu0 0.0
    %1865 = vmatprep.subr.mxu0 0.0
    %1866 = vmatpush1.xpose.msra.mxu0 0.0
    %1867 = vmatprep.subr.mxu0 0.0
    %1868 = vmatpush1.xpose.msra.mxu0 0.0
    %1869 = vmatprep.subr.mxu0 0.0
    %1870 = vmatpush1.xpose.msra.mxu0 0.0
    %1871 = vmatprep.subr.mxu0 0.0
    %1872 = vmatpush1.xpose.msra.mxu0 0.0
    %1873 = vmatprep.subr.mxu0 0.0
    %1874 = vmatpush1.xpose.msra.mxu0 0.0
    %1875 = vmatprep.subr.mxu0 0.0
    %1876 = vmatpush1.xpose.msra.mxu0 0.0
    %1877 = vmatprep.subr.mxu0 0.0
    %1878 = vmatpush1.xpose.msra.mxu0 0.0
    %1879 = vmatprep.mubr.f32.mxu0 0.0
    %1880 = vmatmul.mubr.f32.gmra.mrb[0].mxu0 %v1810
    %v1881 = vpop.f32.mrb[0].mxu0
    %v1882 = vadd.f32 0.0, %v1881
    %v1883 = vpop.f32.mrb[0].mxu0
    %1884 = vdwg.mxu0
    %v1886 = vsel %vm400, %v1680, 0
    %v1889 = vsel %vm400, %v1743, 0
    %1891 = vmatprep.subr.mxu0 0.0
    %1892 = vmatpush1.xpose.msra.mxu0 %v1889
    %1893 = vmatprep.subr.mxu0 0.0
    %1894 = vmatpush1.xpose.msra.mxu0 0.0
    %1895 = vmatprep.subr.mxu0 0.0
    %1896 = vmatpush1.xpose.msra.mxu0 0.0
    %1897 = vmatprep.subr.mxu0 0.0
    %1898 = vmatpush1.xpose.msra.mxu0 0.0
    %1899 = vmatprep.subr.mxu0 0.0
    %1900 = vmatpush1.xpose.msra.mxu0 0.0
    %1901 = vmatprep.subr.mxu0 0.0
    %1902 = vmatpush1.xpose.msra.mxu0 0.0
    %1903 = vmatprep.subr.mxu0 0.0
    %1904 = vmatpush1.xpose.msra.mxu0 0.0
    %1905 = vmatprep.subr.mxu0 0.0
    %1906 = vmatpush1.xpose.msra.mxu0 0.0
    %1907 = vmatprep.subr.mxu0 0.0
    %1908 = vmatpush1.xpose.msra.mxu0 0.0
    %1909 = vmatprep.subr.mxu0 0.0
    %1910 = vmatpush1.xpose.msra.mxu0 0.0
    %1911 = vmatprep.subr.mxu0 0.0
    %1912 = vmatpush1.xpose.msra.mxu0 0.0
    %1913 = vmatprep.subr.mxu0 0.0
    %1914 = vmatpush1.xpose.msra.mxu0 0.0
    %1915 = vmatprep.subr.mxu0 0.0
    %1916 = vmatpush1.xpose.msra.mxu0 0.0
    %1917 = vmatprep.subr.mxu0 0.0
    %1918 = vmatpush1.xpose.msra.mxu0 0.0
    %1919 = vmatprep.subr.mxu0 0.0
    %1920 = vmatpush1.xpose.msra.mxu0 0.0
    %1921 = vmatprep.subr.mxu0 0.0
    %1922 = vmatpush1.xpose.msra.mxu0 0.0
    %1923 = vmatprep.subr.mxu0 0.0
    %1924 = vmatpush1.xpose.msra.mxu0 0.0
    %1925 = vmatprep.subr.mxu0 0.0
    %1926 = vmatpush1.xpose.msra.mxu0 0.0
    %1927 = vmatprep.subr.mxu0 0.0
    %1928 = vmatpush1.xpose.msra.mxu0 0.0
    %1929 = vmatprep.subr.mxu0 0.0
    %1930 = vmatpush1.xpose.msra.mxu0 0.0
    %1931 = vmatprep.subr.mxu0 0.0
    %1932 = vmatpush1.xpose.msra.mxu0 0.0
    %1933 = vmatprep.subr.mxu0 0.0
    %1934 = vmatpush1.xpose.msra.mxu0 0.0
    %1935 = vmatprep.subr.mxu0 0.0
    %1936 = vmatpush1.xpose.msra.mxu0 0.0
    %1937 = vmatprep.subr.mxu0 0.0
    %1938 = vmatpush1.xpose.msra.mxu0 0.0
    %1939 = vmatprep.subr.mxu0 0.0
    %1940 = vmatpush1.xpose.msra.mxu0 0.0
    %1941 = vmatprep.subr.mxu0 0.0
    %1942 = vmatpush1.xpose.msra.mxu0 0.0
    %1943 = vmatprep.subr.mxu0 0.0
    %1944 = vmatpush1.xpose.msra.mxu0 0.0
    %1945 = vmatprep.subr.mxu0 0.0
    %1946 = vmatpush1.xpose.msra.mxu0 0.0
    %1947 = vmatprep.subr.mxu0 0.0
    %1948 = vmatpush1.xpose.msra.mxu0 0.0
    %1949 = vmatprep.subr.mxu0 0.0
    %1950 = vmatpush1.xpose.msra.mxu0 0.0
    %1951 = vmatprep.subr.mxu0 0.0
    %1952 = vmatpush1.xpose.msra.mxu0 0.0
    %1953 = vmatprep.subr.mxu0 0.0
    %1954 = vmatpush1.xpose.msra.mxu0 0.0
    %1955 = vmatprep.mubr.f32.mxu0 0.0
    %1956 = vmatmul.mubr.f32.gmra.mrb[0].mxu0 %v1886
    %v1957 = vpop.f32.mrb[0].mxu0
    %v1958 = vadd.f32 0.0, %v1957
    %v1959 = vpop.f32.mrb[0].mxu0
    %1960 = vdwg.mxu0
    %v1961 = vmul.f32 %v1882, 0.25
    %v1962 = vmul.f32 %v1958, 0.25
    %v1963 = vadd.f32 %v1961, %v560
    %v1964 = vadd.f32 %v1962, %v564
    %v1965 = vsel %vm569, %v1963, -inf
    %1966 = vmax.xlane.f32.xlu0 %v1965
    %v1967 = vpop.xlane.xlu0 %1966
    %v1968 = vsel %vm569, %v1964, -inf
    %1969 = vmax.xlane.f32.xlu0 %v1968
    %v1970 = vpop.xlane.xlu0 %1969
    %v1971 = vsub.f32 %v1963, %v1967
    %v1972 = vsub.f32 %v1964, %v1970
    %v1973 = vmul.f32 %v1971, 1.442695
    %v1974 = vpow.pop %v1973
    %v1975 = vmul.f32 %v1972, 1.442695
    %v1976 = vpow.pop %v1975
    %v1977 = vsel %vm569, %v1974, 0.0
    %1978 = vadd.xlane.f32.xlu0 %v1977
    %v1979 = vpop.xlane.xlu0 %1978
    %v1980 = vsel %vm569, %v1976, 0.0
    %1981 = vadd.xlane.f32.xlu0 %v1980
    %v1982 = vpop.xlane.xlu0 %1981
    %v1983 = vrcp.pop %v1979
    %v1984 = vmul.f32 %v1974, %v1983
    %v1985 = vrcp.pop %v1982
    %v1986 = vmul.f32 %v1976, %v1985
    %v1988 = vsel %vm569, %v1984, 0
    %1990 = vmatprep.subr.mxu0 0.0
    %1991 = vmatpush1.msra.mxu0 %v1803
    %1992 = vmatprep.subr.mxu0 0.0
    %1993 = vmatpush1.msra.mxu0 0.0
    %1994 = vmatprep.subr.mxu0 0.0
    %1995 = vmatpush1.msra.mxu0 0.0
    %1996 = vmatprep.subr.mxu0 0.0
    %1997 = vmatpush1.msra.mxu0 0.0
    %1998 = vmatprep.subr.mxu0 0.0
    %1999 = vmatpush1.msra.mxu0 0.0
    %2000 = vmatprep.subr.mxu0 0.0
    %2001 = vmatpush1.msra.mxu0 0.0
    %2002 = vmatprep.subr.mxu0 0.0
    %2003 = vmatpush1.msra.mxu0 0.0
    %2004 = vmatprep.subr.mxu0 0.0
    %2005 = vmatpush1.msra.mxu0 0.0
    %2006 = vmatprep.subr.mxu0 0.0
    %2007 = vmatpush1.msra.mxu0 0.0
    %2008 = vmatprep.subr.mxu0 0.0
    %2009 = vmatpush1.msra.mxu0 0.0
    %2010 = vmatprep.subr.mxu0 0.0
    %2011 = vmatpush1.msra.mxu0 0.0
    %2012 = vmatprep.subr.mxu0 0.0
    %2013 = vmatpush1.msra.mxu0 0.0
    %2014 = vmatprep.subr.mxu0 0.0
    %2015 = vmatpush1.msra.mxu0 0.0
    %2016 = vmatprep.subr.mxu0 0.0
    %2017 = vmatpush1.msra.mxu0 0.0
    %2018 = vmatprep.subr.mxu0 0.0
    %2019 = vmatpush1.msra.mxu0 0.0
    %2020 = vmatprep.subr.mxu0 0.0
    %2021 = vmatpush1.msra.mxu0 0.0
    %2022 = vmatprep.subr.mxu0 0.0
    %2023 = vmatpush1.msra.mxu0 0.0
    %2024 = vmatprep.subr.mxu0 0.0
    %2025 = vmatpush1.msra.mxu0 0.0
    %2026 = vmatprep.subr.mxu0 0.0
    %2027 = vmatpush1.msra.mxu0 0.0
    %2028 = vmatprep.subr.mxu0 0.0
    %2029 = vmatpush1.msra.mxu0 0.0
    %2030 = vmatprep.subr.mxu0 0.0
    %2031 = vmatpush1.msra.mxu0 0.0
    %2032 = vmatprep.subr.mxu0 0.0
    %2033 = vmatpush1.msra.mxu0 0.0
    %2034 = vmatprep.subr.mxu0 0.0
    %2035 = vmatpush1.msra.mxu0 0.0
    %2036 = vmatprep.subr.mxu0 0.0
    %2037 = vmatpush1.msra.mxu0 0.0
    %2038 = vmatprep.subr.mxu0 0.0
    %2039 = vmatpush1.msra.mxu0 0.0
    %2040 = vmatprep.subr.mxu0 0.0
    %2041 = vmatpush1.msra.mxu0 0.0
    %2042 = vmatprep.subr.mxu0 0.0
    %2043 = vmatpush1.msra.mxu0 0.0
    %2044 = vmatprep.subr.mxu0 0.0
    %2045 = vmatpush1.msra.mxu0 0.0
    %2046 = vmatprep.subr.mxu0 0.0
    %2047 = vmatpush1.msra.mxu0 0.0
    %2048 = vmatprep.subr.mxu0 0.0
    %2049 = vmatpush1.msra.mxu0 0.0
    %2050 = vmatprep.subr.mxu0 0.0
    %2051 = vmatpush1.msra.mxu0 0.0
    %2052 = vmatprep.subr.mxu0 0.0
    %2053 = vmatpush1.msra.mxu0 0.0
    %2054 = vmatprep.mubr.f32.mxu0 0.0
    %2055 = vmatmul.mubr.f32.gmra.mrb[0].mxu0 %v1988
    %v2056 = vpop.f32.mrb[0].mxu0
    %v2057 = vadd.f32 0.0, %v2056
    %v2058 = vpop.f32.mrb[0].mxu0
    %2059 = vdwg.mxu0
    %v2061 = vsel %vm569, %v1986, 0
    %2063 = vmatprep.subr.mxu0 0.0
    %2064 = vmatpush1.msra.mxu0 %v1806
    %2065 = vmatprep.subr.mxu0 0.0
    %2066 = vmatpush1.msra.mxu0 0.0
    %2067 = vmatprep.subr.mxu0 0.0
    %2068 = vmatpush1.msra.mxu0 0.0
    %2069 = vmatprep.subr.mxu0 0.0
    %2070 = vmatpush1.msra.mxu0 0.0
    %2071 = vmatprep.subr.mxu0 0.0
    %2072 = vmatpush1.msra.mxu0 0.0
    %2073 = vmatprep.subr.mxu0 0.0
    %2074 = vmatpush1.msra.mxu0 0.0
    %2075 = vmatprep.subr.mxu0 0.0
    %2076 = vmatpush1.msra.mxu0 0.0
    %2077 = vmatprep.subr.mxu0 0.0
    %2078 = vmatpush1.msra.mxu0 0.0
    %2079 = vmatprep.subr.mxu0 0.0
    %2080 = vmatpush1.msra.mxu0 0.0
    %2081 = vmatprep.subr.mxu0 0.0
    %2082 = vmatpush1.msra.mxu0 0.0
    %2083 = vmatprep.subr.mxu0 0.0
    %2084 = vmatpush1.msra.mxu0 0.0
    %2085 = vmatprep.subr.mxu0 0.0
    %2086 = vmatpush1.msra.mxu0 0.0
    %2087 = vmatprep.subr.mxu0 0.0
    %2088 = vmatpush1.msra.mxu0 0.0
    %2089 = vmatprep.subr.mxu0 0.0
    %2090 = vmatpush1.msra.mxu0 0.0
    %2091 = vmatprep.subr.mxu0 0.0
    %2092 = vmatpush1.msra.mxu0 0.0
    %2093 = vmatprep.subr.mxu0 0.0
    %2094 = vmatpush1.msra.mxu0 0.0
    %2095 = vmatprep.subr.mxu0 0.0
    %2096 = vmatpush1.msra.mxu0 0.0
    %2097 = vmatprep.subr.mxu0 0.0
    %2098 = vmatpush1.msra.mxu0 0.0
    %2099 = vmatprep.subr.mxu0 0.0
    %2100 = vmatpush1.msra.mxu0 0.0
    %2101 = vmatprep.subr.mxu0 0.0
    %2102 = vmatpush1.msra.mxu0 0.0
    %2103 = vmatprep.subr.mxu0 0.0
    %2104 = vmatpush1.msra.mxu0 0.0
    %2105 = vmatprep.subr.mxu0 0.0
    %2106 = vmatpush1.msra.mxu0 0.0
    %2107 = vmatprep.subr.mxu0 0.0
    %2108 = vmatpush1.msra.mxu0 0.0
    %2109 = vmatprep.subr.mxu0 0.0
    %2110 = vmatpush1.msra.mxu0 0.0
    %2111 = vmatprep.subr.mxu0 0.0
    %2112 = vmatpush1.msra.mxu0 0.0
    %2113 = vmatprep.subr.mxu0 0.0
    %2114 = vmatpush1.msra.mxu0 0.0
    %2115 = vmatprep.subr.mxu0 0.0
    %2116 = vmatpush1.msra.mxu0 0.0
    %2117 = vmatprep.subr.mxu0 0.0
    %2118 = vmatpush1.msra.mxu0 0.0
    %2119 = vmatprep.subr.mxu0 0.0
    %2120 = vmatpush1.msra.mxu0 0.0
    %2121 = vmatprep.subr.mxu0 0.0
    %2122 = vmatpush1.msra.mxu0 0.0
    %2123 = vmatprep.subr.mxu0 0.0
    %2124 = vmatpush1.msra.mxu0 0.0
    %2125 = vmatprep.subr.mxu0 0.0
    %2126 = vmatpush1.msra.mxu0 0.0
    %2127 = vmatprep.mubr.f32.mxu0 0.0
    %2128 = vmatmul.mubr.f32.gmra.mrb[0].mxu0 %v2061
    %v2129 = vpop.f32.mrb[0].mxu0
    %v2130 = vadd.f32 0.0, %v2129
    %v2131 = vpop.f32.mrb[0].mxu0
    %2132 = vdwg.mxu0
    %v2133 = vpack.c.bf16 %v2130, %v2057
    %s2134 = scalar_lea.vmem %s5, 16
    %v2135 = vld [vmem:[%s2134] sm:$0xf]
    %v2136 = vld [vmem:[%s2134 + $0x4] sm:$0xf]
    %s2137 = scalar_lea.vmem %s4, 112
    %v2138 = vld [vmem:[%s2137] sm:$0xf]
    %v2139 = vld [vmem:[%s2137 + $0x4] sm:$0xf]
    %v2140 = vld [vmem:[%s2137 + $0x8] sm:$0xf]
    %v2141 = vld [vmem:[%s2137 + $0xc] sm:$0xf]
    %v2142 = vld [vmem:[%s3 + $0x10] sm:$0x1]
    %v2143 = vlaneseq
    %v2144 = vshrl.u32 %v2143, 7
    %v2145 = vsub.s32 0, %v2144
    %v2146 = vrot.slane %v2142, %v2145
    %v2151 = vunpack.c.l.b16 %v2138
    %v2152 = vunpack.c.l.b16 %v2139
    %v2153 = vunpack.c.l.b16 %v2140
    %v2154 = vunpack.c.l.b16 %v2141
    %v2155 = vpack.c.b16 %v2152, %v2151
    %v2156 = vpack.c.b16 %v2154, %v2153
    %2159 = vmatprep.subr.bf16.mxu0 0
    %2160 = vmatpush1.bf16.msra.mxu0 %v2155
    %2161 = vmatprep.subr.bf16.mxu0 0
    %2162 = vmatpush1.bf16.msra.mxu0 %v2156
    %2163 = vmatprep.subr.bf16.mxu0 0
    %2164 = vmatpush1.bf16.msra.mxu0 0
    %2165 = vmatprep.subr.bf16.mxu0 0
    %2166 = vmatpush1.bf16.msra.mxu0 0
    %2167 = vmatprep.subr.bf16.mxu0 0
    %2168 = vmatpush1.bf16.msra.mxu0 0
    %2169 = vmatprep.subr.bf16.mxu0 0
    %2170 = vmatpush1.bf16.msra.mxu0 0
    %2171 = vmatprep.subr.bf16.mxu0 0
    %2172 = vmatpush1.bf16.msra.mxu0 0
    %2173 = vmatprep.subr.bf16.mxu0 0
    %2174 = vmatpush1.bf16.msra.mxu0 0
    %2175 = vmatprep.subr.bf16.mxu0 0
    %2176 = vmatpush1.bf16.msra.mxu0 0
    %2177 = vmatprep.subr.bf16.mxu0 0
    %2178 = vmatpush1.bf16.msra.mxu0 0
    %2179 = vmatprep.subr.bf16.mxu0 0
    %2180 = vmatpush1.bf16.msra.mxu0 0
    %2181 = vmatprep.subr.bf16.mxu0 0
    %2182 = vmatpush1.bf16.msra.mxu0 0
    %2183 = vmatprep.subr.bf16.mxu0 0
    %2184 = vmatpush1.bf16.msra.mxu0 0
    %2185 = vmatprep.subr.bf16.mxu0 0
    %2186 = vmatpush1.bf16.msra.mxu0 0
    %2187 = vmatprep.subr.bf16.mxu0 0
    %2188 = vmatpush1.bf16.msra.mxu0 0
    %2189 = vmatprep.subr.bf16.mxu0 0
    %2190 = vmatpush1.bf16.msra.mxu0 0
    %2191 = vmatprep.mubr.bf16.mxu0 0
    %2192 = vmatmul.mubr.bf16.gmra.mrb[0].mxu0 %v1640
    %v2193 = vpop.f32.mrb[0].mxu0
    %v2194 = vadd.f32 %v2146, %v2193
    %v2195 = vpop.f32.mrb[0].mxu0
    %v2196 = vpop.f32.mrb[0].mxu0
    %v2197 = vadd.f32 %v2146, %v2196
    %v2198 = vpop.f32.mrb[0].mxu0
    %2199 = vdwg.mxu0
    %s2200 = scalar_lea.vmem %s4, 144
    %v2201 = vld [vmem:[%s2200] sm:$0xf]
    %v2202 = vld [vmem:[%s2200 + $0x4] sm:$0xf]
    %v2203 = vld [vmem:[%s2200 + $0x8] sm:$0xf]
    %v2204 = vld [vmem:[%s2200 + $0xc] sm:$0xf]
    %v2205 = vld [vmem:[%s3 + $0x12] sm:$0x1]
    %v2206 = vlaneseq
    %v2207 = vshrl.u32 %v2206, 7
    %v2208 = vsub.s32 0, %v2207
    %v2209 = vrot.slane %v2205, %v2208
    %v2214 = vunpack.c.l.b16 %v2201
    %v2215 = vunpack.c.l.b16 %v2202
    %v2216 = vunpack.c.l.b16 %v2203
    %v2217 = vunpack.c.l.b16 %v2204
    %v2218 = vpack.c.b16 %v2215, %v2214
    %v2219 = vpack.c.b16 %v2217, %v2216
    %2222 = vmatprep.subr.bf16.mxu0 0
    %2223 = vmatpush1.bf16.msra.mxu0 %v2218
    %2224 = vmatprep.subr.bf16.mxu0 0
    %2225 = vmatpush1.bf16.msra.mxu0 %v2219
    %2226 = vmatprep.subr.bf16.mxu0 0
    %2227 = vmatpush1.bf16.msra.mxu0 0
    %2228 = vmatprep.subr.bf16.mxu0 0
    %2229 = vmatpush1.bf16.msra.mxu0 0
    %2230 = vmatprep.subr.bf16.mxu0 0
    %2231 = vmatpush1.bf16.msra.mxu0 0
    %2232 = vmatprep.subr.bf16.mxu0 0
    %2233 = vmatpush1.bf16.msra.mxu0 0
    %2234 = vmatprep.subr.bf16.mxu0 0
    %2235 = vmatpush1.bf16.msra.mxu0 0
    %2236 = vmatprep.subr.bf16.mxu0 0
    %2237 = vmatpush1.bf16.msra.mxu0 0
    %2238 = vmatprep.subr.bf16.mxu0 0
    %2239 = vmatpush1.bf16.msra.mxu0 0
    %2240 = vmatprep.subr.bf16.mxu0 0
    %2241 = vmatpush1.bf16.msra.mxu0 0
    %2242 = vmatprep.subr.bf16.mxu0 0
    %2243 = vmatpush1.bf16.msra.mxu0 0
    %2244 = vmatprep.subr.bf16.mxu0 0
    %2245 = vmatpush1.bf16.msra.mxu0 0
    %2246 = vmatprep.subr.bf16.mxu0 0
    %2247 = vmatpush1.bf16.msra.mxu0 0
    %2248 = vmatprep.subr.bf16.mxu0 0
    %2249 = vmatpush1.bf16.msra.mxu0 0
    %2250 = vmatprep.subr.bf16.mxu0 0
    %2251 = vmatpush1.bf16.msra.mxu0 0
    %2252 = vmatprep.subr.bf16.mxu0 0
    %2253 = vmatpush1.bf16.msra.mxu0 0
    %2254 = vmatprep.mubr.bf16.mxu0 0
    %2255 = vmatmul.mubr.bf16.gmra.mrb[0].mxu0 %v1640
    %v2256 = vpop.f32.mrb[0].mxu0
    %v2257 = vadd.f32 %v2209, %v2256
    %v2258 = vpop.f32.mrb[0].mxu0
    %v2259 = vpop.f32.mrb[0].mxu0
    %v2260 = vadd.f32 %v2209, %v2259
    %v2261 = vpop.f32.mrb[0].mxu0
    %2262 = vdwg.mxu0
    %s2263 = scalar_lea.vmem %s4, 176
    %v2264 = vld [vmem:[%s2263] sm:$0xf]
    %v2265 = vld [vmem:[%s2263 + $0x4] sm:$0xf]
    %v2266 = vld [vmem:[%s2263 + $0x8] sm:$0xf]
    %v2267 = vld [vmem:[%s2263 + $0xc] sm:$0xf]
    %v2268 = vld [vmem:[%s3 + $0x14] sm:$0x1]
    %v2269 = vlaneseq
    %v2270 = vshrl.u32 %v2269, 7
    %v2271 = vsub.s32 0, %v2270
    %v2272 = vrot.slane %v2268, %v2271
    %v2277 = vunpack.c.l.b16 %v2264
    %v2278 = vunpack.c.l.b16 %v2265
    %v2279 = vunpack.c.l.b16 %v2266
    %v2280 = vunpack.c.l.b16 %v2267
    %v2281 = vpack.c.b16 %v2278, %v2277
    %v2282 = vpack.c.b16 %v2280, %v2279
    %2285 = vmatprep.subr.bf16.mxu0 0
    %2286 = vmatpush1.bf16.msra.mxu0 %v2281
    %2287 = vmatprep.subr.bf16.mxu0 0
    %2288 = vmatpush1.bf16.msra.mxu0 %v2282
    %2289 = vmatprep.subr.bf16.mxu0 0
    %2290 = vmatpush1.bf16.msra.mxu0 0
    %2291 = vmatprep.subr.bf16.mxu0 0
    %2292 = vmatpush1.bf16.msra.mxu0 0
    %2293 = vmatprep.subr.bf16.mxu0 0
    %2294 = vmatpush1.bf16.msra.mxu0 0
    %2295 = vmatprep.subr.bf16.mxu0 0
    %2296 = vmatpush1.bf16.msra.mxu0 0
    %2297 = vmatprep.subr.bf16.mxu0 0
    %2298 = vmatpush1.bf16.msra.mxu0 0
    %2299 = vmatprep.subr.bf16.mxu0 0
    %2300 = vmatpush1.bf16.msra.mxu0 0
    %2301 = vmatprep.subr.bf16.mxu0 0
    %2302 = vmatpush1.bf16.msra.mxu0 0
    %2303 = vmatprep.subr.bf16.mxu0 0
    %2304 = vmatpush1.bf16.msra.mxu0 0
    %2305 = vmatprep.subr.bf16.mxu0 0
    %2306 = vmatpush1.bf16.msra.mxu0 0
    %2307 = vmatprep.subr.bf16.mxu0 0
    %2308 = vmatpush1.bf16.msra.mxu0 0
    %2309 = vmatprep.subr.bf16.mxu0 0
    %2310 = vmatpush1.bf16.msra.mxu0 0
    %2311 = vmatprep.subr.bf16.mxu0 0
    %2312 = vmatpush1.bf16.msra.mxu0 0
    %2313 = vmatprep.subr.bf16.mxu0 0
    %2314 = vmatpush1.bf16.msra.mxu0 0
    %2315 = vmatprep.subr.bf16.mxu0 0
    %2316 = vmatpush1.bf16.msra.mxu0 0
    %2317 = vmatprep.mubr.bf16.mxu0 0
    %2318 = vmatmul.mubr.bf16.gmra.mrb[0].mxu0 %v1640
    %v2319 = vpop.f32.mrb[0].mxu0
    %v2320 = vadd.f32 %v2272, %v2319
    %v2321 = vpop.f32.mrb[0].mxu0
    %v2322 = vpop.f32.mrb[0].mxu0
    %v2323 = vadd.f32 %v2272, %v2322
    %v2324 = vpop.f32.mrb[0].mxu0
    %2325 = vdwg.mxu0
    %v2327 = vsel %vm400, %v2194, 0
    %v2330 = vsel %vm400, %v2257, 0
    %2332 = vmatprep.subr.mxu0 0.0
    %2333 = vmatpush1.xpose.msra.mxu0 %v2330
    %2334 = vmatprep.subr.mxu0 0.0
    %2335 = vmatpush1.xpose.msra.mxu0 0.0
    %2336 = vmatprep.subr.mxu0 0.0
    %2337 = vmatpush1.xpose.msra.mxu0 0.0
    %2338 = vmatprep.subr.mxu0 0.0
    %2339 = vmatpush1.xpose.msra.mxu0 0.0
    %2340 = vmatprep.subr.mxu0 0.0
    %2341 = vmatpush1.xpose.msra.mxu0 0.0
    %2342 = vmatprep.subr.mxu0 0.0
    %2343 = vmatpush1.xpose.msra.mxu0 0.0
    %2344 = vmatprep.subr.mxu0 0.0
    %2345 = vmatpush1.xpose.msra.mxu0 0.0
    %2346 = vmatprep.subr.mxu0 0.0
    %2347 = vmatpush1.xpose.msra.mxu0 0.0
    %2348 = vmatprep.subr.mxu0 0.0
    %2349 = vmatpush1.xpose.msra.mxu0 0.0
    %2350 = vmatprep.subr.mxu0 0.0
    %2351 = vmatpush1.xpose.msra.mxu0 0.0
    %2352 = vmatprep.subr.mxu0 0.0
    %2353 = vmatpush1.xpose.msra.mxu0 0.0
    %2354 = vmatprep.subr.mxu0 0.0
    %2355 = vmatpush1.xpose.msra.mxu0 0.0
    %2356 = vmatprep.subr.mxu0 0.0
    %2357 = vmatpush1.xpose.msra.mxu0 0.0
    %2358 = vmatprep.subr.mxu0 0.0
    %2359 = vmatpush1.xpose.msra.mxu0 0.0
    %2360 = vmatprep.subr.mxu0 0.0
    %2361 = vmatpush1.xpose.msra.mxu0 0.0
    %2362 = vmatprep.subr.mxu0 0.0
    %2363 = vmatpush1.xpose.msra.mxu0 0.0
    %2364 = vmatprep.subr.mxu0 0.0
    %2365 = vmatpush1.xpose.msra.mxu0 0.0
    %2366 = vmatprep.subr.mxu0 0.0
    %2367 = vmatpush1.xpose.msra.mxu0 0.0
    %2368 = vmatprep.subr.mxu0 0.0
    %2369 = vmatpush1.xpose.msra.mxu0 0.0
    %2370 = vmatprep.subr.mxu0 0.0
    %2371 = vmatpush1.xpose.msra.mxu0 0.0
    %2372 = vmatprep.subr.mxu0 0.0
    %2373 = vmatpush1.xpose.msra.mxu0 0.0
    %2374 = vmatprep.subr.mxu0 0.0
    %2375 = vmatpush1.xpose.msra.mxu0 0.0
    %2376 = vmatprep.subr.mxu0 0.0
    %2377 = vmatpush1.xpose.msra.mxu0 0.0
    %2378 = vmatprep.subr.mxu0 0.0
    %2379 = vmatpush1.xpose.msra.mxu0 0.0
    %2380 = vmatprep.subr.mxu0 0.0
    %2381 = vmatpush1.xpose.msra.mxu0 0.0
    %2382 = vmatprep.subr.mxu0 0.0
    %2383 = vmatpush1.xpose.msra.mxu0 0.0
    %2384 = vmatprep.subr.mxu0 0.0
    %2385 = vmatpush1.xpose.msra.mxu0 0.0
    %2386 = vmatprep.subr.mxu0 0.0
    %2387 = vmatpush1.xpose.msra.mxu0 0.0
    %2388 = vmatprep.subr.mxu0 0.0
    %2389 = vmatpush1.xpose.msra.mxu0 0.0
    %2390 = vmatprep.subr.mxu0 0.0
    %2391 = vmatpush1.xpose.msra.mxu0 0.0
    %2392 = vmatprep.subr.mxu0 0.0
    %2393 = vmatpush1.xpose.msra.mxu0 0.0
    %2394 = vmatprep.subr.mxu0 0.0
    %2395 = vmatpush1.xpose.msra.mxu0 0.0
    %2396 = vmatprep.mubr.f32.mxu0 0.0
    %2397 = vmatmul.mubr.f32.gmra.mrb[0].mxu0 %v2327
    %v2398 = vpop.f32.mrb[0].mxu0
    %v2399 = vadd.f32 0.0, %v2398
    %v2400 = vpop.f32.mrb[0].mxu0
    %2401 = vdwg.mxu0
    %v2403 = vsel %vm400, %v2197, 0
    %v2406 = vsel %vm400, %v2260, 0
    %2408 = vmatprep.subr.mxu0 0.0
    %2409 = vmatpush1.xpose.msra.mxu0 %v2406
    %2410 = vmatprep.subr.mxu0 0.0
    %2411 = vmatpush1.xpose.msra.mxu0 0.0
    %2412 = vmatprep.subr.mxu0 0.0
    %2413 = vmatpush1.xpose.msra.mxu0 0.0
    %2414 = vmatprep.subr.mxu0 0.0
    %2415 = vmatpush1.xpose.msra.mxu0 0.0
    %2416 = vmatprep.subr.mxu0 0.0
    %2417 = vmatpush1.xpose.msra.mxu0 0.0
    %2418 = vmatprep.subr.mxu0 0.0
    %2419 = vmatpush1.xpose.msra.mxu0 0.0
    %2420 = vmatprep.subr.mxu0 0.0
    %2421 = vmatpush1.xpose.msra.mxu0 0.0
    %2422 = vmatprep.subr.mxu0 0.0
    %2423 = vmatpush1.xpose.msra.mxu0 0.0
    %2424 = vmatprep.subr.mxu0 0.0
    %2425 = vmatpush1.xpose.msra.mxu0 0.0
    %2426 = vmatprep.subr.mxu0 0.0
    %2427 = vmatpush1.xpose.msra.mxu0 0.0
    %2428 = vmatprep.subr.mxu0 0.0
    %2429 = vmatpush1.xpose.msra.mxu0 0.0
    %2430 = vmatprep.subr.mxu0 0.0
    %2431 = vmatpush1.xpose.msra.mxu0 0.0
    %2432 = vmatprep.subr.mxu0 0.0
    %2433 = vmatpush1.xpose.msra.mxu0 0.0
    %2434 = vmatprep.subr.mxu0 0.0
    %2435 = vmatpush1.xpose.msra.mxu0 0.0
    %2436 = vmatprep.subr.mxu0 0.0
    %2437 = vmatpush1.xpose.msra.mxu0 0.0
    %2438 = vmatprep.subr.mxu0 0.0
    %2439 = vmatpush1.xpose.msra.mxu0 0.0
    %2440 = vmatprep.subr.mxu0 0.0
    %2441 = vmatpush1.xpose.msra.mxu0 0.0
    %2442 = vmatprep.subr.mxu0 0.0
    %2443 = vmatpush1.xpose.msra.mxu0 0.0
    %2444 = vmatprep.subr.mxu0 0.0
    %2445 = vmatpush1.xpose.msra.mxu0 0.0
    %2446 = vmatprep.subr.mxu0 0.0
    %2447 = vmatpush1.xpose.msra.mxu0 0.0
    %2448 = vmatprep.subr.mxu0 0.0
    %2449 = vmatpush1.xpose.msra.mxu0 0.0
    %2450 = vmatprep.subr.mxu0 0.0
    %2451 = vmatpush1.xpose.msra.mxu0 0.0
    %2452 = vmatprep.subr.mxu0 0.0
    %2453 = vmatpush1.xpose.msra.mxu0 0.0
    %2454 = vmatprep.subr.mxu0 0.0
    %2455 = vmatpush1.xpose.msra.mxu0 0.0
    %2456 = vmatprep.subr.mxu0 0.0
    %2457 = vmatpush1.xpose.msra.mxu0 0.0
    %2458 = vmatprep.subr.mxu0 0.0
    %2459 = vmatpush1.xpose.msra.mxu0 0.0
    %2460 = vmatprep.subr.mxu0 0.0
    %2461 = vmatpush1.xpose.msra.mxu0 0.0
    %2462 = vmatprep.subr.mxu0 0.0
    %2463 = vmatpush1.xpose.msra.mxu0 0.0
    %2464 = vmatprep.subr.mxu0 0.0
    %2465 = vmatpush1.xpose.msra.mxu0 0.0
    %2466 = vmatprep.subr.mxu0 0.0
    %2467 = vmatpush1.xpose.msra.mxu0 0.0
    %2468 = vmatprep.subr.mxu0 0.0
    %2469 = vmatpush1.xpose.msra.mxu0 0.0
    %2470 = vmatprep.subr.mxu0 0.0
    %2471 = vmatpush1.xpose.msra.mxu0 0.0
    %2472 = vmatprep.mubr.f32.mxu0 0.0
    %2473 = vmatmul.mubr.f32.gmra.mrb[0].mxu0 %v2403
    %v2474 = vpop.f32.mrb[0].mxu0
    %v2475 = vadd.f32 0.0, %v2474
    %v2476 = vpop.f32.mrb[0].mxu0
    %2477 = vdwg.mxu0
    %v2478 = vmul.f32 %v2399, 0.25
    %v2479 = vmul.f32 %v2475, 0.25
    %v2480 = vadd.f32 %v2478, %v560
    %v2481 = vadd.f32 %v2479, %v564
    %v2482 = vsel %vm569, %v2480, -inf
    %2483 = vmax.xlane.f32.xlu0 %v2482
    %v2484 = vpop.xlane.xlu0 %2483
    %v2485 = vsel %vm569, %v2481, -inf
    %2486 = vmax.xlane.f32.xlu0 %v2485
    %v2487 = vpop.xlane.xlu0 %2486
    %v2488 = vsub.f32 %v2480, %v2484
    %v2489 = vsub.f32 %v2481, %v2487
    %v2490 = vmul.f32 %v2488, 1.442695
    %v2491 = vpow.pop %v2490
    %v2492 = vmul.f32 %v2489, 1.442695
    %v2493 = vpow.pop %v2492
    %v2494 = vsel %vm569, %v2491, 0.0
    %2495 = vadd.xlane.f32.xlu0 %v2494
    %v2496 = vpop.xlane.xlu0 %2495
    %v2497 = vsel %vm569, %v2493, 0.0
    %2498 = vadd.xlane.f32.xlu0 %v2497
    %v2499 = vpop.xlane.xlu0 %2498
    %v2500 = vrcp.pop %v2496
    %v2501 = vmul.f32 %v2491, %v2500
    %v2502 = vrcp.pop %v2499
    %v2503 = vmul.f32 %v2493, %v2502
    %v2505 = vsel %vm569, %v2501, 0
    %2507 = vmatprep.subr.mxu0 0.0
    %2508 = vmatpush1.msra.mxu0 %v2320
    %2509 = vmatprep.subr.mxu0 0.0
    %2510 = vmatpush1.msra.mxu0 0.0
    %2511 = vmatprep.subr.mxu0 0.0
    %2512 = vmatpush1.msra.mxu0 0.0
    %2513 = vmatprep.subr.mxu0 0.0
    %2514 = vmatpush1.msra.mxu0 0.0
    %2515 = vmatprep.subr.mxu0 0.0
    %2516 = vmatpush1.msra.mxu0 0.0
    %2517 = vmatprep.subr.mxu0 0.0
    %2518 = vmatpush1.msra.mxu0 0.0
    %2519 = vmatprep.subr.mxu0 0.0
    %2520 = vmatpush1.msra.mxu0 0.0
    %2521 = vmatprep.subr.mxu0 0.0
    %2522 = vmatpush1.msra.mxu0 0.0
    %2523 = vmatprep.subr.mxu0 0.0
    %2524 = vmatpush1.msra.mxu0 0.0
    %2525 = vmatprep.subr.mxu0 0.0
    %2526 = vmatpush1.msra.mxu0 0.0
    %2527 = vmatprep.subr.mxu0 0.0
    %2528 = vmatpush1.msra.mxu0 0.0
    %2529 = vmatprep.subr.mxu0 0.0
    %2530 = vmatpush1.msra.mxu0 0.0
    %2531 = vmatprep.subr.mxu0 0.0
    %2532 = vmatpush1.msra.mxu0 0.0
    %2533 = vmatprep.subr.mxu0 0.0
    %2534 = vmatpush1.msra.mxu0 0.0
    %2535 = vmatprep.subr.mxu0 0.0
    %2536 = vmatpush1.msra.mxu0 0.0
    %2537 = vmatprep.subr.mxu0 0.0
    %2538 = vmatpush1.msra.mxu0 0.0
    %2539 = vmatprep.subr.mxu0 0.0
    %2540 = vmatpush1.msra.mxu0 0.0
    %2541 = vmatprep.subr.mxu0 0.0
    %2542 = vmatpush1.msra.mxu0 0.0
    %2543 = vmatprep.subr.mxu0 0.0
    %2544 = vmatpush1.msra.mxu0 0.0
    %2545 = vmatprep.subr.mxu0 0.0
    %2546 = vmatpush1.msra.mxu0 0.0
    %2547 = vmatprep.subr.mxu0 0.0
    %2548 = vmatpush1.msra.mxu0 0.0
    %2549 = vmatprep.subr.mxu0 0.0
    %2550 = vmatpush1.msra.mxu0 0.0
    %2551 = vmatprep.subr.mxu0 0.0
    %2552 = vmatpush1.msra.mxu0 0.0
    %2553 = vmatprep.subr.mxu0 0.0
    %2554 = vmatpush1.msra.mxu0 0.0
    %2555 = vmatprep.subr.mxu0 0.0
    %2556 = vmatpush1.msra.mxu0 0.0
    %2557 = vmatprep.subr.mxu0 0.0
    %2558 = vmatpush1.msra.mxu0 0.0
    %2559 = vmatprep.subr.mxu0 0.0
    %2560 = vmatpush1.msra.mxu0 0.0
    %2561 = vmatprep.subr.mxu0 0.0
    %2562 = vmatpush1.msra.mxu0 0.0
    %2563 = vmatprep.subr.mxu0 0.0
    %2564 = vmatpush1.msra.mxu0 0.0
    %2565 = vmatprep.subr.mxu0 0.0
    %2566 = vmatpush1.msra.mxu0 0.0
    %2567 = vmatprep.subr.mxu0 0.0
    %2568 = vmatpush1.msra.mxu0 0.0
    %2569 = vmatprep.subr.mxu0 0.0
    %2570 = vmatpush1.msra.mxu0 0.0
    %2571 = vmatprep.mubr.f32.mxu0 0.0
    %2572 = vmatmul.mubr.f32.gmra.mrb[0].mxu0 %v2505
    %v2573 = vpop.f32.mrb[0].mxu0
    %v2574 = vadd.f32 0.0, %v2573
    %v2575 = vpop.f32.mrb[0].mxu0
    %2576 = vdwg.mxu0
    %v2578 = vsel %vm569, %v2503, 0
    %2580 = vmatprep.subr.mxu0 0.0
    %2581 = vmatpush1.msra.mxu0 %v2323
    %2582 = vmatprep.subr.mxu0 0.0
    %2583 = vmatpush1.msra.mxu0 0.0
    %2584 = vmatprep.subr.mxu0 0.0
    %2585 = vmatpush1.msra.mxu0 0.0
    %2586 = vmatprep.subr.mxu0 0.0
    %2587 = vmatpush1.msra.mxu0 0.0
    %2588 = vmatprep.subr.mxu0 0.0
    %2589 = vmatpush1.msra.mxu0 0.0
    %2590 = vmatprep.subr.mxu0 0.0
    %2591 = vmatpush1.msra.mxu0 0.0
    %2592 = vmatprep.subr.mxu0 0.0
    %2593 = vmatpush1.msra.mxu0 0.0
    %2594 = vmatprep.subr.mxu0 0.0
    %2595 = vmatpush1.msra.mxu0 0.0
    %2596 = vmatprep.subr.mxu0 0.0
    %2597 = vmatpush1.msra.mxu0 0.0
    %2598 = vmatprep.subr.mxu0 0.0
    %2599 = vmatpush1.msra.mxu0 0.0
    %2600 = vmatprep.subr.mxu0 0.0
    %2601 = vmatpush1.msra.mxu0 0.0
    %2602 = vmatprep.subr.mxu0 0.0
    %2603 = vmatpush1.msra.mxu0 0.0
    %2604 = vmatprep.subr.mxu0 0.0
    %2605 = vmatpush1.msra.mxu0 0.0
    %2606 = vmatprep.subr.mxu0 0.0
    %2607 = vmatpush1.msra.mxu0 0.0
    %2608 = vmatprep.subr.mxu0 0.0
    %2609 = vmatpush1.msra.mxu0 0.0
    %2610 = vmatprep.subr.mxu0 0.0
    %2611 = vmatpush1.msra.mxu0 0.0
    %2612 = vmatprep.subr.mxu0 0.0
    %2613 = vmatpush1.msra.mxu0 0.0
    %2614 = vmatprep.subr.mxu0 0.0
    %2615 = vmatpush1.msra.mxu0 0.0
    %2616 = vmatprep.subr.mxu0 0.0
    %2617 = vmatpush1.msra.mxu0 0.0
    %2618 = vmatprep.subr.mxu0 0.0
    %2619 = vmatpush1.msra.mxu0 0.0
    %2620 = vmatprep.subr.mxu0 0.0
    %2621 = vmatpush1.msra.mxu0 0.0
    %2622 = vmatprep.subr.mxu0 0.0
    %2623 = vmatpush1.msra.mxu0 0.0
    %2624 = vmatprep.subr.mxu0 0.0
    %2625 = vmatpush1.msra.mxu0 0.0
    %2626 = vmatprep.subr.mxu0 0.0
    %2627 = vmatpush1.msra.mxu0 0.0
    %2628 = vmatprep.subr.mxu0 0.0
    %2629 = vmatpush1.msra.mxu0 0.0
    %2630 = vmatprep.subr.mxu0 0.0
    %2631 = vmatpush1.msra.mxu0 0.0
    %2632 = vmatprep.subr.mxu0 0.0
    %2633 = vmatpush1.msra.mxu0 0.0
    %2634 = vmatprep.subr.mxu0 0.0
    %2635 = vmatpush1.msra.mxu0 0.0
    %2636 = vmatprep.subr.mxu0 0.0
    %2637 = vmatpush1.msra.mxu0 0.0
    %2638 = vmatprep.subr.mxu0 0.0
    %2639 = vmatpush1.msra.mxu0 0.0
    %2640 = vmatprep.subr.mxu0 0.0
    %2641 = vmatpush1.msra.mxu0 0.0
    %2642 = vmatprep.subr.mxu0 0.0
    %2643 = vmatpush1.msra.mxu0 0.0
    %2644 = vmatprep.mubr.f32.mxu0 0.0
    %2645 = vmatmul.mubr.f32.gmra.mrb[0].mxu0 %v2578
    %v2646 = vpop.f32.mrb[0].mxu0
    %v2647 = vadd.f32 0.0, %v2646
    %v2648 = vpop.f32.mrb[0].mxu0
    %2649 = vdwg.mxu0
    %v2650 = vpack.c.bf16 %v2647, %v2574
    %s2651 = scalar_lea.vmem %s5, 24
    %v2652 = vld [vmem:[%s2651] sm:$0xf]
    %v2653 = vld [vmem:[%s2651 + $0x4] sm:$0xf]
    %v2656 = vunpack.c.l.b16 %v2652
    %v2657 = vunpack.c.l.b16 %v2653
    %v2658 = vpack.c.b16 %v2657, %v2656
    %v2661 = vsel %vm400, %v2650, 0
    %2663 = vmatprep.subr.bf16.mxu0 0
    %2664 = vmatpush1.bf16.msra.mxu0 %v2658
    %2665 = vmatprep.subr.bf16.mxu0 0
    %2666 = vmatpush1.bf16.msra.mxu0 0
    %2667 = vmatprep.subr.bf16.mxu0 0
    %2668 = vmatpush1.bf16.msra.mxu0 0
    %2669 = vmatprep.subr.bf16.mxu0 0
    %2670 = vmatpush1.bf16.msra.mxu0 0
    %2671 = vmatprep.subr.bf16.mxu0 0
    %2672 = vmatpush1.bf16.msra.mxu0 0
    %2673 = vmatprep.subr.bf16.mxu0 0
    %2674 = vmatpush1.bf16.msra.mxu0 0
    %2675 = vmatprep.subr.bf16.mxu0 0
    %2676 = vmatpush1.bf16.msra.mxu0 0
    %2677 = vmatprep.subr.bf16.mxu0 0
    %2678 = vmatpush1.bf16.msra.mxu0 0
    %2679 = vmatprep.subr.bf16.mxu0 0
    %2680 = vmatpush1.bf16.msra.mxu0 0
    %2681 = vmatprep.subr.bf16.mxu0 0
    %2682 = vmatpush1.bf16.msra.mxu0 0
    %2683 = vmatprep.subr.bf16.mxu0 0
    %2684 = vmatpush1.bf16.msra.mxu0 0
    %2685 = vmatprep.subr.bf16.mxu0 0
    %2686 = vmatpush1.bf16.msra.mxu0 0
    %2687 = vmatprep.subr.bf16.mxu0 0
    %2688 = vmatpush1.bf16.msra.mxu0 0
    %2689 = vmatprep.subr.bf16.mxu0 0
    %2690 = vmatpush1.bf16.msra.mxu0 0
    %2691 = vmatprep.subr.bf16.mxu0 0
    %2692 = vmatpush1.bf16.msra.mxu0 0
    %2693 = vmatprep.subr.bf16.mxu0 0
    %2694 = vmatpush1.bf16.msra.mxu0 0
    %2695 = vmatprep.mubr.bf16.mxu0 0
    %2696 = vmatmul.mubr.bf16.gmra.mrb[0].mxu0 %v2661
    %v2697 = vpop.f32.mrb[0].mxu0
    %v2698 = vadd.f32 0.0, %v2697
    %v2699 = vpop.f32.mrb[0].mxu0
    %v2700 = vpop.f32.mrb[0].mxu0
    %v2701 = vadd.f32 0.0, %v2700
    %v2702 = vpop.f32.mrb[0].mxu0
    %2703 = vdwg.mxu0
    %v2706 = vunpack.c.l.b16 %v2135
    %v2707 = vunpack.c.l.b16 %v2136
    %v2708 = vpack.c.b16 %v2707, %v2706
    %v2711 = vsel %vm400, %v2133, 0
    %2713 = vmatprep.subr.bf16.mxu0 0
    %2714 = vmatpush1.bf16.msra.mxu0 %v2708
    %2715 = vmatprep.subr.bf16.mxu0 0
    %2716 = vmatpush1.bf16.msra.mxu0 0
    %2717 = vmatprep.subr.bf16.mxu0 0
    %2718 = vmatpush1.bf16.msra.mxu0 0
    %2719 = vmatprep.subr.bf16.mxu0 0
    %2720 = vmatpush1.bf16.msra.mxu0 0
    %2721 = vmatprep.subr.bf16.mxu0 0
    %2722 = vmatpush1.bf16.msra.mxu0 0
    %2723 = vmatprep.subr.bf16.mxu0 0
    %2724 = vmatpush1.bf16.msra.mxu0 0
    %2725 = vmatprep.subr.bf16.mxu0 0
    %2726 = vmatpush1.bf16.msra.mxu0 0
    %2727 = vmatprep.subr.bf16.mxu0 0
    %2728 = vmatpush1.bf16.msra.mxu0 0
    %2729 = vmatprep.subr.bf16.mxu0 0
    %2730 = vmatpush1.bf16.msra.mxu0 0
    %2731 = vmatprep.subr.bf16.mxu0 0
    %2732 = vmatpush1.bf16.msra.mxu0 0
    %2733 = vmatprep.subr.bf16.mxu0 0
    %2734 = vmatpush1.bf16.msra.mxu0 0
    %2735 = vmatprep.subr.bf16.mxu0 0
    %2736 = vmatpush1.bf16.msra.mxu0 0
    %2737 = vmatprep.subr.bf16.mxu0 0
    %2738 = vmatpush1.bf16.msra.mxu0 0
    %2739 = vmatprep.subr.bf16.mxu0 0
    %2740 = vmatpush1.bf16.msra.mxu0 0
    %2741 = vmatprep.subr.bf16.mxu0 0
    %2742 = vmatpush1.bf16.msra.mxu0 0
    %2743 = vmatprep.subr.bf16.mxu0 0
    %2744 = vmatpush1.bf16.msra.mxu0 0
    %2745 = vmatprep.mubr.bf16.mxu0 0
    %2746 = vmatmul.mubr.bf16.gmra.mrb[0].mxu0 %v2711
    %v2747 = vpop.f32.mrb[0].mxu0
    %v2748 = vadd.f32 %v2698, %v2747
    %v2749 = vpop.f32.mrb[0].mxu0
    %v2750 = vpop.f32.mrb[0].mxu0
    %v2751 = vadd.f32 %v2701, %v2750
    %v2752 = vpop.f32.mrb[0].mxu0
    %2753 = vdwg.mxu0
    %v2754 = vadd.f32 %v1614, %v2748
    %v2755 = vadd.f32 %v1615, %v2751
    %v2756 = vld [vmem:[%s3 + $0x15] sm:$0x1]
    %v2757 = vlaneseq
    %v2758 = vshrl.u32 %v2757, 7
    %v2759 = vsub.s32 0, %v2758
    %v2760 = vrot.slane %v2756, %v2759
    %v2761 = vadd.f32 %v2754, %v2760
    %v2762 = vadd.f32 %v2755, %v2760
    %v2763 = vld [vmem:[%s3 + $0x16] sm:$0x1]
    %v2764 = vld [vmem:[%s3 + $0x17] sm:$0x1]
    %v2765 = vsel %vm162, %v2761, 0.0
    %2766 = vadd.xlane.f32.xlu0 %v2765
    %v2767 = vpop.xlane.xlu0 %2766
    %v2768 = vsel %vm162, %v2762, 0.0
    %2769 = vadd.xlane.f32.xlu0 %v2768
    %v2770 = vpop.xlane.xlu0 %2769
    %v2771 = vmul.f32 %v2767, %v169
    %v2772 = vmul.f32 %v2770, %v169
    %v2773 = vsub.f32 %v2761, %v2771
    %v2774 = vsub.f32 %v2762, %v2772
    %v2775 = vmul.f32 %v2773, %v2773
    %v2776 = vmul.f32 %v2774, %v2774
    %v2777 = vsel %vm162, %v2775, 0.0
    %2778 = vadd.xlane.f32.xlu0 %v2777
    %v2779 = vpop.xlane.xlu0 %2778
    %v2780 = vsel %vm162, %v2776, 0.0
    %2781 = vadd.xlane.f32.xlu0 %v2780
    %v2782 = vpop.xlane.xlu0 %2781
    %v2783 = vmul.f32 %v2779, %v169
    %v2784 = vmul.f32 %v2782, %v169
    %v2785 = vadd.f32 %v2783, 1e-12
    %v2786 = vadd.f32 %v2784, 1e-12
    %v2787 = vrsqrt.pop %v2785
    %v2788 = vrsqrt.pop %v2786
    %v2789 = vmul.f32 %v2773, %v2787
    %v2790 = vmul.f32 %v2774, %v2788
    %v2791 = vlaneseq
    %v2792 = vshrl.u32 %v2791, 7
    %v2793 = vsub.s32 0, %v2792
    %v2794 = vrot.slane %v2763, %v2793
    %v2795 = vmul.f32 %v2789, %v2794
    %v2796 = vmul.f32 %v2790, %v2794
    %v2797 = vlaneseq
    %v2798 = vshrl.u32 %v2797, 7
    %v2799 = vsub.s32 0, %v2798
    %v2800 = vrot.slane %v2764, %v2799
    %v2801 = vadd.f32 %v2795, %v2800
    %v2802 = vadd.f32 %v2796, %v2800
    %v2803 = vpack.c.bf16 %v2802, %v2801
    %s2804 = scalar_lea.vmem %s6, 16
    %v2805 = vld [vmem:[%s2804] sm:$0xf]
    %v2806 = vld [vmem:[%s2804 + $0x4] sm:$0xf]
    %v2807 = vld [vmem:[%s2804 + $0x8] sm:$0xf]
    %v2808 = vld [vmem:[%s2804 + $0xc] sm:$0xf]
    %v2809 = vld [vmem:[%s3 + $0x18] sm:$0x1]
    %v2810 = vlaneseq
    %v2811 = vshrl.u32 %v2810, 7
    %v2812 = vsub.s32 0, %v2811
    %v2813 = vrot.slane %v2809, %v2812
    %v2818 = vunpack.c.l.b16 %v2805
    %v2819 = vunpack.c.l.b16 %v2806
    %v2820 = vunpack.c.l.b16 %v2807
    %v2821 = vunpack.c.l.b16 %v2808
    %v2822 = vpack.c.b16 %v2819, %v2818
    %v2823 = vpack.c.b16 %v2821, %v2820
    %v2827 = vsel %vm162, %v2803, 0
    %2829 = vmatprep.subr.bf16.mxu0 0
    %2830 = vmatpush1.bf16.msra.mxu0 %v2822
    %2831 = vmatprep.subr.bf16.mxu0 0
    %2832 = vmatpush1.bf16.msra.mxu0 %v2823
    %2833 = vmatprep.subr.bf16.mxu0 0
    %2834 = vmatpush1.bf16.msra.mxu0 0
    %2835 = vmatprep.subr.bf16.mxu0 0
    %2836 = vmatpush1.bf16.msra.mxu0 0
    %2837 = vmatprep.subr.bf16.mxu0 0
    %2838 = vmatpush1.bf16.msra.mxu0 0
    %2839 = vmatprep.subr.bf16.mxu0 0
    %2840 = vmatpush1.bf16.msra.mxu0 0
    %2841 = vmatprep.subr.bf16.mxu0 0
    %2842 = vmatpush1.bf16.msra.mxu0 0
    %2843 = vmatprep.subr.bf16.mxu0 0
    %2844 = vmatpush1.bf16.msra.mxu0 0
    %2845 = vmatprep.subr.bf16.mxu0 0
    %2846 = vmatpush1.bf16.msra.mxu0 0
    %2847 = vmatprep.subr.bf16.mxu0 0
    %2848 = vmatpush1.bf16.msra.mxu0 0
    %2849 = vmatprep.subr.bf16.mxu0 0
    %2850 = vmatpush1.bf16.msra.mxu0 0
    %2851 = vmatprep.subr.bf16.mxu0 0
    %2852 = vmatpush1.bf16.msra.mxu0 0
    %2853 = vmatprep.subr.bf16.mxu0 0
    %2854 = vmatpush1.bf16.msra.mxu0 0
    %2855 = vmatprep.subr.bf16.mxu0 0
    %2856 = vmatpush1.bf16.msra.mxu0 0
    %2857 = vmatprep.subr.bf16.mxu0 0
    %2858 = vmatpush1.bf16.msra.mxu0 0
    %2859 = vmatprep.subr.bf16.mxu0 0
    %2860 = vmatpush1.bf16.msra.mxu0 0
    %2861 = vmatprep.mubr.bf16.mxu0 0
    %2862 = vmatmul.mubr.bf16.gmra.mrb[0].mxu0 %v2827
    %v2863 = vpop.f32.mrb[0].mxu0
    %v2864 = vadd.f32 %v2813, %v2863
    %v2865 = vpop.f32.mrb[0].mxu0
    %v2866 = vpop.f32.mrb[0].mxu0
    %v2867 = vadd.f32 %v2813, %v2866
    %v2868 = vpop.f32.mrb[0].mxu0
    %2869 = vdwg.mxu0
    %v2870 = vmul.f32 %v2864, 0.5
    %v2871 = vmul.f32 %v2867, 0.5
    %v2872 = vmul.f32 %v2864, 0.044715
    %v2873 = vmul.f32 %v2867, 0.044715
    %v2874 = vmul.f32 %v2872, %v2864
    %v2875 = vmul.f32 %v2873, %v2867
    %v2876 = vmul.f32 %v2874, %v2864
    %v2877 = vmul.f32 %v2875, %v2867
    %v2878 = vadd.f32 %v2864, %v2876
    %v2879 = vadd.f32 %v2867, %v2877
    %v2880 = vmul.f32 %v2878, 0.7978846
    %v2881 = vmul.f32 %v2879, 0.7978846
    %v2882 = vtanh.pop %v2880
    %v2883 = vtanh.pop %v2881
    %v2884 = vadd.f32 %v2882, 1.0
    %v2885 = vadd.f32 %v2883, 1.0
    %v2886 = vmul.f32 %v2870, %v2884
    %v2887 = vmul.f32 %v2871, %v2885
    %v2888 = vpack.c.bf16 %v2887, %v2886
    %s2889 = scalar_lea.vmem %s7, 32
    %v2890 = vld [vmem:[%s2889] sm:$0xf]
    %v2891 = vld [vmem:[%s2889 + $0x4] sm:$0xf]
    %v2892 = vld [vmem:[%s2889 + $0x8] sm:$0xf]
    %v2893 = vld [vmem:[%s2889 + $0xc] sm:$0xf]
    %v2894 = vld [vmem:[%s2889 + $0x10] sm:$0xf]
    %v2895 = vld [vmem:[%s2889 + $0x14] sm:$0xf]
    %v2896 = vld [vmem:[%s2889 + $0x18] sm:$0xf]
    %v2897 = vld [vmem:[%s2889 + $0x1c] sm:$0xf]
    %v2898 = vld [vmem:[%s3 + $0x19] sm:$0x1]
    %v2899 = vlaneseq
    %v2900 = vshrl.u32 %v2899, 7
    %v2901 = vsub.s32 0, %v2900
    %v2902 = vrot.slane %v2898, %v2901
    %v2911 = vunpack.c.l.b16 %v2890
    %v2912 = vunpack.c.l.b16 %v2891
    %v2913 = vunpack.c.l.b16 %v2892
    %v2914 = vunpack.c.l.b16 %v2893
    %v2915 = vunpack.c.l.b16 %v2894
    %v2916 = vunpack.c.l.b16 %v2895
    %v2917 = vunpack.c.l.b16 %v2896
    %v2918 = vunpack.c.l.b16 %v2897
    %v2919 = vpack.c.b16 %v2912, %v2911
    %v2920 = vpack.c.b16 %v2914, %v2913
    %v2921 = vpack.c.b16 %v2916, %v2915
    %v2922 = vpack.c.b16 %v2918, %v2917
    %v2928 = vsel %vm1529, %v2888, 0
    %2930 = vmatprep.subr.bf16.mxu0 0
    %2931 = vmatpush1.bf16.msra.mxu0 %v2919
    %2932 = vmatprep.subr.bf16.mxu0 0
    %2933 = vmatpush1.bf16.msra.mxu0 %v2920
    %2934 = vmatprep.subr.bf16.mxu0 0
    %2935 = vmatpush1.bf16.msra.mxu0 %v2921
    %2936 = vmatprep.subr.bf16.mxu0 0
    %2937 = vmatpush1.bf16.msra.mxu0 %v2922
    %2938 = vmatprep.subr.bf16.mxu0 0
    %2939 = vmatpush1.bf16.msra.mxu0 0
    %2940 = vmatprep.subr.bf16.mxu0 0
    %2941 = vmatpush1.bf16.msra.mxu0 0
    %2942 = vmatprep.subr.bf16.mxu0 0
    %2943 = vmatpush1.bf16.msra.mxu0 0
    %2944 = vmatprep.subr.bf16.mxu0 0
    %2945 = vmatpush1.bf16.msra.mxu0 0
    %2946 = vmatprep.subr.bf16.mxu0 0
    %2947 = vmatpush1.bf16.msra.mxu0 0
    %2948 = vmatprep.subr.bf16.mxu0 0
    %2949 = vmatpush1.bf16.msra.mxu0 0
    %2950 = vmatprep.subr.bf16.mxu0 0
    %2951 = vmatpush1.bf16.msra.mxu0 0
    %2952 = vmatprep.subr.bf16.mxu0 0
    %2953 = vmatpush1.bf16.msra.mxu0 0
    %2954 = vmatprep.subr.bf16.mxu0 0
    %2955 = vmatpush1.bf16.msra.mxu0 0
    %2956 = vmatprep.subr.bf16.mxu0 0
    %2957 = vmatpush1.bf16.msra.mxu0 0
    %2958 = vmatprep.subr.bf16.mxu0 0
    %2959 = vmatpush1.bf16.msra.mxu0 0
    %2960 = vmatprep.subr.bf16.mxu0 0
    %2961 = vmatpush1.bf16.msra.mxu0 0
    %2962 = vmatprep.mubr.bf16.mxu0 0
    %2963 = vmatmul.mubr.bf16.gmra.mrb[0].mxu0 %v2928
    %v2964 = vpop.f32.mrb[0].mxu0
    %v2965 = vadd.f32 %v2902, %v2964
    %v2966 = vpop.f32.mrb[0].mxu0
    %v2967 = vpop.f32.mrb[0].mxu0
    %v2968 = vadd.f32 %v2902, %v2967
    %v2969 = vpop.f32.mrb[0].mxu0
    %2970 = vdwg.mxu0
    %v2971 = vadd.f32 %v2801, %v2965
    %v2972 = vadd.f32 %v2802, %v2968
    %v2973 = vld [vmem:[%s3 + $0x1a] sm:$0x1]
    %v2974 = vld [vmem:[%s3 + $0x1b] sm:$0x1]
    %v2975 = vsel %vm162, %v2971, 0.0
    %2976 = vadd.xlane.f32.xlu0 %v2975
    %v2977 = vpop.xlane.xlu0 %2976
    %v2978 = vsel %vm162, %v2972, 0.0
    %2979 = vadd.xlane.f32.xlu0 %v2978
    %v2980 = vpop.xlane.xlu0 %2979
    %v2981 = vmul.f32 %v2977, %v169
    %v2982 = vmul.f32 %v2980, %v169
    %v2983 = vsub.f32 %v2971, %v2981
    %v2984 = vsub.f32 %v2972, %v2982
    %v2985 = vmul.f32 %v2983, %v2983
    %v2986 = vmul.f32 %v2984, %v2984
    %v2987 = vsel %vm162, %v2985, 0.0
    %2988 = vadd.xlane.f32.xlu0 %v2987
    %v2989 = vpop.xlane.xlu0 %2988
    %v2990 = vsel %vm162, %v2986, 0.0
    %2991 = vadd.xlane.f32.xlu0 %v2990
    %v2992 = vpop.xlane.xlu0 %2991
    %v2993 = vmul.f32 %v2989, %v169
    %v2994 = vmul.f32 %v2992, %v169
    %v2995 = vadd.f32 %v2993, 1e-12
    %v2996 = vadd.f32 %v2994, 1e-12
    %v2997 = vrsqrt.pop %v2995
    %v2998 = vrsqrt.pop %v2996
    %v2999 = vmul.f32 %v2983, %v2997
    %v3000 = vmul.f32 %v2984, %v2998
    %v3001 = vlaneseq
    %v3002 = vshrl.u32 %v3001, 7
    %v3003 = vsub.s32 0, %v3002
    %v3004 = vrot.slane %v2973, %v3003
    %v3005 = vmul.f32 %v2999, %v3004
    %v3006 = vmul.f32 %v3000, %v3004
    %v3007 = vlaneseq
    %v3008 = vshrl.u32 %v3007, 7
    %v3009 = vsub.s32 0, %v3008
    %v3010 = vrot.slane %v2974, %v3009
    %v3011 = vadd.f32 %v3005, %v3010
    %v3012 = vadd.f32 %v3006, %v3010
    %v3013 = vmul.u32 %v39, 8
    %vm3014 = vcmp.eq.s32.totalorder %v35, %v3013
    %v3015 = vsel %vm3014, 1, 0
    %v3016 = vcvt.s32.f32 %v3015
    %v3018 = vsel %vm400, %v3016, 0
    %3020 = vmatprep.subr.mxu0 0.0
    %3021 = vmatpush1.msra.mxu0 %v3011
    %3022 = vmatprep.subr.mxu0 0.0
    %3023 = vmatpush1.msra.mxu0 %v3012
    %3024 = vmatprep.subr.mxu0 0.0
    %3025 = vmatpush1.msra.mxu0 0.0
    %3026 = vmatprep.subr.mxu0 0.0
    %3027 = vmatpush1.msra.mxu0 0.0
    %3028 = vmatprep.subr.mxu0 0.0
    %3029 = vmatpush1.msra.mxu0 0.0
    %3030 = vmatprep.subr.mxu0 0.0
    %3031 = vmatpush1.msra.mxu0 0.0
    %3032 = vmatprep.subr.mxu0 0.0
    %3033 = vmatpush1.msra.mxu0 0.0
    %3034 = vmatprep.subr.mxu0 0.0
    %3035 = vmatpush1.msra.mxu0 0.0
    %3036 = vmatprep.subr.mxu0 0.0
    %3037 = vmatpush1.msra.mxu0 0.0
    %3038 = vmatprep.subr.mxu0 0.0
    %3039 = vmatpush1.msra.mxu0 0.0
    %3040 = vmatprep.subr.mxu0 0.0
    %3041 = vmatpush1.msra.mxu0 0.0
    %3042 = vmatprep.subr.mxu0 0.0
    %3043 = vmatpush1.msra.mxu0 0.0
    %3044 = vmatprep.subr.mxu0 0.0
    %3045 = vmatpush1.msra.mxu0 0.0
    %3046 = vmatprep.subr.mxu0 0.0
    %3047 = vmatpush1.msra.mxu0 0.0
    %3048 = vmatprep.subr.mxu0 0.0
    %3049 = vmatpush1.msra.mxu0 0.0
    %3050 = vmatprep.subr.mxu0 0.0
    %3051 = vmatpush1.msra.mxu0 0.0
    %3052 = vmatprep.subr.mxu0 0.0
    %3053 = vmatpush1.msra.mxu0 0.0
    %3054 = vmatprep.subr.mxu0 0.0
    %3055 = vmatpush1.msra.mxu0 0.0
    %3056 = vmatprep.subr.mxu0 0.0
    %3057 = vmatpush1.msra.mxu0 0.0
    %3058 = vmatprep.subr.mxu0 0.0
    %3059 = vmatpush1.msra.mxu0 0.0
    %3060 = vmatprep.subr.mxu0 0.0
    %3061 = vmatpush1.msra.mxu0 0.0
    %3062 = vmatprep.subr.mxu0 0.0
    %3063 = vmatpush1.msra.mxu0 0.0
    %3064 = vmatprep.subr.mxu0 0.0
    %3065 = vmatpush1.msra.mxu0 0.0
    %3066 = vmatprep.subr.mxu0 0.0
    %3067 = vmatpush1.msra.mxu0 0.0
    %3068 = vmatprep.subr.mxu0 0.0
    %3069 = vmatpush1.msra.mxu0 0.0
    %3070 = vmatprep.subr.mxu0 0.0
    %3071 = vmatpush1.msra.mxu0 0.0
    %3072 = vmatprep.subr.mxu0 0.0
    %3073 = vmatpush1.msra.mxu0 0.0
    %3074 = vmatprep.subr.mxu0 0.0
    %3075 = vmatpush1.msra.mxu0 0.0
    %3076 = vmatprep.subr.mxu0 0.0
    %3077 = vmatpush1.msra.mxu0 0.0
    %3078 = vmatprep.subr.mxu0 0.0
    %3079 = vmatpush1.msra.mxu0 0.0
    %3080 = vmatprep.subr.mxu0 0.0
    %3081 = vmatpush1.msra.mxu0 0.0
    %3082 = vmatprep.subr.mxu0 0.0
    %3083 = vmatpush1.msra.mxu0 0.0
    %3084 = vmatprep.mubr.f32.mxu0 0.0
    %3085 = vmatmul.mubr.f32.gmra.mrb[0].mxu0 %v3018
    %v3086 = vpop.f32.mrb[0].mxu0
    %v3087 = vadd.f32 0.0, %v3086
    %v3088 = vpop.f32.mrb[0].mxu0
    %3089 = vdwg.mxu0
    %v3090 = vpack.c.bf16 %v3087, %v3087
    %v3091 = vld [vmem:[%s8] sm:$0xf]
    %v3092 = vld [vmem:[%s8 + $0x4] sm:$0xf]
    %v3093 = vld [vmem:[%s8 + $0x8] sm:$0xf]
    %v3094 = vld [vmem:[%s8 + $0xc] sm:$0xf]
    %v3095 = vld [vmem:[%s3 + $0x1c] sm:$0x1]
    %v3096 = vlaneseq
    %v3097 = vshrl.u32 %v3096, 7
    %v3098 = vsub.s32 0, %v3097
    %v3099 = vrot.slane %v3095, %v3098
    %v3104 = vunpack.c.l.b16 %v3091
    %v3105 = vunpack.c.l.b16 %v3092
    %v3106 = vunpack.c.l.b16 %v3093
    %v3107 = vunpack.c.l.b16 %v3094
    %v3108 = vpack.c.b16 %v3105, %v3104
    %v3109 = vpack.c.b16 %v3107, %v3106
    %v3113 = vsel %vm162, %v3090, 0
    %3115 = vmatprep.subr.bf16.mxu0 0
    %3116 = vmatpush1.bf16.msra.mxu0 %v3108
    %3117 = vmatprep.subr.bf16.mxu0 0
    %3118 = vmatpush1.bf16.msra.mxu0 %v3109
    %3119 = vmatprep.subr.bf16.mxu0 0
    %3120 = vmatpush1.bf16.msra.mxu0 0
    %3121 = vmatprep.subr.bf16.mxu0 0
    %3122 = vmatpush1.bf16.msra.mxu0 0
    %3123 = vmatprep.subr.bf16.mxu0 0
    %3124 = vmatpush1.bf16.msra.mxu0 0
    %3125 = vmatprep.subr.bf16.mxu0 0
    %3126 = vmatpush1.bf16.msra.mxu0 0
    %3127 = vmatprep.subr.bf16.mxu0 0
    %3128 = vmatpush1.bf16.msra.mxu0 0
    %3129 = vmatprep.subr.bf16.mxu0 0
    %3130 = vmatpush1.bf16.msra.mxu0 0
    %3131 = vmatprep.subr.bf16.mxu0 0
    %3132 = vmatpush1.bf16.msra.mxu0 0
    %3133 = vmatprep.subr.bf16.mxu0 0
    %3134 = vmatpush1.bf16.msra.mxu0 0
    %3135 = vmatprep.subr.bf16.mxu0 0
    %3136 = vmatpush1.bf16.msra.mxu0 0
    %3137 = vmatprep.subr.bf16.mxu0 0
    %3138 = vmatpush1.bf16.msra.mxu0 0
    %3139 = vmatprep.subr.bf16.mxu0 0
    %3140 = vmatpush1.bf16.msra.mxu0 0
    %3141 = vmatprep.subr.bf16.mxu0 0
    %3142 = vmatpush1.bf16.msra.mxu0 0
    %3143 = vmatprep.subr.bf16.mxu0 0
    %3144 = vmatpush1.bf16.msra.mxu0 0
    %3145 = vmatprep.subr.bf16.mxu0 0
    %3146 = vmatpush1.bf16.msra.mxu0 0
    %3147 = vmatprep.mubr.bf16.mxu0 0
    %3148 = vmatmul.mubr.bf16.gmra.mrb[0].mxu0 %v3113
    %v3149 = vpop.f32.mrb[0].mxu0
    %v3150 = vadd.f32 %v3099, %v3149
    %v3151 = vpop.f32.mrb[0].mxu0
    %v3152 = vpop.f32.mrb[0].mxu0
    %v3153 = vpop.f32.mrb[0].mxu0
    %3154 = vdwg.mxu0
    %v3155 = vtanh.pop %v3150
    %3156 = vst [vmem:[#allocation2] sm:$0x3] %v3155
    // Predicated region
    $region38: #{question_encoder_forward.1} parent=1 // pred_check
      _
    $region39: #{question_encoder_forward.1} parent=1 // pred_check_branch
      %3158 = sbr.rel (0) target = $region41
    $region40: #{question_encoder_forward.1} parent=1 // pred_region
      %s3160 = ssub.s32 32, 32
      %3161 = vsyncadd [#allocation3], %s3160
      %s3163 = sshll.u32 [#allocation2], 4
      %s3164 = int_to_ptr.vmem [resolvable:$true] %s3163
      %3166 = dma.vmem_to_hbm [thread:$0]  %s3164, 32, %s9, [#allocation3]
    $region41: #{question_encoder_forward.1} parent=1 // pred_fallthru
      _
    // Predicated region
    $region42: #{question_encoder_forward.1} parent=1 // pred_check
      _
    $region43: #{question_encoder_forward.1} parent=1 // pred_check_branch
      %3168 = sbr.rel (0) target = $region45
    $region44: #{question_encoder_forward.1} parent=1 // pred_region
      %3169 = dma.done [#allocation3], 32
    $region45: #{question_encoder_forward.1} parent=1 // pred_fallthru
      _
    %3170 = vsyncpa [#allocation3], 1

</llo_original>
